<compile_context>
chip_gen: v6e
topology: v6e:2x2x1
jax: 0.10.0
libtpu: 0.0.40
codegen_flags: <defaults>
</compile_context>

<pallas_src>
import functools

import jax
import jax.numpy as jnp
from jax import lax
from jax.experimental import pallas as pl
from jax.experimental.pallas import tpu as pltpu

_LANE = 128

_PARAMS = pltpu.CompilerParams(
    dimension_semantics=("parallel",),
    vmem_limit_bytes=48 * 1024 * 1024,
)


def _round_up(x, m):
    return (x + m - 1) // m * m


def _pack_geom(c):
    """(taps per 128-lane slab, slab contraction size) for dense 3x3 weight packing."""
    if c >= _LANE:
        assert c % _LANE == 0, c
        return 1, c
    g = _LANE // c if _LANE % c == 0 else 1
    return g, _LANE


# ----------------------------- in-kernel conv helper ------------------------------ #

def _conv3x3(pad_ref, w_ref, ho, wo, stride, c, g, slab_k):
    """3x3 conv (pad=1) from a phase-split, zero-haloed staging buffer.

    pad_ref: (stride*stride*(ho*wo + 2*wo), c) bf16.  Phase p's interior rows live at
             [p*rpp + wo, p*rpp + wo + ho*wo), rpp = ho*wo + 2*wo; halo rows are zero.
    w_ref:   (n_slabs*slab_k, cout) bf16, taps densely packed (g taps per slab).
    Returns  (ho*wo, cout) f32.  The slab construction (roll/mask/concat) of slab s+1
    overlaps slab s's MXU dot because each slab feeds its own accumulating dot.
    """
    hw = ho * wo
    rpp = hw + 2 * wo
    col = lax.broadcasted_iota(jnp.int32, (hw, 1), 0) % wo        # output x coordinate

    def tap(k):
        ky, kx = divmod(k, 3)
        qy, py = divmod(ky - 1, stride)                           # input y = s*(yo+qy)+py
        qx, px = divmod(kx - 1, stride)
        p = py * stride + px                                      # phase index
        base = p * rpp + wo + qy * wo                             # multiple of 8 (wo%8==0)
        v = pad_ref[base:base + hw, :].astype(jnp.float32)        # aligned, unstrided
        if qx == -1:
            # bring the left neighbour in with a sublane rotate; rows with x==0 must read
            # the zero padding, so mask them (this also kills the wrapped-around row).
            v = jnp.where(col != 0, pltpu.roll(v, 1, 0), 0.0)
        elif qx == 1:
            v = jnp.where(col != wo - 1, pltpu.roll(v, hw - 1, 0), 0.0)
        return v

    n_slabs = -(-9 // g)
    acc = None
    for s in range(n_slabs):
        n_t = min(g, 9 - s * g)
        parts = [tap(s * g + j) for j in range(n_t)]
        fill = slab_k - n_t * c
        if fill:                                                  # explicit zero lanes:
            parts.append(jnp.zeros((hw, fill), jnp.float32))      # never rely on stale VMEM
        lhs = parts[0] if len(parts) == 1 else jnp.concatenate(parts, axis=-1)
        d = jnp.dot(lhs.astype(jnp.bfloat16),
                    w_ref[s * slab_k:(s + 1) * slab_k, :],
                    preferred_element_type=jnp.float32)
        acc = d if acc is None else acc + d
    return acc


# ----------------------------------- fused kernel --------------------------------- #

def _block_kernel(*refs, h, w, cin, depth, stride, g1, sk1, g2, sk2, has_sc_conv):
    """BN1 -> conv3x3(s=1) -> PReLU -> conv3x3(stride) -> BN2 -> SE -> (+shortcut)."""
    if has_sc_conv:
        (x_ref, s1_ref, b1_ref, w1_ref, a_ref, w2_ref, s2_ref, b2_ref,
         wse1_ref, wse2_ref, wsc_ref, ssc_ref, bsc_ref, o_ref, *scratch) = refs
    else:
        (x_ref, s1_ref, b1_ref, w1_ref, a_ref, w2_ref, s2_ref, b2_ref,
         wse1_ref, wse2_ref, o_ref, *scratch) = refs
    pad1_ref, pad2_ref = scratch[0], scratch[1]
    r1_ref = scratch[2] if stride > 1 else None

    ho, wo = h // stride, w // stride
    hw1, hw2 = h * w, ho * wo
    rpp2 = hw2 + 2 * wo

    # Re-zero only the halo rows (O(w) rows, not the whole buffer) -- the interiors are
    # fully rewritten below.  Done every step for megacore safety (see header comment).
    pad1_ref[0:w, :] = jnp.zeros((w, cin), pad1_ref.dtype)
    pad1_ref[w + hw1:w + hw1 + w, :] = jnp.zeros((w, cin), pad1_ref.dtype)
    for p in range(stride * stride):
        pad2_ref[p * rpp2:p * rpp2 + wo, :] = jnp.zeros((wo, depth), pad2_ref.dtype)
        pad2_ref[p * rpp2 + wo + hw2:(p + 1) * rpp2, :] = (
            jnp.zeros((wo, depth), pad2_ref.dtype))

    # ---- BN1 -> conv1 3x3 (stride 1, pad 1) -> PReLU ----
    xb = x_ref[...] * s1_ref[...] + b1_ref[...]                   # (hw1, cin) f32
    pad1_ref[w:w + hw1, :] = xb.astype(pad1_ref.dtype)            # bf16 staging store
    acc1 = _conv3x3(pad1_ref, w1_ref, h, w, 1, cin, g1, sk1)      # (hw1, depth) f32
    r1 = jnp.where(acc1 > 0, acc1, acc1 * a_ref[...])

    # ---- stage r1 into the phase-split, zero-haloed conv2 buffer (no HBM round trip) --
    if stride == 1:
        pad2_ref[wo:wo + hw2, :] = r1.astype(pad2_ref.dtype)
    else:
        r1_ref[...] = r1                                          # f32 scratch: strided
        for py in range(stride):                                  # sublane reads below
            for px in range(stride):                              # stay un-packed
                p = py * stride + px
                for yo in range(ho):
                    dst = p * rpp2 + wo + yo * wo
                    src = (stride * yo + py) * w + px
                    pad2_ref[dst:dst + wo, :] = r1_ref[
                        pl.ds(src, wo, stride), :].astype(pad2_ref.dtype)

    # ---- conv2 3x3 (stride, pad 1) -> BN2 ----
    acc2 = _conv3x3(pad2_ref, w2_ref, ho, wo, stride, depth, g2, sk2)
    r2 = acc2 * s2_ref[...] + b2_ref[...]                         # (hw2, depth) f32

    # ---- SEModule: global avg-pool -> fc1 -> ReLU -> fc2 -> Sigmoid -> channel gate ----
    m = jnp.mean(r2, axis=0, keepdims=True)
    hvec = jnp.maximum(jnp.dot(m, wse1_ref[...], preferred_element_type=jnp.float32), 0.0)
    gate = jax.nn.sigmoid(jnp.dot(hvec, wse2_ref[...], preferred_element_type=jnp.float32))

    # ---- shortcut: MaxPool2d(1, stride) subsample, optionally 1x1 conv + BN ----
    if stride == 1:
        xs = x_ref[...]
    else:
        xs = jnp.concatenate(
            [x_ref[pl.ds(stride * yo * w, wo, stride), :] for yo in range(ho)], axis=0)
    if has_sc_conv:
        sc = jnp.dot(xs.astype(jnp.bfloat16), wsc_ref[...],
                     preferred_element_type=jnp.float32)
        sc = sc * ssc_ref[...] + bsc_ref[...]
    else:
        sc = xs                                                   # identity (cin == depth)

    o_ref[...] = r2 * gate + sc


# ------------------------------ host-side glue ------------------------------------ #

def _bn_affine(bn, eps=1e-5):
    gamma, beta, mean, var = bn
    scale = gamma / jnp.sqrt(var + eps)
    bias = beta - mean * scale
    return scale[None, :], bias[None, :]


def _pack_3x3_weight(w_oihw, g, slab_k):
    """torch (Cout, Cin, 3, 3) -> (ceil(9/g)*slab_k, Cout) bf16, taps densely packed."""
    cout, c = w_oihw.shape[0], w_oihw.shape[1]
    w_t = jnp.transpose(w_oihw, (2, 3, 1, 0)).reshape(9, c, cout)     # (tap, cin, cout)
    n_slabs = -(-9 // g)
    wp = jnp.zeros((n_slabs, slab_k, cout), jnp.float32)
    for s in range(n_slabs):
        for j in range(min(g, 9 - s * g)):
            wp = wp.at[s, j * c:(j + 1) * c, :].set(w_t[s * g + j])
    return wp.reshape(n_slabs * slab_k, cout).astype(jnp.bfloat16)


def bottleneck_ir_se_forward(x_nchw, params, stride):
    x = jnp.transpose(x_nchw, (0, 2, 3, 1)).astype(jnp.float32)       # -> NHWC
    n, h, w, cin = x.shape
    depth = params["conv1_w"].shape[0]
    assert h % stride == 0 and w % stride == 0
    ho, wo = h // stride, w // stride
    assert w % 8 == 0 and wo % 8 == 0, "row dimension must be sublane aligned"
    hw1, hw2 = h * w, ho * wo
    dr = depth // 16
    g1, sk1 = _pack_geom(cin)
    g2, sk2 = _pack_geom(depth)

    s1, b1 = _bn_affine(params["bn1"])
    w1 = _pack_3x3_weight(params["conv1_w"], g1, sk1)
    alpha = params["prelu_alpha"][None, :]
    w2 = _pack_3x3_weight(params["conv2_w"], g2, sk2)
    s2, b2 = _bn_affine(params["bn2"])
    wse1 = jnp.transpose(params["se_fc1_w"][:, :, 0, 0])              # (depth, depth//16)
    wse2 = jnp.transpose(params["se_fc2_w"][:, :, 0, 0])              # (depth//16, depth)
    has_sc_conv = (cin != depth)

    x_flat = x.reshape(n, hw1, cin)

    def vec_spec(c):
        return pl.BlockSpec((1, c), lambda i: (0, 0))

    def mat_spec(shape):
        return pl.BlockSpec(shape, lambda i: (0, 0))

    in_specs = [
        pl.BlockSpec((None, hw1, cin), lambda i: (i, 0, 0)),
        vec_spec(cin), vec_spec(cin),
        mat_spec((w1.shape[0], depth)),
        vec_spec(depth),
        mat_spec((w2.shape[0], depth)),
        vec_spec(depth), vec_spec(depth),
        mat_spec((depth, dr)),
        mat_spec((dr, depth)),
    ]
    args = [x_flat, s1, b1, w1, alpha, w2, s2, b2, wse1, wse2]
    if has_sc_conv:
        wsc = jnp.transpose(params["sc_conv_w"][:, :, 0, 0]).astype(jnp.bfloat16)
        ssc, bsc = _bn_affine(params["bn_sc"])
        in_specs += [mat_spec((cin, depth)), vec_spec(depth), vec_spec(depth)]
        args += [wsc, ssc, bsc]

    scratch = [
        pltpu.VMEM((hw1 + 2 * w, cin), jnp.bfloat16),                       # conv1 staging
        pltpu.VMEM((stride * stride * (hw2 + 2 * wo), depth), jnp.bfloat16),  # conv2 staging
    ]
    if stride > 1:
        scratch.append(pltpu.VMEM((hw1, depth), jnp.float32))               # r1 (phase src)

    kern = functools.partial(_block_kernel, h=h, w=w, cin=cin, depth=depth, stride=stride,
                             g1=g1, sk1=sk1, g2=g2, sk2=sk2, has_sc_conv=has_sc_conv)
    out = pl.pallas_call(
        kern,
        out_shape=jax.ShapeDtypeStruct((n, hw2, depth), jnp.float32),
        grid=(n,),
        in_specs=in_specs,
        out_specs=pl.BlockSpec((None, hw2, depth), lambda i: (i, 0, 0)),
        scratch_shapes=scratch,
        compiler_params=_PARAMS,
    )(*args)

    out = out.reshape(n, ho, wo, depth)
    return jnp.transpose(out, (0, 3, 1, 2))                              # -> NCHW


# --------------------------- pure-JAX reference ----------------------------------- #

def reference_forward(x, params, stride):
    P = lax.Precision.HIGHEST
    dn = ("NCHW", "OIHW", "NCHW")

    def bn(v, prm):
        g, b, m, var = prm
        inv = g / jnp.sqrt(var + 1e-5)
        return v * inv[None, :, None, None] + (b - m * inv)[None, :, None, None]

    cin = x.shape[1]
    depth = params["conv1_w"].shape[0]

    r = bn(x, params["bn1"])
    r = lax.conv_general_dilated(r, params["conv1_w"], (1, 1), ((1, 1), (1, 1)),
                                 dimension_numbers=dn, precision=P)
    a = params["prelu_alpha"][None, :, None, None]
    r = jnp.where(r > 0, r, r * a)
    r = lax.conv_general_dilated(r, params["conv2_w"], (stride, stride), ((1, 1), (1, 1)),
                                 dimension_numbers=dn, precision=P)
    r = bn(r, params["bn2"])

    m = jnp.mean(r, axis=(2, 3), keepdims=True)
    se = lax.conv_general_dilated(m, params["se_fc1_w"], (1, 1), "VALID",
                                  dimension_numbers=dn, precision=P)
    se = jnp.maximum(se, 0.0)
    se = lax.conv_general_dilated(se, params["se_fc2_w"], (1, 1), "VALID",
                                  dimension_numbers=dn, precision=P)
    res = r * jax.nn.sigmoid(se)

    if cin == depth:
        sc = x[:, :, ::stride, ::stride]
    else:
        sc = lax.conv_general_dilated(x, params["sc_conv_w"], (stride, stride), "VALID",
                                      dimension_numbers=dn, precision=P)
        sc = bn(sc, params["bn_sc"])
    return res + sc


# ------------------------------ parameter init ------------------------------------ #

def make_params(key, in_channel, depth):
    ks = jax.random.split(key, 8)

    def bn_params(k, c):
        k1, k2, k3, k4 = jax.random.split(k, 4)
        return (1.0 + 0.1 * jax.random.normal(k1, (c,), jnp.float32),
                0.1 * jax.random.normal(k2, (c,), jnp.float32),
                0.1 * jax.random.normal(k3, (c,), jnp.float32),
                jax.random.uniform(k4, (c,), jnp.float32, 0.5, 1.5))

    return {
        "bn1": bn_params(ks[0], in_channel),
        "conv1_w": jax.random.normal(ks[1], (depth, in_channel, 3, 3), jnp.float32)
                   / (in_channel * 9) ** 0.5,
        "prelu_alpha": jnp.full((depth,), 0.25, jnp.float32),
        "conv2_w": jax.random.normal(ks[2], (depth, depth, 3, 3), jnp.float32)
                   / (depth * 9) ** 0.5,
        "bn2": bn_params(ks[3], depth),
        "se_fc1_w": jax.random.normal(ks[4], (depth // 16, depth, 1, 1), jnp.float32)
                    / depth ** 0.5,
        "se_fc2_w": jax.random.normal(ks[5], (depth, depth // 16, 1, 1), jnp.float32)
                    / (depth // 16) ** 0.5,
        "sc_conv_w": jax.random.normal(ks[6], (depth, in_channel, 1, 1), jnp.float32)
                     / in_channel ** 0.5,
        "bn_sc": bn_params(ks[7], depth),
    }


if __name__ == "__main__":
    key = jax.random.PRNGKey(0)

    configs = [
        dict(in_channel=16, depth=32, stride=2),   # projection shortcut (1x1 conv + BN)
        dict(in_channel=32, depth=32, stride=1),   # identity / MaxPool(1,1) shortcut
    ]
    for idx, cfg in enumerate(configs):
        cin, depth, stride = cfg["in_channel"], cfg["depth"], cfg["stride"]
        kxi, kpi = jax.random.split(jax.random.fold_in(key, idx))
        x = jax.random.normal(kxi, (2, cin, 16, 16), dtype=jnp.float32)   # NCHW
        params = make_params(kpi, cin, depth)

        out = jax.block_until_ready(bottleneck_ir_se_forward(x, params, stride))
        ref = reference_forward(x, params, stride)
        assert out.shape == ref.shape == (2, depth, 16 // stride, 16 // stride), \
            (out.shape, ref.shape)
        err = float(jnp.max(jnp.abs(out - ref)))
        # bf16 MXU operands (two chained 3x3 convs + 1x1 shortcut) vs f32 HIGHEST reference.
        assert jnp.allclose(out, ref, rtol=2.5e-2, atol=5e-2), \
            f"config {cfg}: max abs err {err}"

    print("KERNEL_OK")
</pallas_src>

<mosaic_0001>
module attributes {stable_mosaic.version = 11 : i64} {
  func.func @_block_kernel(%arg0: i32, %arg1: memref<1x256x16xf32, #tpu.memory_space<vmem>>, %arg2: memref<1x16xf32, #tpu.memory_space<vmem>>, %arg3: memref<1x16xf32, #tpu.memory_space<vmem>>, %arg4: memref<256x32xbf16, #tpu.memory_space<vmem>>, %arg5: memref<1x32xf32, #tpu.memory_space<vmem>>, %arg6: memref<384x32xbf16, #tpu.memory_space<vmem>>, %arg7: memref<1x32xf32, #tpu.memory_space<vmem>>, %arg8: memref<1x32xf32, #tpu.memory_space<vmem>>, %arg9: memref<32x2xf32, #tpu.memory_space<vmem>>, %arg10: memref<2x32xf32, #tpu.memory_space<vmem>>, %arg11: memref<16x32xbf16, #tpu.memory_space<vmem>>, %arg12: memref<1x32xf32, #tpu.memory_space<vmem>>, %arg13: memref<1x32xf32, #tpu.memory_space<vmem>>, %arg14: memref<1x64x32xf32, #tpu.memory_space<vmem>>, %arg15: memref<288x16xbf16, #tpu.memory_space<vmem>>, %arg16: memref<320x32xbf16, #tpu.memory_space<vmem>>, %arg17: memref<256x32xf32, #tpu.memory_space<vmem>>) attributes {dimension_semantics = [#tpu.dimension_semantics<parallel>], iteration_bounds = array<i64: 2>, scalar_prefetch = 0 : i64, scratch_operands = 3 : i64, tpu.core_type = #tpu.core_type<tc>, window_params = [{transform_indices = @transform_0, window_bounds = array<i64: 1, 256, 16>}, {pipeline_mode = #tpu.pipeline_mode<synchronous>, transform_indices = @transform_1, window_bounds = array<i64: 1, 16>}, {pipeline_mode = #tpu.pipeline_mode<synchronous>, transform_indices = @transform_2, window_bounds = array<i64: 1, 16>}, {pipeline_mode = #tpu.pipeline_mode<synchronous>, transform_indices = @transform_3, window_bounds = array<i64: 256, 32>}, {pipeline_mode = #tpu.pipeline_mode<synchronous>, transform_indices = @transform_4, window_bounds = array<i64: 1, 32>}, {pipeline_mode = #tpu.pipeline_mode<synchronous>, transform_indices = @transform_5, window_bounds = array<i64: 384, 32>}, {pipeline_mode = #tpu.pipeline_mode<synchronous>, transform_indices = @transform_6, window_bounds = array<i64: 1, 32>}, {pipeline_mode = #tpu.pipeline_mode<synchronous>, transform_indices = @transform_7, window_bounds = array<i64: 1, 32>}, {pipeline_mode = #tpu.pipeline_mode<synchronous>, transform_indices = @transform_8, window_bounds = array<i64: 32, 2>}, {pipeline_mode = #tpu.pipeline_mode<synchronous>, transform_indices = @transform_9, window_bounds = array<i64: 2, 32>}, {pipeline_mode = #tpu.pipeline_mode<synchronous>, transform_indices = @transform_10, window_bounds = array<i64: 16, 32>}, {pipeline_mode = #tpu.pipeline_mode<synchronous>, transform_indices = @transform_11, window_bounds = array<i64: 1, 32>}, {pipeline_mode = #tpu.pipeline_mode<synchronous>, transform_indices = @transform_12, window_bounds = array<i64: 1, 32>}, {transform_indices = @transform_13, window_bounds = array<i64: 1, 64, 32>}]} {
    %cst = arith.constant 0.000000e+00 : bf16
    %0 = vector.broadcast %cst : bf16 to vector<16x16xbf16>
    %c0 = arith.constant 0 : index
    %c0_0 = arith.constant 0 : index
    %1 = vector.load %arg15[%c0, %c0_0] : memref<288x16xbf16, #tpu.memory_space<vmem>>, vector<16x16xbf16>
    tpu.vector_store %arg15[%c0, %c0_0], %0 {strides = array<i32>} : memref<288x16xbf16, #tpu.memory_space<vmem>>, vector<16x16xbf16>,
    %cst_1 = arith.constant 0.000000e+00 : bf16
    %2 = vector.broadcast %cst_1 : bf16 to vector<16x16xbf16>
    %c272 = arith.constant 272 : index
    %c0_2 = arith.constant 0 : index
    %3 = vector.load %arg15[%c272, %c0_2] : memref<288x16xbf16, #tpu.memory_space<vmem>>, vector<16x16xbf16>
    tpu.vector_store %arg15[%c272, %c0_2], %2 {strides = array<i32>} : memref<288x16xbf16, #tpu.memory_space<vmem>>, vector<16x16xbf16>,
    %cst_3 = arith.constant 0.000000e+00 : bf16
    %4 = vector.broadcast %cst_3 : bf16 to vector<8x32xbf16>
    %c0_4 = arith.constant 0 : index
    %c0_5 = arith.constant 0 : index
    %5 = vector.load %arg16[%c0_4, %c0_5] : memref<320x32xbf16, #tpu.memory_space<vmem>>, vector<8x32xbf16>
    tpu.vector_store %arg16[%c0_4, %c0_5], %4 {strides = array<i32>} : memref<320x32xbf16, #tpu.memory_space<vmem>>, vector<8x32xbf16>,
    %cst_6 = arith.constant 0.000000e+00 : bf16
    %6 = vector.broadcast %cst_6 : bf16 to vector<8x32xbf16>
    %c72 = arith.constant 72 : index
    %c0_7 = arith.constant 0 : index
    %7 = vector.load %arg16[%c72, %c0_7] : memref<320x32xbf16, #tpu.memory_space<vmem>>, vector<8x32xbf16>
    tpu.vector_store %arg16[%c72, %c0_7], %6 {strides = array<i32>} : memref<320x32xbf16, #tpu.memory_space<vmem>>, vector<8x32xbf16>,
    %cst_8 = arith.constant 0.000000e+00 : bf16
    %8 = vector.broadcast %cst_8 : bf16 to vector<8x32xbf16>
    %c80 = arith.constant 80 : index
    %c0_9 = arith.constant 0 : index
    %9 = vector.load %arg16[%c80, %c0_9] : memref<320x32xbf16, #tpu.memory_space<vmem>>, vector<8x32xbf16>
    tpu.vector_store %arg16[%c80, %c0_9], %8 {strides = array<i32>} : memref<320x32xbf16, #tpu.memory_space<vmem>>, vector<8x32xbf16>,
    %cst_10 = arith.constant 0.000000e+00 : bf16
    %10 = vector.broadcast %cst_10 : bf16 to vector<8x32xbf16>
    %c152 = arith.constant 152 : index
    %c0_11 = arith.constant 0 : index
    %11 = vector.load %arg16[%c152, %c0_11] : memref<320x32xbf16, #tpu.memory_space<vmem>>, vector<8x32xbf16>
    tpu.vector_store %arg16[%c152, %c0_11], %10 {strides = array<i32>} : memref<320x32xbf16, #tpu.memory_space<vmem>>, vector<8x32xbf16>,
    %cst_12 = arith.constant 0.000000e+00 : bf16
    %12 = vector.broadcast %cst_12 : bf16 to vector<8x32xbf16>
    %c160 = arith.constant 160 : index
    %c0_13 = arith.constant 0 : index
    %13 = vector.load %arg16[%c160, %c0_13] : memref<320x32xbf16, #tpu.memory_space<vmem>>, vector<8x32xbf16>
    tpu.vector_store %arg16[%c160, %c0_13], %12 {strides = array<i32>} : memref<320x32xbf16, #tpu.memory_space<vmem>>, vector<8x32xbf16>,
    %cst_14 = arith.constant 0.000000e+00 : bf16
    %14 = vector.broadcast %cst_14 : bf16 to vector<8x32xbf16>
    %c232 = arith.constant 232 : index
    %c0_15 = arith.constant 0 : index
    %15 = vector.load %arg16[%c232, %c0_15] : memref<320x32xbf16, #tpu.memory_space<vmem>>, vector<8x32xbf16>
    tpu.vector_store %arg16[%c232, %c0_15], %14 {strides = array<i32>} : memref<320x32xbf16, #tpu.memory_space<vmem>>, vector<8x32xbf16>,
    %cst_16 = arith.constant 0.000000e+00 : bf16
    %16 = vector.broadcast %cst_16 : bf16 to vector<8x32xbf16>
    %c240 = arith.constant 240 : index
    %c0_17 = arith.constant 0 : index
    %17 = vector.load %arg16[%c240, %c0_17] : memref<320x32xbf16, #tpu.memory_space<vmem>>, vector<8x32xbf16>
    tpu.vector_store %arg16[%c240, %c0_17], %16 {strides = array<i32>} : memref<320x32xbf16, #tpu.memory_space<vmem>>, vector<8x32xbf16>,
    %cst_18 = arith.constant 0.000000e+00 : bf16
    %18 = vector.broadcast %cst_18 : bf16 to vector<8x32xbf16>
    %c312 = arith.constant 312 : index
    %c0_19 = arith.constant 0 : index
    %19 = vector.load %arg16[%c312, %c0_19] : memref<320x32xbf16, #tpu.memory_space<vmem>>, vector<8x32xbf16>
    tpu.vector_store %arg16[%c312, %c0_19], %18 {strides = array<i32>} : memref<320x32xbf16, #tpu.memory_space<vmem>>, vector<8x32xbf16>,
    %c0_20 = arith.constant 0 : index
    %c0_21 = arith.constant 0 : index
    %c0_22 = arith.constant 0 : index
    %20 = vector.load %arg1[%c0_20, %c0_21, %c0_22] : memref<1x256x16xf32, #tpu.memory_space<vmem>>, vector<1x256x16xf32>
    %21 = vector.shape_cast %20 : vector<1x256x16xf32> to vector<256x16xf32>
    %c0_23 = arith.constant 0 : index
    %c0_24 = arith.constant 0 : index
    %22 = vector.load %arg2[%c0_23, %c0_24] : memref<1x16xf32, #tpu.memory_space<vmem>>, vector<1x16xf32>
    %23 = vector.broadcast %22 : vector<1x16xf32> to vector<256x16xf32>
    %24 = arith.mulf %21, %23 : vector<256x16xf32>
    %c0_25 = arith.constant 0 : index
    %c0_26 = arith.constant 0 : index
    %25 = vector.load %arg3[%c0_25, %c0_26] : memref<1x16xf32, #tpu.memory_space<vmem>>, vector<1x16xf32>
    %26 = vector.broadcast %25 : vector<1x16xf32> to vector<256x16xf32>
    %27 = arith.addf %24, %26 : vector<256x16xf32>
    %28 = arith.truncf %27 : vector<256x16xf32> to vector<256x16xbf16>
    %c16 = arith.constant 16 : index
    %c0_27 = arith.constant 0 : index
    %29 = vector.load %arg15[%c16, %c0_27] : memref<288x16xbf16, #tpu.memory_space<vmem>>, vector<256x16xbf16>
    tpu.vector_store %arg15[%c16, %c0_27], %28 {strides = array<i32>} : memref<288x16xbf16, #tpu.memory_space<vmem>>, vector<256x16xbf16>,
    %30 = tpu.iota {dimensions = array<i32: 0>} : vector<256x1xi32>
    %c16_i32 = arith.constant 16 : i32
    %c0_i32 = arith.constant 0 : i32
    %31 = arith.cmpi eq, %c16_i32, %c0_i32 : i32
    %c1_i32 = arith.constant 1 : i32
    %32 = arith.select %31, %c1_i32, %c16_i32 : i32
    %33 = vector.broadcast %32 : i32 to vector<256x1xi32>
    %34 = arith.remsi %30, %33 : vector<256x1xi32>
    %c0_i32_28 = arith.constant 0 : i32
    %35 = vector.broadcast %c0_i32_28 : i32 to vector<256x1xi32>
    %36 = arith.cmpi ne, %34, %35 : vector<256x1xi32>
    %c0_i32_29 = arith.constant 0 : i32
    %37 = vector.broadcast %c0_i32_29 : i32 to vector<256x1xi32>
    %38 = arith.cmpi slt, %34, %37 : vector<256x1xi32>
    %c0_i32_30 = arith.constant 0 : i32
    %39 = arith.cmpi slt, %32, %c0_i32_30 : i32
    %40 = vector.broadcast %39 : i1 to vector<256x1xi1>
    %41 = vector.broadcast %40 : vector<256x1xi1> to vector<256x1xi1>
    %42 = arith.xori %38, %41 : vector<256x1xi1>
    %43 = arith.andi %42, %36 : vector<256x1xi1>
    %44 = vector.broadcast %32 : i32 to vector<256x1xi32>
    %45 = arith.addi %34, %44 : vector<256x1xi32>
    %46 = arith.select %43, %45, %34 : vector<256x1xi1>, vector<256x1xi32>
    %c0_31 = arith.constant 0 : index
    %c0_32 = arith.constant 0 : index
    %47 = vector.load %arg15[%c0_31, %c0_32] : memref<288x16xbf16, #tpu.memory_space<vmem>>, vector<256x16xbf16>
    %48 = arith.extf %47 : vector<256x16xbf16> to vector<256x16xf32>
    %c0_i32_33 = arith.constant 0 : i32
    %49 = vector.broadcast %c0_i32_33 : i32 to vector<256x1xi32>
    %50 = arith.cmpi ne, %46, %49 : vector<256x1xi32>
    %c1_i32_34 = arith.constant 1 : i32
    %51 = tpu.dynamic_rotate %48 by %c1_i32_34 dim 0 : vector<256x16xf32>, i32 -> vector<256x16xf32>
    %cst_35 = arith.constant 0.000000e+00 : f32
    %52 = vector.shape_cast %50 : vector<256x1xi1> to vector<256x1xi1>
    %53 = vector.broadcast %52 : vector<256x1xi1> to vector<256x16xi1>
    %54 = vector.broadcast %cst_35 : f32 to vector<256x16xf32>
    %55 = arith.select %53, %51, %54 : vector<256x16xi1>, vector<256x16xf32>
    %c0_36 = arith.constant 0 : index
    %c0_37 = arith.constant 0 : index
    %56 = vector.load %arg15[%c0_36, %c0_37] : memref<288x16xbf16, #tpu.memory_space<vmem>>, vector<256x16xbf16>
    %57 = arith.extf %56 : vector<256x16xbf16> to vector<256x16xf32>
    %c0_38 = arith.constant 0 : index
    %c0_39 = arith.constant 0 : index
    %58 = vector.load %arg15[%c0_38, %c0_39] : memref<288x16xbf16, #tpu.memory_space<vmem>>, vector<256x16xbf16>
    %59 = arith.extf %58 : vector<256x16xbf16> to vector<256x16xf32>
    %c15_i32 = arith.constant 15 : i32
    %60 = vector.broadcast %c15_i32 : i32 to vector<256x1xi32>
    %61 = arith.cmpi ne, %46, %60 : vector<256x1xi32>
    %c255_i32 = arith.constant 255 : i32
    %62 = tpu.dynamic_rotate %59 by %c255_i32 dim 0 : vector<256x16xf32>, i32 -> vector<256x16xf32>
    %cst_40 = arith.constant 0.000000e+00 : f32
    %63 = vector.shape_cast %61 : vector<256x1xi1> to vector<256x1xi1>
    %64 = vector.broadcast %63 : vector<256x1xi1> to vector<256x16xi1>
    %65 = vector.broadcast %cst_40 : f32 to vector<256x16xf32>
    %66 = arith.select %64, %62, %65 : vector<256x16xi1>, vector<256x16xf32>
    %c16_41 = arith.constant 16 : index
    %c0_42 = arith.constant 0 : index
    %67 = vector.load %arg15[%c16_41, %c0_42] : memref<288x16xbf16, #tpu.memory_space<vmem>>, vector<256x16xbf16>
    %68 = arith.extf %67 : vector<256x16xbf16> to vector<256x16xf32>
    %c0_i32_43 = arith.constant 0 : i32
    %69 = vector.broadcast %c0_i32_43 : i32 to vector<256x1xi32>
    %70 = arith.cmpi ne, %46, %69 : vector<256x1xi32>
    %c1_i32_44 = arith.constant 1 : i32
    %71 = tpu.dynamic_rotate %68 by %c1_i32_44 dim 0 : vector<256x16xf32>, i32 -> vector<256x16xf32>
    %cst_45 = arith.constant 0.000000e+00 : f32
    %72 = vector.shape_cast %70 : vector<256x1xi1> to vector<256x1xi1>
    %73 = vector.broadcast %72 : vector<256x1xi1> to vector<256x16xi1>
    %74 = vector.broadcast %cst_45 : f32 to vector<256x16xf32>
    %75 = arith.select %73, %71, %74 : vector<256x16xi1>, vector<256x16xf32>
    %c16_46 = arith.constant 16 : index
    %c0_47 = arith.constant 0 : index
    %76 = vector.load %arg15[%c16_46, %c0_47] : memref<288x16xbf16, #tpu.memory_space<vmem>>, vector<256x16xbf16>
    %77 = arith.extf %76 : vector<256x16xbf16> to vector<256x16xf32>
    %c16_48 = arith.constant 16 : index
    %c0_49 = arith.constant 0 : index
    %78 = vector.load %arg15[%c16_48, %c0_49] : memref<288x16xbf16, #tpu.memory_space<vmem>>, vector<256x16xbf16>
    %79 = arith.extf %78 : vector<256x16xbf16> to vector<256x16xf32>
    %c15_i32_50 = arith.constant 15 : i32
    %80 = vector.broadcast %c15_i32_50 : i32 to vector<256x1xi32>
    %81 = arith.cmpi ne, %46, %80 : vector<256x1xi32>
    %c255_i32_51 = arith.constant 255 : i32
    %82 = tpu.dynamic_rotate %79 by %c255_i32_51 dim 0 : vector<256x16xf32>, i32 -> vector<256x16xf32>
    %cst_52 = arith.constant 0.000000e+00 : f32
    %83 = vector.shape_cast %81 : vector<256x1xi1> to vector<256x1xi1>
    %84 = vector.broadcast %83 : vector<256x1xi1> to vector<256x16xi1>
    %85 = vector.broadcast %cst_52 : f32 to vector<256x16xf32>
    %86 = arith.select %84, %82, %85 : vector<256x16xi1>, vector<256x16xf32>
    %c32 = arith.constant 32 : index
    %c0_53 = arith.constant 0 : index
    %87 = vector.load %arg15[%c32, %c0_53] : memref<288x16xbf16, #tpu.memory_space<vmem>>, vector<256x16xbf16>
    %88 = arith.extf %87 : vector<256x16xbf16> to vector<256x16xf32>
    %c0_i32_54 = arith.constant 0 : i32
    %89 = vector.broadcast %c0_i32_54 : i32 to vector<256x1xi32>
    %90 = arith.cmpi ne, %46, %89 : vector<256x1xi32>
    %c1_i32_55 = arith.constant 1 : i32
    %91 = tpu.dynamic_rotate %88 by %c1_i32_55 dim 0 : vector<256x16xf32>, i32 -> vector<256x16xf32>
    %cst_56 = arith.constant 0.000000e+00 : f32
    %92 = vector.shape_cast %90 : vector<256x1xi1> to vector<256x1xi1>
    %93 = vector.broadcast %92 : vector<256x1xi1> to vector<256x16xi1>
    %94 = vector.broadcast %cst_56 : f32 to vector<256x16xf32>
    %95 = arith.select %93, %91, %94 : vector<256x16xi1>, vector<256x16xf32>
    %c32_57 = arith.constant 32 : index
    %c0_58 = arith.constant 0 : index
    %96 = vector.load %arg15[%c32_57, %c0_58] : memref<288x16xbf16, #tpu.memory_space<vmem>>, vector<256x16xbf16>
    %97 = arith.extf %96 : vector<256x16xbf16> to vector<256x16xf32>
    %98 = tpu.concatenate %55, %57, %66, %75, %77, %86, %95, %97 in 1 : vector<256x16xf32>, vector<256x16xf32>, vector<256x16xf32>, vector<256x16xf32>, vector<256x16xf32>, vector<256x16xf32>, vector<256x16xf32>, vector<256x16xf32> -> vector<256x128xf32>
    %99 = arith.truncf %98 : vector<256x128xf32> to vector<256x128xbf16>
    %c0_59 = arith.constant 0 : index
    %c0_60 = arith.constant 0 : index
    %100 = vector.load %arg4[%c0_59, %c0_60] : memref<256x32xbf16, #tpu.memory_space<vmem>>, vector<128x32xbf16>
    %cst_61 = arith.constant dense<0.000000e+00> : vector<256x32xf32>
    %101 = tpu.matmul %99, %100, %cst_61 {dimension_numbers = #tpu.dot_dimension_numbers<[1], [0], [0], [1], [0, 0, 1, 1], [], []>} : vector<256x128xbf16>, vector<128x32xbf16>, vector<256x32xf32> -> vector<256x32xf32>
    %c32_62 = arith.constant 32 : index
    %c0_63 = arith.constant 0 : index
    %102 = vector.load %arg15[%c32_62, %c0_63] : memref<288x16xbf16, #tpu.memory_space<vmem>>, vector<256x16xbf16>
    %103 = arith.extf %102 : vector<256x16xbf16> to vector<256x16xf32>
    %c15_i32_64 = arith.constant 15 : i32
    %104 = vector.broadcast %c15_i32_64 : i32 to vector<256x1xi32>
    %105 = arith.cmpi ne, %46, %104 : vector<256x1xi32>
    %c255_i32_65 = arith.constant 255 : i32
    %106 = tpu.dynamic_rotate %103 by %c255_i32_65 dim 0 : vector<256x16xf32>, i32 -> vector<256x16xf32>
    %cst_66 = arith.constant 0.000000e+00 : f32
    %107 = vector.shape_cast %105 : vector<256x1xi1> to vector<256x1xi1>
    %108 = vector.broadcast %107 : vector<256x1xi1> to vector<256x16xi1>
    %109 = vector.broadcast %cst_66 : f32 to vector<256x16xf32>
    %110 = arith.select %108, %106, %109 : vector<256x16xi1>, vector<256x16xf32>
    %cst_67 = arith.constant 0.000000e+00 : f32
    %111 = vector.broadcast %cst_67 : f32 to vector<256x112xf32>
    %112 = tpu.concatenate %110, %111 in 1 : vector<256x16xf32>, vector<256x112xf32> -> vector<256x128xf32>
    %113 = arith.truncf %112 : vector<256x128xf32> to vector<256x128xbf16>
    %c128 = arith.constant 128 : index
    %c0_68 = arith.constant 0 : index
    %114 = vector.load %arg4[%c128, %c0_68] : memref<256x32xbf16, #tpu.memory_space<vmem>>, vector<128x32xbf16>
    %cst_69 = arith.constant dense<0.000000e+00> : vector<256x32xf32>
    %115 = tpu.matmul %113, %114, %cst_69 {dimension_numbers = #tpu.dot_dimension_numbers<[1], [0], [0], [1], [0, 0, 1, 1], [], []>} : vector<256x128xbf16>, vector<128x32xbf16>, vector<256x32xf32> -> vector<256x32xf32>
    %116 = arith.addf %101, %115 : vector<256x32xf32>
    %cst_70 = arith.constant 0.000000e+00 : f32
    %117 = vector.broadcast %cst_70 : f32 to vector<256x32xf32>
    %118 = arith.cmpf ogt, %116, %117 : vector<256x32xf32>
    %c0_71 = arith.constant 0 : index
    %c0_72 = arith.constant 0 : index
    %119 = vector.load %arg5[%c0_71, %c0_72] : memref<1x32xf32, #tpu.memory_space<vmem>>, vector<1x32xf32>
    %120 = vector.broadcast %119 : vector<1x32xf32> to vector<256x32xf32>
    %121 = arith.mulf %116, %120 : vector<256x32xf32>
    %122 = arith.select %118, %116, %121 : vector<256x32xi1>, vector<256x32xf32>
    %c0_73 = arith.constant 0 : index
    %c0_74 = arith.constant 0 : index
    %123 = vector.load %arg17[%c0_73, %c0_74] : memref<256x32xf32, #tpu.memory_space<vmem>>, vector<256x32xf32>
    tpu.vector_store %arg17[%c0_73, %c0_74], %122 {strides = array<i32>} : memref<256x32xf32, #tpu.memory_space<vmem>>, vector<256x32xf32>,
    %c0_75 = arith.constant 0 : index
    %c0_76 = arith.constant 0 : index
    %124 = tpu.strided_load %arg17[%c0_75, %c0_76] {strides = array<i32: 2, 1>} : memref<256x32xf32, #tpu.memory_space<vmem>>, vector<8x32xf32>
    %125 = arith.truncf %124 : vector<8x32xf32> to vector<8x32xbf16>
    %c8 = arith.constant 8 : index
    %c0_77 = arith.constant 0 : index
    %126 = vector.load %arg16[%c8, %c0_77] : memref<320x32xbf16, #tpu.memory_space<vmem>>, vector<8x32xbf16>
    tpu.vector_store %arg16[%c8, %c0_77], %125 {strides = array<i32>} : memref<320x32xbf16, #tpu.memory_space<vmem>>, vector<8x32xbf16>,
    %c32_78 = arith.constant 32 : index
    %c0_79 = arith.constant 0 : index
    %127 = tpu.strided_load %arg17[%c32_78, %c0_79] {strides = array<i32: 2, 1>} : memref<256x32xf32, #tpu.memory_space<vmem>>, vector<8x32xf32>
    %128 = arith.truncf %127 : vector<8x32xf32> to vector<8x32xbf16>
    %c16_80 = arith.constant 16 : index
    %c0_81 = arith.constant 0 : index
    %129 = vector.load %arg16[%c16_80, %c0_81] : memref<320x32xbf16, #tpu.memory_space<vmem>>, vector<8x32xbf16>
    tpu.vector_store %arg16[%c16_80, %c0_81], %128 {strides = array<i32>} : memref<320x32xbf16, #tpu.memory_space<vmem>>, vector<8x32xbf16>,
    %c64 = arith.constant 64 : index
    %c0_82 = arith.constant 0 : index
    %130 = tpu.strided_load %arg17[%c64, %c0_82] {strides = array<i32: 2, 1>} : memref<256x32xf32, #tpu.memory_space<vmem>>, vector<8x32xf32>
    %131 = arith.truncf %130 : vector<8x32xf32> to vector<8x32xbf16>
    %c24 = arith.constant 24 : index
    %c0_83 = arith.constant 0 : index
    %132 = vector.load %arg16[%c24, %c0_83] : memref<320x32xbf16, #tpu.memory_space<vmem>>, vector<8x32xbf16>
    tpu.vector_store %arg16[%c24, %c0_83], %131 {strides = array<i32>} : memref<320x32xbf16, #tpu.memory_space<vmem>>, vector<8x32xbf16>,
    %c96 = arith.constant 96 : index
    %c0_84 = arith.constant 0 : index
    %133 = tpu.strided_load %arg17[%c96, %c0_84] {strides = array<i32: 2, 1>} : memref<256x32xf32, #tpu.memory_space<vmem>>, vector<8x32xf32>
    %134 = arith.truncf %133 : vector<8x32xf32> to vector<8x32xbf16>
    %c32_85 = arith.constant 32 : index
    %c0_86 = arith.constant 0 : index
    %135 = vector.load %arg16[%c32_85, %c0_86] : memref<320x32xbf16, #tpu.memory_space<vmem>>, vector<8x32xbf16>
    tpu.vector_store %arg16[%c32_85, %c0_86], %134 {strides = array<i32>} : memref<320x32xbf16, #tpu.memory_space<vmem>>, vector<8x32xbf16>,
    %c128_87 = arith.constant 128 : index
    %c0_88 = arith.constant 0 : index
    %136 = tpu.strided_load %arg17[%c128_87, %c0_88] {strides = array<i32: 2, 1>} : memref<256x32xf32, #tpu.memory_space<vmem>>, vector<8x32xf32>
    %137 = arith.truncf %136 : vector<8x32xf32> to vector<8x32xbf16>
    %c40 = arith.constant 40 : index
    %c0_89 = arith.constant 0 : index
    %138 = vector.load %arg16[%c40, %c0_89] : memref<320x32xbf16, #tpu.memory_space<vmem>>, vector<8x32xbf16>
    tpu.vector_store %arg16[%c40, %c0_89], %137 {strides = array<i32>} : memref<320x32xbf16, #tpu.memory_space<vmem>>, vector<8x32xbf16>,
    %c160_90 = arith.constant 160 : index
    %c0_91 = arith.constant 0 : index
    %139 = tpu.strided_load %arg17[%c160_90, %c0_91] {strides = array<i32: 2, 1>} : memref<256x32xf32, #tpu.memory_space<vmem>>, vector<8x32xf32>
    %140 = arith.truncf %139 : vector<8x32xf32> to vector<8x32xbf16>
    %c48 = arith.constant 48 : index
    %c0_92 = arith.constant 0 : index
    %141 = vector.load %arg16[%c48, %c0_92] : memref<320x32xbf16, #tpu.memory_space<vmem>>, vector<8x32xbf16>
    tpu.vector_store %arg16[%c48, %c0_92], %140 {strides = array<i32>} : memref<320x32xbf16, #tpu.memory_space<vmem>>, vector<8x32xbf16>,
    %c192 = arith.constant 192 : index
    %c0_93 = arith.constant 0 : index
    %142 = tpu.strided_load %arg17[%c192, %c0_93] {strides = array<i32: 2, 1>} : memref<256x32xf32, #tpu.memory_space<vmem>>, vector<8x32xf32>
    %143 = arith.truncf %142 : vector<8x32xf32> to vector<8x32xbf16>
    %c56 = arith.constant 56 : index
    %c0_94 = arith.constant 0 : index
    %144 = vector.load %arg16[%c56, %c0_94] : memref<320x32xbf16, #tpu.memory_space<vmem>>, vector<8x32xbf16>
    tpu.vector_store %arg16[%c56, %c0_94], %143 {strides = array<i32>} : memref<320x32xbf16, #tpu.memory_space<vmem>>, vector<8x32xbf16>,
    %c224 = arith.constant 224 : index
    %c0_95 = arith.constant 0 : index
    %145 = tpu.strided_load %arg17[%c224, %c0_95] {strides = array<i32: 2, 1>} : memref<256x32xf32, #tpu.memory_space<vmem>>, vector<8x32xf32>
    %146 = arith.truncf %145 : vector<8x32xf32> to vector<8x32xbf16>
    %c64_96 = arith.constant 64 : index
    %c0_97 = arith.constant 0 : index
    %147 = vector.load %arg16[%c64_96, %c0_97] : memref<320x32xbf16, #tpu.memory_space<vmem>>, vector<8x32xbf16>
    tpu.vector_store %arg16[%c64_96, %c0_97], %146 {strides = array<i32>} : memref<320x32xbf16, #tpu.memory_space<vmem>>, vector<8x32xbf16>,
    %c1 = arith.constant 1 : index
    %c0_98 = arith.constant 0 : index
    %148 = tpu.strided_load %arg17[%c1, %c0_98] {strides = array<i32: 2, 1>} : memref<256x32xf32, #tpu.memory_space<vmem>>, vector<8x32xf32>
    %149 = arith.truncf %148 : vector<8x32xf32> to vector<8x32xbf16>
    %c88 = arith.constant 88 : index
    %c0_99 = arith.constant 0 : index
    %150 = vector.load %arg16[%c88, %c0_99] : memref<320x32xbf16, #tpu.memory_space<vmem>>, vector<8x32xbf16>
    tpu.vector_store %arg16[%c88, %c0_99], %149 {strides = array<i32>} : memref<320x32xbf16, #tpu.memory_space<vmem>>, vector<8x32xbf16>,
    %c33 = arith.constant 33 : index
    %c0_100 = arith.constant 0 : index
    %151 = tpu.strided_load %arg17[%c33, %c0_100] {strides = array<i32: 2, 1>} : memref<256x32xf32, #tpu.memory_space<vmem>>, vector<8x32xf32>
    %152 = arith.truncf %151 : vector<8x32xf32> to vector<8x32xbf16>
    %c96_101 = arith.constant 96 : index
    %c0_102 = arith.constant 0 : index
    %153 = vector.load %arg16[%c96_101, %c0_102] : memref<320x32xbf16, #tpu.memory_space<vmem>>, vector<8x32xbf16>
    tpu.vector_store %arg16[%c96_101, %c0_102], %152 {strides = array<i32>} : memref<320x32xbf16, #tpu.memory_space<vmem>>, vector<8x32xbf16>,
    %c65 = arith.constant 65 : index
    %c0_103 = arith.constant 0 : index
    %154 = tpu.strided_load %arg17[%c65, %c0_103] {strides = array<i32: 2, 1>} : memref<256x32xf32, #tpu.memory_space<vmem>>, vector<8x32xf32>
    %155 = arith.truncf %154 : vector<8x32xf32> to vector<8x32xbf16>
    %c104 = arith.constant 104 : index
    %c0_104 = arith.constant 0 : index
    %156 = vector.load %arg16[%c104, %c0_104] : memref<320x32xbf16, #tpu.memory_space<vmem>>, vector<8x32xbf16>
    tpu.vector_store %arg16[%c104, %c0_104], %155 {strides = array<i32>} : memref<320x32xbf16, #tpu.memory_space<vmem>>, vector<8x32xbf16>,
    %c97 = arith.constant 97 : index
    %c0_105 = arith.constant 0 : index
    %157 = tpu.strided_load %arg17[%c97, %c0_105] {strides = array<i32: 2, 1>} : memref<256x32xf32, #tpu.memory_space<vmem>>, vector<8x32xf32>
    %158 = arith.truncf %157 : vector<8x32xf32> to vector<8x32xbf16>
    %c112 = arith.constant 112 : index
    %c0_106 = arith.constant 0 : index
    %159 = vector.load %arg16[%c112, %c0_106] : memref<320x32xbf16, #tpu.memory_space<vmem>>, vector<8x32xbf16>
    tpu.vector_store %arg16[%c112, %c0_106], %158 {strides = array<i32>} : memref<320x32xbf16, #tpu.memory_space<vmem>>, vector<8x32xbf16>,
    %c129 = arith.constant 129 : index
    %c0_107 = arith.constant 0 : index
    %160 = tpu.strided_load %arg17[%c129, %c0_107] {strides = array<i32: 2, 1>} : memref<256x32xf32, #tpu.memory_space<vmem>>, vector<8x32xf32>
    %161 = arith.truncf %160 : vector<8x32xf32> to vector<8x32xbf16>
    %c120 = arith.constant 120 : index
    %c0_108 = arith.constant 0 : index
    %162 = vector.load %arg16[%c120, %c0_108] : memref<320x32xbf16, #tpu.memory_space<vmem>>, vector<8x32xbf16>
    tpu.vector_store %arg16[%c120, %c0_108], %161 {strides = array<i32>} : memref<320x32xbf16, #tpu.memory_space<vmem>>, vector<8x32xbf16>,
    %c161 = arith.constant 161 : index
    %c0_109 = arith.constant 0 : index
    %163 = tpu.strided_load %arg17[%c161, %c0_109] {strides = array<i32: 2, 1>} : memref<256x32xf32, #tpu.memory_space<vmem>>, vector<8x32xf32>
    %164 = arith.truncf %163 : vector<8x32xf32> to vector<8x32xbf16>
    %c128_110 = arith.constant 128 : index
    %c0_111 = arith.constant 0 : index
    %165 = vector.load %arg16[%c128_110, %c0_111] : memref<320x32xbf16, #tpu.memory_space<vmem>>, vector<8x32xbf16>
    tpu.vector_store %arg16[%c128_110, %c0_111], %164 {strides = array<i32>} : memref<320x32xbf16, #tpu.memory_space<vmem>>, vector<8x32xbf16>,
    %c193 = arith.constant 193 : index
    %c0_112 = arith.constant 0 : index
    %166 = tpu.strided_load %arg17[%c193, %c0_112] {strides = array<i32: 2, 1>} : memref<256x32xf32, #tpu.memory_space<vmem>>, vector<8x32xf32>
    %167 = arith.truncf %166 : vector<8x32xf32> to vector<8x32xbf16>
    %c136 = arith.constant 136 : index
    %c0_113 = arith.constant 0 : index
    %168 = vector.load %arg16[%c136, %c0_113] : memref<320x32xbf16, #tpu.memory_space<vmem>>, vector<8x32xbf16>
    tpu.vector_store %arg16[%c136, %c0_113], %167 {strides = array<i32>} : memref<320x32xbf16, #tpu.memory_space<vmem>>, vector<8x32xbf16>,
    %c225 = arith.constant 225 : index
    %c0_114 = arith.constant 0 : index
    %169 = tpu.strided_load %arg17[%c225, %c0_114] {strides = array<i32: 2, 1>} : memref<256x32xf32, #tpu.memory_space<vmem>>, vector<8x32xf32>
    %170 = arith.truncf %169 : vector<8x32xf32> to vector<8x32xbf16>
    %c144 = arith.constant 144 : index
    %c0_115 = arith.constant 0 : index
    %171 = vector.load %arg16[%c144, %c0_115] : memref<320x32xbf16, #tpu.memory_space<vmem>>, vector<8x32xbf16>
    tpu.vector_store %arg16[%c144, %c0_115], %170 {strides = array<i32>} : memref<320x32xbf16, #tpu.memory_space<vmem>>, vector<8x32xbf16>,
    %c16_116 = arith.constant 16 : index
    %c0_117 = arith.constant 0 : index
    %172 = tpu.strided_load %arg17[%c16_116, %c0_117] {strides = array<i32: 2, 1>} : memref<256x32xf32, #tpu.memory_space<vmem>>, vector<8x32xf32>
    %173 = arith.truncf %172 : vector<8x32xf32> to vector<8x32xbf16>
    %c168 = arith.constant 168 : index
    %c0_118 = arith.constant 0 : index
    %174 = vector.load %arg16[%c168, %c0_118] : memref<320x32xbf16, #tpu.memory_space<vmem>>, vector<8x32xbf16>
    tpu.vector_store %arg16[%c168, %c0_118], %173 {strides = array<i32>} : memref<320x32xbf16, #tpu.memory_space<vmem>>, vector<8x32xbf16>,
    %c48_119 = arith.constant 48 : index
    %c0_120 = arith.constant 0 : index
    %175 = tpu.strided_load %arg17[%c48_119, %c0_120] {strides = array<i32: 2, 1>} : memref<256x32xf32, #tpu.memory_space<vmem>>, vector<8x32xf32>
    %176 = arith.truncf %175 : vector<8x32xf32> to vector<8x32xbf16>
    %c176 = arith.constant 176 : index
    %c0_121 = arith.constant 0 : index
    %177 = vector.load %arg16[%c176, %c0_121] : memref<320x32xbf16, #tpu.memory_space<vmem>>, vector<8x32xbf16>
    tpu.vector_store %arg16[%c176, %c0_121], %176 {strides = array<i32>} : memref<320x32xbf16, #tpu.memory_space<vmem>>, vector<8x32xbf16>,
    %c80_122 = arith.constant 80 : index
    %c0_123 = arith.constant 0 : index
    %178 = tpu.strided_load %arg17[%c80_122, %c0_123] {strides = array<i32: 2, 1>} : memref<256x32xf32, #tpu.memory_space<vmem>>, vector<8x32xf32>
    %179 = arith.truncf %178 : vector<8x32xf32> to vector<8x32xbf16>
    %c184 = arith.constant 184 : index
    %c0_124 = arith.constant 0 : index
    %180 = vector.load %arg16[%c184, %c0_124] : memref<320x32xbf16, #tpu.memory_space<vmem>>, vector<8x32xbf16>
    tpu.vector_store %arg16[%c184, %c0_124], %179 {strides = array<i32>} : memref<320x32xbf16, #tpu.memory_space<vmem>>, vector<8x32xbf16>,
    %c112_125 = arith.constant 112 : index
    %c0_126 = arith.constant 0 : index
    %181 = tpu.strided_load %arg17[%c112_125, %c0_126] {strides = array<i32: 2, 1>} : memref<256x32xf32, #tpu.memory_space<vmem>>, vector<8x32xf32>
    %182 = arith.truncf %181 : vector<8x32xf32> to vector<8x32xbf16>
    %c192_127 = arith.constant 192 : index
    %c0_128 = arith.constant 0 : index
    %183 = vector.load %arg16[%c192_127, %c0_128] : memref<320x32xbf16, #tpu.memory_space<vmem>>, vector<8x32xbf16>
    tpu.vector_store %arg16[%c192_127, %c0_128], %182 {strides = array<i32>} : memref<320x32xbf16, #tpu.memory_space<vmem>>, vector<8x32xbf16>,
    %c144_129 = arith.constant 144 : index
    %c0_130 = arith.constant 0 : index
    %184 = tpu.strided_load %arg17[%c144_129, %c0_130] {strides = array<i32: 2, 1>} : memref<256x32xf32, #tpu.memory_space<vmem>>, vector<8x32xf32>
    %185 = arith.truncf %184 : vector<8x32xf32> to vector<8x32xbf16>
    %c200 = arith.constant 200 : index
    %c0_131 = arith.constant 0 : index
    %186 = vector.load %arg16[%c200, %c0_131] : memref<320x32xbf16, #tpu.memory_space<vmem>>, vector<8x32xbf16>
    tpu.vector_store %arg16[%c200, %c0_131], %185 {strides = array<i32>} : memref<320x32xbf16, #tpu.memory_space<vmem>>, vector<8x32xbf16>,
    %c176_132 = arith.constant 176 : index
    %c0_133 = arith.constant 0 : index
    %187 = tpu.strided_load %arg17[%c176_132, %c0_133] {strides = array<i32: 2, 1>} : memref<256x32xf32, #tpu.memory_space<vmem>>, vector<8x32xf32>
    %188 = arith.truncf %187 : vector<8x32xf32> to vector<8x32xbf16>
    %c208 = arith.constant 208 : index
    %c0_134 = arith.constant 0 : index
    %189 = vector.load %arg16[%c208, %c0_134] : memref<320x32xbf16, #tpu.memory_space<vmem>>, vector<8x32xbf16>
    tpu.vector_store %arg16[%c208, %c0_134], %188 {strides = array<i32>} : memref<320x32xbf16, #tpu.memory_space<vmem>>, vector<8x32xbf16>,
    %c208_135 = arith.constant 208 : index
    %c0_136 = arith.constant 0 : index
    %190 = tpu.strided_load %arg17[%c208_135, %c0_136] {strides = array<i32: 2, 1>} : memref<256x32xf32, #tpu.memory_space<vmem>>, vector<8x32xf32>
    %191 = arith.truncf %190 : vector<8x32xf32> to vector<8x32xbf16>
    %c216 = arith.constant 216 : index
    %c0_137 = arith.constant 0 : index
    %192 = vector.load %arg16[%c216, %c0_137] : memref<320x32xbf16, #tpu.memory_space<vmem>>, vector<8x32xbf16>
    tpu.vector_store %arg16[%c216, %c0_137], %191 {strides = array<i32>} : memref<320x32xbf16, #tpu.memory_space<vmem>>, vector<8x32xbf16>,
    %c240_138 = arith.constant 240 : index
    %c0_139 = arith.constant 0 : index
    %193 = tpu.strided_load %arg17[%c240_138, %c0_139] {strides = array<i32: 2, 1>} : memref<256x32xf32, #tpu.memory_space<vmem>>, vector<8x32xf32>
    %194 = arith.truncf %193 : vector<8x32xf32> to vector<8x32xbf16>
    %c224_140 = arith.constant 224 : index
    %c0_141 = arith.constant 0 : index
    %195 = vector.load %arg16[%c224_140, %c0_141] : memref<320x32xbf16, #tpu.memory_space<vmem>>, vector<8x32xbf16>
    tpu.vector_store %arg16[%c224_140, %c0_141], %194 {strides = array<i32>} : memref<320x32xbf16, #tpu.memory_space<vmem>>, vector<8x32xbf16>,
    %c17 = arith.constant 17 : index
    %c0_142 = arith.constant 0 : index
    %196 = tpu.strided_load %arg17[%c17, %c0_142] {strides = array<i32: 2, 1>} : memref<256x32xf32, #tpu.memory_space<vmem>>, vector<8x32xf32>
    %197 = arith.truncf %196 : vector<8x32xf32> to vector<8x32xbf16>
    %c248 = arith.constant 248 : index
    %c0_143 = arith.constant 0 : index
    %198 = vector.load %arg16[%c248, %c0_143] : memref<320x32xbf16, #tpu.memory_space<vmem>>, vector<8x32xbf16>
    tpu.vector_store %arg16[%c248, %c0_143], %197 {strides = array<i32>} : memref<320x32xbf16, #tpu.memory_space<vmem>>, vector<8x32xbf16>,
    %c49 = arith.constant 49 : index
    %c0_144 = arith.constant 0 : index
    %199 = tpu.strided_load %arg17[%c49, %c0_144] {strides = array<i32: 2, 1>} : memref<256x32xf32, #tpu.memory_space<vmem>>, vector<8x32xf32>
    %200 = arith.truncf %199 : vector<8x32xf32> to vector<8x32xbf16>
    %c256 = arith.constant 256 : index
    %c0_145 = arith.constant 0 : index
    %201 = vector.load %arg16[%c256, %c0_145] : memref<320x32xbf16, #tpu.memory_space<vmem>>, vector<8x32xbf16>
    tpu.vector_store %arg16[%c256, %c0_145], %200 {strides = array<i32>} : memref<320x32xbf16, #tpu.memory_space<vmem>>, vector<8x32xbf16>,
    %c81 = arith.constant 81 : index
    %c0_146 = arith.constant 0 : index
    %202 = tpu.strided_load %arg17[%c81, %c0_146] {strides = array<i32: 2, 1>} : memref<256x32xf32, #tpu.memory_space<vmem>>, vector<8x32xf32>
    %203 = arith.truncf %202 : vector<8x32xf32> to vector<8x32xbf16>
    %c264 = arith.constant 264 : index
    %c0_147 = arith.constant 0 : index
    %204 = vector.load %arg16[%c264, %c0_147] : memref<320x32xbf16, #tpu.memory_space<vmem>>, vector<8x32xbf16>
    tpu.vector_store %arg16[%c264, %c0_147], %203 {strides = array<i32>} : memref<320x32xbf16, #tpu.memory_space<vmem>>, vector<8x32xbf16>,
    %c113 = arith.constant 113 : index
    %c0_148 = arith.constant 0 : index
    %205 = tpu.strided_load %arg17[%c113, %c0_148] {strides = array<i32: 2, 1>} : memref<256x32xf32, #tpu.memory_space<vmem>>, vector<8x32xf32>
    %206 = arith.truncf %205 : vector<8x32xf32> to vector<8x32xbf16>
    %c272_149 = arith.constant 272 : index
    %c0_150 = arith.constant 0 : index
    %207 = vector.load %arg16[%c272_149, %c0_150] : memref<320x32xbf16, #tpu.memory_space<vmem>>, vector<8x32xbf16>
    tpu.vector_store %arg16[%c272_149, %c0_150], %206 {strides = array<i32>} : memref<320x32xbf16, #tpu.memory_space<vmem>>, vector<8x32xbf16>,
    %c145 = arith.constant 145 : index
    %c0_151 = arith.constant 0 : index
    %208 = tpu.strided_load %arg17[%c145, %c0_151] {strides = array<i32: 2, 1>} : memref<256x32xf32, #tpu.memory_space<vmem>>, vector<8x32xf32>
    %209 = arith.truncf %208 : vector<8x32xf32> to vector<8x32xbf16>
    %c280 = arith.constant 280 : index
    %c0_152 = arith.constant 0 : index
    %210 = vector.load %arg16[%c280, %c0_152] : memref<320x32xbf16, #tpu.memory_space<vmem>>, vector<8x32xbf16>
    tpu.vector_store %arg16[%c280, %c0_152], %209 {strides = array<i32>} : memref<320x32xbf16, #tpu.memory_space<vmem>>, vector<8x32xbf16>,
    %c177 = arith.constant 177 : index
    %c0_153 = arith.constant 0 : index
    %211 = tpu.strided_load %arg17[%c177, %c0_153] {strides = array<i32: 2, 1>} : memref<256x32xf32, #tpu.memory_space<vmem>>, vector<8x32xf32>
    %212 = arith.truncf %211 : vector<8x32xf32> to vector<8x32xbf16>
    %c288 = arith.constant 288 : index
    %c0_154 = arith.constant 0 : index
    %213 = vector.load %arg16[%c288, %c0_154] : memref<320x32xbf16, #tpu.memory_space<vmem>>, vector<8x32xbf16>
    tpu.vector_store %arg16[%c288, %c0_154], %212 {strides = array<i32>} : memref<320x32xbf16, #tpu.memory_space<vmem>>, vector<8x32xbf16>,
    %c209 = arith.constant 209 : index
    %c0_155 = arith.constant 0 : index
    %214 = tpu.strided_load %arg17[%c209, %c0_155] {strides = array<i32: 2, 1>} : memref<256x32xf32, #tpu.memory_space<vmem>>, vector<8x32xf32>
    %215 = arith.truncf %214 : vector<8x32xf32> to vector<8x32xbf16>
    %c296 = arith.constant 296 : index
    %c0_156 = arith.constant 0 : index
    %216 = vector.load %arg16[%c296, %c0_156] : memref<320x32xbf16, #tpu.memory_space<vmem>>, vector<8x32xbf16>
    tpu.vector_store %arg16[%c296, %c0_156], %215 {strides = array<i32>} : memref<320x32xbf16, #tpu.memory_space<vmem>>, vector<8x32xbf16>,
    %c241 = arith.constant 241 : index
    %c0_157 = arith.constant 0 : index
    %217 = tpu.strided_load %arg17[%c241, %c0_157] {strides = array<i32: 2, 1>} : memref<256x32xf32, #tpu.memory_space<vmem>>, vector<8x32xf32>
    %218 = arith.truncf %217 : vector<8x32xf32> to vector<8x32xbf16>
    %c304 = arith.constant 304 : index
    %c0_158 = arith.constant 0 : index
    %219 = vector.load %arg16[%c304, %c0_158] : memref<320x32xbf16, #tpu.memory_space<vmem>>, vector<8x32xbf16>
    tpu.vector_store %arg16[%c304, %c0_158], %218 {strides = array<i32>} : memref<320x32xbf16, #tpu.memory_space<vmem>>, vector<8x32xbf16>,
    %220 = tpu.iota {dimensions = array<i32: 0>} : vector<64x1xi32>
    %c8_i32 = arith.constant 8 : i32
    %c0_i32_159 = arith.constant 0 : i32
    %221 = arith.cmpi eq, %c8_i32, %c0_i32_159 : i32
    %c1_i32_160 = arith.constant 1 : i32
    %222 = arith.select %221, %c1_i32_160, %c8_i32 : i32
    %223 = vector.broadcast %222 : i32 to vector<64x1xi32>
    %224 = arith.remsi %220, %223 : vector<64x1xi32>
    %c0_i32_161 = arith.constant 0 : i32
    %225 = vector.broadcast %c0_i32_161 : i32 to vector<64x1xi32>
    %226 = arith.cmpi ne, %224, %225 : vector<64x1xi32>
    %c0_i32_162 = arith.constant 0 : i32
    %227 = vector.broadcast %c0_i32_162 : i32 to vector<64x1xi32>
    %228 = arith.cmpi slt, %224, %227 : vector<64x1xi32>
    %c0_i32_163 = arith.constant 0 : i32
    %229 = arith.cmpi slt, %222, %c0_i32_163 : i32
    %230 = vector.broadcast %229 : i1 to vector<64x1xi1>
    %231 = vector.broadcast %230 : vector<64x1xi1> to vector<64x1xi1>
    %232 = arith.xori %228, %231 : vector<64x1xi1>
    %233 = arith.andi %232, %226 : vector<64x1xi1>
    %234 = vector.broadcast %222 : i32 to vector<64x1xi32>
    %235 = arith.addi %224, %234 : vector<64x1xi32>
    %236 = arith.select %233, %235, %224 : vector<64x1xi1>, vector<64x1xi32>
    %c240_164 = arith.constant 240 : index
    %c0_165 = arith.constant 0 : index
    %237 = vector.load %arg16[%c240_164, %c0_165] : memref<320x32xbf16, #tpu.memory_space<vmem>>, vector<64x32xbf16>
    %238 = arith.extf %237 : vector<64x32xbf16> to vector<64x32xf32>
    %c0_i32_166 = arith.constant 0 : i32
    %239 = vector.broadcast %c0_i32_166 : i32 to vector<64x1xi32>
    %240 = arith.cmpi ne, %236, %239 : vector<64x1xi32>
    %c1_i32_167 = arith.constant 1 : i32
    %241 = tpu.dynamic_rotate %238 by %c1_i32_167 dim 0 : vector<64x32xf32>, i32 -> vector<64x32xf32>
    %cst_168 = arith.constant 0.000000e+00 : f32
    %242 = vector.shape_cast %240 : vector<64x1xi1> to vector<64x1xi1>
    %243 = vector.broadcast %242 : vector<64x1xi1> to vector<64x32xi1>
    %244 = vector.broadcast %cst_168 : f32 to vector<64x32xf32>
    %245 = arith.select %243, %241, %244 : vector<64x32xi1>, vector<64x32xf32>
    %c160_169 = arith.constant 160 : index
    %c0_170 = arith.constant 0 : index
    %246 = vector.load %arg16[%c160_169, %c0_170] : memref<320x32xbf16, #tpu.memory_space<vmem>>, vector<64x32xbf16>
    %247 = arith.extf %246 : vector<64x32xbf16> to vector<64x32xf32>
    %c240_171 = arith.constant 240 : index
    %c0_172 = arith.constant 0 : index
    %248 = vector.load %arg16[%c240_171, %c0_172] : memref<320x32xbf16, #tpu.memory_space<vmem>>, vector<64x32xbf16>
    %249 = arith.extf %248 : vector<64x32xbf16> to vector<64x32xf32>
    %c88_173 = arith.constant 88 : index
    %c0_174 = arith.constant 0 : index
    %250 = vector.load %arg16[%c88_173, %c0_174] : memref<320x32xbf16, #tpu.memory_space<vmem>>, vector<64x32xbf16>
    %251 = arith.extf %250 : vector<64x32xbf16> to vector<64x32xf32>
    %c0_i32_175 = arith.constant 0 : i32
    %252 = vector.broadcast %c0_i32_175 : i32 to vector<64x1xi32>
    %253 = arith.cmpi ne, %236, %252 : vector<64x1xi32>
    %c1_i32_176 = arith.constant 1 : i32
    %254 = tpu.dynamic_rotate %251 by %c1_i32_176 dim 0 : vector<64x32xf32>, i32 -> vector<64x32xf32>
    %cst_177 = arith.constant 0.000000e+00 : f32
    %255 = vector.shape_cast %253 : vector<64x1xi1> to vector<64x1xi1>
    %256 = vector.broadcast %255 : vector<64x1xi1> to vector<64x32xi1>
    %257 = vector.broadcast %cst_177 : f32 to vector<64x32xf32>
    %258 = arith.select %256, %254, %257 : vector<64x32xi1>, vector<64x32xf32>
    %259 = tpu.concatenate %245, %247, %249, %258 in 1 : vector<64x32xf32>, vector<64x32xf32>, vector<64x32xf32>, vector<64x32xf32> -> vector<64x128xf32>
    %260 = arith.truncf %259 : vector<64x128xf32> to vector<64x128xbf16>
    %c0_178 = arith.constant 0 : index
    %c0_179 = arith.constant 0 : index
    %261 = vector.load %arg6[%c0_178, %c0_179] : memref<384x32xbf16, #tpu.memory_space<vmem>>, vector<128x32xbf16>
    %cst_180 = arith.constant dense<0.000000e+00> : vector<64x32xf32>
    %262 = tpu.matmul %260, %261, %cst_180 {dimension_numbers = #tpu.dot_dimension_numbers<[1], [0], [0], [1], [0, 0, 1, 1], [], []>} : vector<64x128xbf16>, vector<128x32xbf16>, vector<64x32xf32> -> vector<64x32xf32>
    %c8_181 = arith.constant 8 : index
    %c0_182 = arith.constant 0 : index
    %263 = vector.load %arg16[%c8_181, %c0_182] : memref<320x32xbf16, #tpu.memory_space<vmem>>, vector<64x32xbf16>
    %264 = arith.extf %263 : vector<64x32xbf16> to vector<64x32xf32>
    %c88_183 = arith.constant 88 : index
    %c0_184 = arith.constant 0 : index
    %265 = vector.load %arg16[%c88_183, %c0_184] : memref<320x32xbf16, #tpu.memory_space<vmem>>, vector<64x32xbf16>
    %266 = arith.extf %265 : vector<64x32xbf16> to vector<64x32xf32>
    %c248_185 = arith.constant 248 : index
    %c0_186 = arith.constant 0 : index
    %267 = vector.load %arg16[%c248_185, %c0_186] : memref<320x32xbf16, #tpu.memory_space<vmem>>, vector<64x32xbf16>
    %268 = arith.extf %267 : vector<64x32xbf16> to vector<64x32xf32>
    %c0_i32_187 = arith.constant 0 : i32
    %269 = vector.broadcast %c0_i32_187 : i32 to vector<64x1xi32>
    %270 = arith.cmpi ne, %236, %269 : vector<64x1xi32>
    %c1_i32_188 = arith.constant 1 : i32
    %271 = tpu.dynamic_rotate %268 by %c1_i32_188 dim 0 : vector<64x32xf32>, i32 -> vector<64x32xf32>
    %cst_189 = arith.constant 0.000000e+00 : f32
    %272 = vector.shape_cast %270 : vector<64x1xi1> to vector<64x1xi1>
    %273 = vector.broadcast %272 : vector<64x1xi1> to vector<64x32xi1>
    %274 = vector.broadcast %cst_189 : f32 to vector<64x32xf32>
    %275 = arith.select %273, %271, %274 : vector<64x32xi1>, vector<64x32xf32>
    %c168_190 = arith.constant 168 : index
    %c0_191 = arith.constant 0 : index
    %276 = vector.load %arg16[%c168_190, %c0_191] : memref<320x32xbf16, #tpu.memory_space<vmem>>, vector<64x32xbf16>
    %277 = arith.extf %276 : vector<64x32xbf16> to vector<64x32xf32>
    %278 = tpu.concatenate %264, %266, %275, %277 in 1 : vector<64x32xf32>, vector<64x32xf32>, vector<64x32xf32>, vector<64x32xf32> -> vector<64x128xf32>
    %279 = arith.truncf %278 : vector<64x128xf32> to vector<64x128xbf16>
    %c128_192 = arith.constant 128 : index
    %c0_193 = arith.constant 0 : index
    %280 = vector.load %arg6[%c128_192, %c0_193] : memref<384x32xbf16, #tpu.memory_space<vmem>>, vector<128x32xbf16>
    %cst_194 = arith.constant dense<0.000000e+00> : vector<64x32xf32>
    %281 = tpu.matmul %279, %280, %cst_194 {dimension_numbers = #tpu.dot_dimension_numbers<[1], [0], [0], [1], [0, 0, 1, 1], [], []>} : vector<64x128xbf16>, vector<128x32xbf16>, vector<64x32xf32> -> vector<64x32xf32>
    %282 = arith.addf %262, %281 : vector<64x32xf32>
    %c248_195 = arith.constant 248 : index
    %c0_196 = arith.constant 0 : index
    %283 = vector.load %arg16[%c248_195, %c0_196] : memref<320x32xbf16, #tpu.memory_space<vmem>>, vector<64x32xbf16>
    %284 = arith.extf %283 : vector<64x32xbf16> to vector<64x32xf32>
    %cst_197 = arith.constant 0.000000e+00 : f32
    %285 = vector.broadcast %cst_197 : f32 to vector<64x96xf32>
    %286 = tpu.concatenate %284, %285 in 1 : vector<64x32xf32>, vector<64x96xf32> -> vector<64x128xf32>
    %287 = arith.truncf %286 : vector<64x128xf32> to vector<64x128xbf16>
    %c256_198 = arith.constant 256 : index
    %c0_199 = arith.constant 0 : index
    %288 = vector.load %arg6[%c256_198, %c0_199] : memref<384x32xbf16, #tpu.memory_space<vmem>>, vector<128x32xbf16>
    %cst_200 = arith.constant dense<0.000000e+00> : vector<64x32xf32>
    %289 = tpu.matmul %287, %288, %cst_200 {dimension_numbers = #tpu.dot_dimension_numbers<[1], [0], [0], [1], [0, 0, 1, 1], [], []>} : vector<64x128xbf16>, vector<128x32xbf16>, vector<64x32xf32> -> vector<64x32xf32>
    %290 = arith.addf %282, %289 : vector<64x32xf32>
    %c0_201 = arith.constant 0 : index
    %c0_202 = arith.constant 0 : index
    %291 = vector.load %arg7[%c0_201, %c0_202] : memref<1x32xf32, #tpu.memory_space<vmem>>, vector<1x32xf32>
    %292 = vector.broadcast %291 : vector<1x32xf32> to vector<64x32xf32>
    %293 = arith.mulf %290, %292 : vector<64x32xf32>
    %c0_203 = arith.constant 0 : index
    %c0_204 = arith.constant 0 : index
    %294 = vector.load %arg8[%c0_203, %c0_204] : memref<1x32xf32, #tpu.memory_space<vmem>>, vector<1x32xf32>
    %295 = vector.broadcast %294 : vector<1x32xf32> to vector<64x32xf32>
    %296 = arith.addf %293, %295 : vector<64x32xf32>
    %cst_205 = arith.constant dense<0.000000e+00> : vector<32xf32>
    %297 = vector.multi_reduction <add>, %296, %cst_205 [0] : vector<64x32xf32> to vector<32xf32>
    %298 = vector.shape_cast %297 : vector<32xf32> to vector<1x32xf32>
    %cst_206 = arith.constant 6.400000e+01 : f32
    %299 = vector.broadcast %cst_206 : f32 to vector<1x32xf32>
    %300 = arith.divf %298, %299 : vector<1x32xf32>
    %c0_207 = arith.constant 0 : index
    %c0_208 = arith.constant 0 : index
    %301 = vector.load %arg9[%c0_207, %c0_208] : memref<32x2xf32, #tpu.memory_space<vmem>>, vector<32x2xf32>
    %cst_209 = arith.constant dense<0.000000e+00> : vector<1x2xf32>
    %302 = tpu.matmul %300, %301, %cst_209 {dimension_numbers = #tpu.dot_dimension_numbers<[1], [0], [0], [1], [0, 0, 1, 1], [], []>} : vector<1x32xf32>, vector<32x2xf32>, vector<1x2xf32> -> vector<1x2xf32>
    %cst_210 = arith.constant 0.000000e+00 : f32
    %303 = vector.broadcast %cst_210 : f32 to vector<1x2xf32>
    %304 = arith.maximumf %302, %303 : vector<1x2xf32>
    %c0_211 = arith.constant 0 : index
    %c0_212 = arith.constant 0 : index
    %305 = vector.load %arg10[%c0_211, %c0_212] : memref<2x32xf32, #tpu.memory_space<vmem>>, vector<2x32xf32>
    %cst_213 = arith.constant dense<0.000000e+00> : vector<1x32xf32>
    %306 = tpu.matmul %304, %305, %cst_213 {dimension_numbers = #tpu.dot_dimension_numbers<[1], [0], [0], [1], [0, 0, 1, 1], [], []>} : vector<1x2xf32>, vector<2x32xf32>, vector<1x32xf32> -> vector<1x32xf32>
    %307 = arith.negf %306 : vector<1x32xf32>
    %308 = math.exp %307 : vector<1x32xf32>
    %cst_214 = arith.constant 1.000000e+00 : f32
    %309 = vector.broadcast %cst_214 : f32 to vector<1x32xf32>
    %310 = arith.addf %309, %308 : vector<1x32xf32>
    %311 = arith.divf %309, %310 : vector<1x32xf32>
    %c0_215 = arith.constant 0 : index
    %c0_216 = arith.constant 0 : index
    %c0_217 = arith.constant 0 : index
    %312 = tpu.strided_load %arg1[%c0_215, %c0_216, %c0_217] {strides = array<i32: 1, 2, 1>} : memref<1x256x16xf32, #tpu.memory_space<vmem>>, vector<1x8x16xf32>
    %313 = vector.shape_cast %312 : vector<1x8x16xf32> to vector<8x16xf32>
    %c0_218 = arith.constant 0 : index
    %c32_219 = arith.constant 32 : index
    %c0_220 = arith.constant 0 : index
    %314 = tpu.strided_load %arg1[%c0_218, %c32_219, %c0_220] {strides = array<i32: 1, 2, 1>} : memref<1x256x16xf32, #tpu.memory_space<vmem>>, vector<1x8x16xf32>
    %315 = vector.shape_cast %314 : vector<1x8x16xf32> to vector<8x16xf32>
    %c0_221 = arith.constant 0 : index
    %c64_222 = arith.constant 64 : index
    %c0_223 = arith.constant 0 : index
    %316 = tpu.strided_load %arg1[%c0_221, %c64_222, %c0_223] {strides = array<i32: 1, 2, 1>} : memref<1x256x16xf32, #tpu.memory_space<vmem>>, vector<1x8x16xf32>
    %317 = vector.shape_cast %316 : vector<1x8x16xf32> to vector<8x16xf32>
    %c0_224 = arith.constant 0 : index
    %c96_225 = arith.constant 96 : index
    %c0_226 = arith.constant 0 : index
    %318 = tpu.strided_load %arg1[%c0_224, %c96_225, %c0_226] {strides = array<i32: 1, 2, 1>} : memref<1x256x16xf32, #tpu.memory_space<vmem>>, vector<1x8x16xf32>
    %319 = vector.shape_cast %318 : vector<1x8x16xf32> to vector<8x16xf32>
    %c0_227 = arith.constant 0 : index
    %c128_228 = arith.constant 128 : index
    %c0_229 = arith.constant 0 : index
    %320 = tpu.strided_load %arg1[%c0_227, %c128_228, %c0_229] {strides = array<i32: 1, 2, 1>} : memref<1x256x16xf32, #tpu.memory_space<vmem>>, vector<1x8x16xf32>
    %321 = vector.shape_cast %320 : vector<1x8x16xf32> to vector<8x16xf32>
    %c0_230 = arith.constant 0 : index
    %c160_231 = arith.constant 160 : index
    %c0_232 = arith.constant 0 : index
    %322 = tpu.strided_load %arg1[%c0_230, %c160_231, %c0_232] {strides = array<i32: 1, 2, 1>} : memref<1x256x16xf32, #tpu.memory_space<vmem>>, vector<1x8x16xf32>
    %323 = vector.shape_cast %322 : vector<1x8x16xf32> to vector<8x16xf32>
    %c0_233 = arith.constant 0 : index
    %c192_234 = arith.constant 192 : index
    %c0_235 = arith.constant 0 : index
    %324 = tpu.strided_load %arg1[%c0_233, %c192_234, %c0_235] {strides = array<i32: 1, 2, 1>} : memref<1x256x16xf32, #tpu.memory_space<vmem>>, vector<1x8x16xf32>
    %325 = vector.shape_cast %324 : vector<1x8x16xf32> to vector<8x16xf32>
    %c0_236 = arith.constant 0 : index
    %c224_237 = arith.constant 224 : index
    %c0_238 = arith.constant 0 : index
    %326 = tpu.strided_load %arg1[%c0_236, %c224_237, %c0_238] {strides = array<i32: 1, 2, 1>} : memref<1x256x16xf32, #tpu.memory_space<vmem>>, vector<1x8x16xf32>
    %327 = vector.shape_cast %326 : vector<1x8x16xf32> to vector<8x16xf32>
    %328 = tpu.concatenate %313, %315, %317, %319, %321, %323, %325, %327 in 0 : vector<8x16xf32>, vector<8x16xf32>, vector<8x16xf32>, vector<8x16xf32>, vector<8x16xf32>, vector<8x16xf32>, vector<8x16xf32>, vector<8x16xf32> -> vector<64x16xf32>
    %329 = arith.truncf %328 : vector<64x16xf32> to vector<64x16xbf16>
    %c0_239 = arith.constant 0 : index
    %c0_240 = arith.constant 0 : index
    %330 = vector.load %arg11[%c0_239, %c0_240] : memref<16x32xbf16, #tpu.memory_space<vmem>>, vector<16x32xbf16>
    %cst_241 = arith.constant dense<0.000000e+00> : vector<64x32xf32>
    %331 = tpu.matmul %329, %330, %cst_241 {dimension_numbers = #tpu.dot_dimension_numbers<[1], [0], [0], [1], [0, 0, 1, 1], [], []>} : vector<64x16xbf16>, vector<16x32xbf16>, vector<64x32xf32> -> vector<64x32xf32>
    %c0_242 = arith.constant 0 : index
    %c0_243 = arith.constant 0 : index
    %332 = vector.load %arg12[%c0_242, %c0_243] : memref<1x32xf32, #tpu.memory_space<vmem>>, vector<1x32xf32>
    %333 = vector.broadcast %332 : vector<1x32xf32> to vector<64x32xf32>
    %334 = arith.mulf %331, %333 : vector<64x32xf32>
    %c0_244 = arith.constant 0 : index
    %c0_245 = arith.constant 0 : index
    %335 = vector.load %arg13[%c0_244, %c0_245] : memref<1x32xf32, #tpu.memory_space<vmem>>, vector<1x32xf32>
    %336 = vector.broadcast %335 : vector<1x32xf32> to vector<64x32xf32>
    %337 = arith.addf %334, %336 : vector<64x32xf32>
    %338 = vector.broadcast %311 : vector<1x32xf32> to vector<64x32xf32>
    %339 = arith.mulf %296, %338 : vector<64x32xf32>
    %340 = arith.addf %339, %337 : vector<64x32xf32>
    %c0_246 = arith.constant 0 : index
    %c0_247 = arith.constant 0 : index
    %c0_248 = arith.constant 0 : index
    %341 = vector.load %arg14[%c0_246, %c0_247, %c0_248] : memref<1x64x32xf32, #tpu.memory_space<vmem>>, vector<1x64x32xf32>
    %342 = vector.shape_cast %341 : vector<1x64x32xf32> to vector<64x32xf32>
    %343 = vector.shape_cast %340 : vector<64x32xf32> to vector<1x64x32xf32>
    tpu.vector_store %arg14[%c0_246, %c0_247, %c0_248], %343 {strides = array<i32>} : memref<1x64x32xf32, #tpu.memory_space<vmem>>, vector<1x64x32xf32>,
    return
  }
  func.func @transform_0(%arg0: i32) -> (i32, i32, i32) {
    %c0_i32 = arith.constant 0 : i32
    %c0_i32_0 = arith.constant 0 : i32
    %c0_i32_1 = arith.constant 0 : i32
    return %arg0, %c0_i32, %c0_i32_0 : i32, i32, i32
  }
  func.func @transform_1(%arg0: i32) -> (i32, i32) {
    %c0_i32 = arith.constant 0 : i32
    %c0_i32_0 = arith.constant 0 : i32
    %c0_i32_1 = arith.constant 0 : i32
    return %c0_i32, %c0_i32_0 : i32, i32
  }
  func.func @transform_2(%arg0: i32) -> (i32, i32) {
    %c0_i32 = arith.constant 0 : i32
    %c0_i32_0 = arith.constant 0 : i32
    %c0_i32_1 = arith.constant 0 : i32
    return %c0_i32, %c0_i32_0 : i32, i32
  }
  func.func @transform_3(%arg0: i32) -> (i32, i32) {
    %c0_i32 = arith.constant 0 : i32
    %c0_i32_0 = arith.constant 0 : i32
    %c0_i32_1 = arith.constant 0 : i32
    return %c0_i32, %c0_i32_0 : i32, i32
  }
  func.func @transform_4(%arg0: i32) -> (i32, i32) {
    %c0_i32 = arith.constant 0 : i32
    %c0_i32_0 = arith.constant 0 : i32
    %c0_i32_1 = arith.constant 0 : i32
    return %c0_i32, %c0_i32_0 : i32, i32
  }
  func.func @transform_5(%arg0: i32) -> (i32, i32) {
    %c0_i32 = arith.constant 0 : i32
    %c0_i32_0 = arith.constant 0 : i32
    %c0_i32_1 = arith.constant 0 : i32
    return %c0_i32, %c0_i32_0 : i32, i32
  }
  func.func @transform_6(%arg0: i32) -> (i32, i32) {
    %c0_i32 = arith.constant 0 : i32
    %c0_i32_0 = arith.constant 0 : i32
    %c0_i32_1 = arith.constant 0 : i32
    return %c0_i32, %c0_i32_0 : i32, i32
  }
  func.func @transform_7(%arg0: i32) -> (i32, i32) {
    %c0_i32 = arith.constant 0 : i32
    %c0_i32_0 = arith.constant 0 : i32
    %c0_i32_1 = arith.constant 0 : i32
    return %c0_i32, %c0_i32_0 : i32, i32
  }
  func.func @transform_8(%arg0: i32) -> (i32, i32) {
    %c0_i32 = arith.constant 0 : i32
    %c0_i32_0 = arith.constant 0 : i32
    %c0_i32_1 = arith.constant 0 : i32
    return %c0_i32, %c0_i32_0 : i32, i32
  }
  func.func @transform_9(%arg0: i32) -> (i32, i32) {
    %c0_i32 = arith.constant 0 : i32
    %c0_i32_0 = arith.constant 0 : i32
    %c0_i32_1 = arith.constant 0 : i32
    return %c0_i32, %c0_i32_0 : i32, i32
  }
  func.func @transform_10(%arg0: i32) -> (i32, i32) {
    %c0_i32 = arith.constant 0 : i32
    %c0_i32_0 = arith.constant 0 : i32
    %c0_i32_1 = arith.constant 0 : i32
    return %c0_i32, %c0_i32_0 : i32, i32
  }
  func.func @transform_11(%arg0: i32) -> (i32, i32) {
    %c0_i32 = arith.constant 0 : i32
    %c0_i32_0 = arith.constant 0 : i32
    %c0_i32_1 = arith.constant 0 : i32
    return %c0_i32, %c0_i32_0 : i32, i32
  }
  func.func @transform_12(%arg0: i32) -> (i32, i32) {
    %c0_i32 = arith.constant 0 : i32
    %c0_i32_0 = arith.constant 0 : i32
    %c0_i32_1 = arith.constant 0 : i32
    return %c0_i32, %c0_i32_0 : i32, i32
  }
  func.func @transform_13(%arg0: i32) -> (i32, i32, i32) {
    %c0_i32 = arith.constant 0 : i32
    %c0_i32_0 = arith.constant 0 : i32
    %c0_i32_1 = arith.constant 0 : i32
    return %arg0, %c0_i32, %c0_i32_0 : i32, i32, i32
  }
}

</mosaic_0001>

<llo_original>
// kernel: tpu_custom_call.1
$region0: #{tpu_custom_call.1}
  #allocation0 [shape = 'u32[]', space=smem, size = 0x4, offset = 0x4, fixed_abs, tag = 'smem constant byte address 0x4 - core index']
  #allocation1 [shape = 'u32[144,128]{1,0:T(1,128)}', space=vmem, size = 0x12000, scoped, tag = 'internal scratch']
  #allocation2 [shape = 'bf16[288,16]{1,0:T(8,128)(2,1)}', space=vmem, size = 0x12000, scoped, tag = 'scratch operand']
  #allocation3 [shape = 'bf16[320,32]{1,0:T(8,128)(2,1)}', space=vmem, size = 0x14000, scoped, tag = 'scratch operand']
  #allocation4 [shape = 'f32[256,32]{1,0:T(8,128)}', space=vmem, size = 0x20000, scoped, tag = 'scratch operand']
  %s0 = inlined_call_operand.vmem [shape: f32[2,256,16], index: 0, kind: input, shape index: {}]
  %s1 = inlined_call_operand.vmem [shape: f32[1,16], index: 1, kind: input, shape index: {}]
  %s2 = inlined_call_operand.vmem [shape: f32[1,16], index: 2, kind: input, shape index: {}]
  %s3 = inlined_call_operand.vmem [shape: bf16[256,32], index: 3, kind: input, shape index: {}]
  %s4 = inlined_call_operand.vmem [shape: f32[1,32], index: 4, kind: input, shape index: {}]
  %s5 = inlined_call_operand.vmem [shape: bf16[384,32], index: 5, kind: input, shape index: {}]
  %s6 = inlined_call_operand.vmem [shape: f32[1,32], index: 6, kind: input, shape index: {}]
  %s7 = inlined_call_operand.vmem [shape: f32[1,32], index: 7, kind: input, shape index: {}]
  %s8 = inlined_call_operand.vmem [shape: f32[32,2], index: 8, kind: input, shape index: {}]
  %s9 = inlined_call_operand.vmem [shape: f32[2,32], index: 9, kind: input, shape index: {}]
  %s10 = inlined_call_operand.vmem [shape: bf16[16,32], index: 10, kind: input, shape index: {}]
  %s11 = inlined_call_operand.vmem [shape: f32[1,32], index: 11, kind: input, shape index: {}]
  %s12 = inlined_call_operand.vmem [shape: f32[1,32], index: 12, kind: input, shape index: {}]
  %s13 = inlined_call_operand.vmem [shape: f32[2,64,32], index: 13, kind: output, shape index: {}]
  %s14 = sld [smem:[#allocation0]]
  $region85: #{tpu_custom_call.1} parent=0
    _
  %s16 = ssub.s32 1, %s14
  %s17 = scalar_select 0, %s16, %s14
  loop: start=0, step=1, limit=4
  $region2: #{tpu_custom_call.1} parent=0 // loop_pre_header
    _
  $region3: #{tpu_custom_call.1} parent=0 // loop_header
    %s19 = sphi 0, %s23
    %p20 = scmp.ge.s32.totalorder %s19, 4
    %s29 = sphi 0, %s31
    %s32 = sphi 0, %s29
    %s33 = sphi 0, %s32
    %s49 = sphi 0, %s33
    %s53 = sphi 0, %s53
    %s55 = sphi 0, %s53
    %s56 = sphi 0, %s55
    %s70 = sphi 0, %s56
    %s74 = sphi 0, %s74
    %s76 = sphi 0, %s74
    %s77 = sphi 0, %s76
    %s91 = sphi 0, %s77
    %s95 = sphi 0, %s95
    %s97 = sphi 0, %s95
    %s98 = sphi 0, %s97
    %s112 = sphi 0, %s98
    %s116 = sphi 0, %s116
    %s118 = sphi 0, %s116
    %s119 = sphi 0, %s118
    %s133 = sphi 0, %s119
    %s137 = sphi 0, %s137
    %s139 = sphi 0, %s137
    %s140 = sphi 0, %s139
    %s154 = sphi 0, %s140
    %s158 = sphi 0, %s158
    %s160 = sphi 0, %s158
    %s161 = sphi 0, %s160
    %s175 = sphi 0, %s161
    %s179 = sphi 0, %s179
    %s181 = sphi 0, %s179
    %s182 = sphi 0, %s181
    %s196 = sphi 0, %s182
    %s200 = sphi 0, %s200
    %s202 = sphi 0, %s200
    %s203 = sphi 0, %s202
    %s217 = sphi 0, %s203
    %s221 = sphi 0, %s221
    %s223 = sphi 0, %s221
    %s224 = sphi 0, %s223
    %s238 = sphi 0, %s224
    %s242 = sphi 0, %s242
    %s244 = sphi 0, %s242
    %s245 = sphi 0, %s244
    %s259 = sphi 0, %s245
    %s263 = sphi 0, %s263
    %s265 = sphi 0, %s263
    %s266 = sphi 0, %s265
    %s280 = sphi 0, %s266
    %s284 = sphi 0, %s284
    %s286 = sphi 0, %s284
    %s287 = sphi 0, %s286
    %s301 = sphi 0, %s287
    %s307 = sphi 0, %s309
    %s310 = sphi 0, %s307
    %s311 = sphi 0, %s310
    %s327 = sphi 0, %s311
  $region4: #{tpu_custom_call.1} parent=0 // loop_header_branch
    %22 = sbr.rel (%p20) target = $region8
  $region5: #{tpu_custom_call.1} parent=0 // loop_body
    %s24 = ssub.s32 %s19, 1
    %s25 = ssub.s32 %s19, 2
    %s26 = sadd.s32 %s19, 1
    %s27 = ssub.s32 %s19, %s26
    %p28 = scmp.eq.s32.totalorder %s27, 0
    %s30 = sadd.s32 %s29, 1
    %s31 = scalar_select %p28, %s29, %s30
    %p34 = pneg %p28
    %p35 = scmp.eq.s32.totalorder %s19, 1
    %p36 = por %p34, %p35
    %p37 = scmp.ne.s32.totalorder %s29, %s32
    %p38 = scmp.eq.s32.totalorder %s19, 0
    %p39 = por %p37, %p38
    %p40 = scmp.ne.s32.totalorder %s29, %s32
    %p41 = scmp.eq.s32.totalorder %s24, 1
    %p42 = por %p40, %p41
    %p43 = scmp.ne.s32.totalorder %s32, %s33
    %p44 = scmp.eq.s32.totalorder %s24, 0
    %p45 = por %p43, %p44
    %p46 = scmp.ne.s32.totalorder %s32, %s33
    %p47 = scmp.eq.s32.totalorder %s25, 1
    %p48 = por %p46, %p47
    %p50 = scmp.ne.s32.totalorder %s33, %s49
    %p51 = scmp.eq.s32.totalorder %s25, 0
    %p52 = por %p50, %p51
    %s54 = sadd.s32 %s53, 1
    %p57 = scmp.eq.s32.totalorder %s19, 1
    %p58 = scmp.ne.s32.totalorder %s53, %s55
    %p59 = scmp.eq.s32.totalorder %s19, 0
    %p60 = por %p58, %p59
    %p61 = scmp.ne.s32.totalorder %s53, %s55
    %p62 = scmp.eq.s32.totalorder %s24, 1
    %p63 = por %p61, %p62
    %p64 = scmp.ne.s32.totalorder %s55, %s56
    %p65 = scmp.eq.s32.totalorder %s24, 0
    %p66 = por %p64, %p65
    %p67 = scmp.ne.s32.totalorder %s55, %s56
    %p68 = scmp.eq.s32.totalorder %s25, 1
    %p69 = por %p67, %p68
    %p71 = scmp.ne.s32.totalorder %s56, %s70
    %p72 = scmp.eq.s32.totalorder %s25, 0
    %p73 = por %p71, %p72
    %s75 = sadd.s32 %s74, 1
    %p78 = scmp.eq.s32.totalorder %s19, 1
    %p79 = scmp.ne.s32.totalorder %s74, %s76
    %p80 = scmp.eq.s32.totalorder %s19, 0
    %p81 = por %p79, %p80
    %p82 = scmp.ne.s32.totalorder %s74, %s76
    %p83 = scmp.eq.s32.totalorder %s24, 1
    %p84 = por %p82, %p83
    %p85 = scmp.ne.s32.totalorder %s76, %s77
    %p86 = scmp.eq.s32.totalorder %s24, 0
    %p87 = por %p85, %p86
    %p88 = scmp.ne.s32.totalorder %s76, %s77
    %p89 = scmp.eq.s32.totalorder %s25, 1
    %p90 = por %p88, %p89
    %p92 = scmp.ne.s32.totalorder %s77, %s91
    %p93 = scmp.eq.s32.totalorder %s25, 0
    %p94 = por %p92, %p93
    %s96 = sadd.s32 %s95, 1
    %p99 = scmp.eq.s32.totalorder %s19, 1
    %p100 = scmp.ne.s32.totalorder %s95, %s97
    %p101 = scmp.eq.s32.totalorder %s19, 0
    %p102 = por %p100, %p101
    %p103 = scmp.ne.s32.totalorder %s95, %s97
    %p104 = scmp.eq.s32.totalorder %s24, 1
    %p105 = por %p103, %p104
    %p106 = scmp.ne.s32.totalorder %s97, %s98
    %p107 = scmp.eq.s32.totalorder %s24, 0
    %p108 = por %p106, %p107
    %p109 = scmp.ne.s32.totalorder %s97, %s98
    %p110 = scmp.eq.s32.totalorder %s25, 1
    %p111 = por %p109, %p110
    %p113 = scmp.ne.s32.totalorder %s98, %s112
    %p114 = scmp.eq.s32.totalorder %s25, 0
    %p115 = por %p113, %p114
    %s117 = sadd.s32 %s116, 1
    %p120 = scmp.eq.s32.totalorder %s19, 1
    %p121 = scmp.ne.s32.totalorder %s116, %s118
    %p122 = scmp.eq.s32.totalorder %s19, 0
    %p123 = por %p121, %p122
    %p124 = scmp.ne.s32.totalorder %s116, %s118
    %p125 = scmp.eq.s32.totalorder %s24, 1
    %p126 = por %p124, %p125
    %p127 = scmp.ne.s32.totalorder %s118, %s119
    %p128 = scmp.eq.s32.totalorder %s24, 0
    %p129 = por %p127, %p128
    %p130 = scmp.ne.s32.totalorder %s118, %s119
    %p131 = scmp.eq.s32.totalorder %s25, 1
    %p132 = por %p130, %p131
    %p134 = scmp.ne.s32.totalorder %s119, %s133
    %p135 = scmp.eq.s32.totalorder %s25, 0
    %p136 = por %p134, %p135
    %s138 = sadd.s32 %s137, 1
    %p141 = scmp.eq.s32.totalorder %s19, 1
    %p142 = scmp.ne.s32.totalorder %s137, %s139
    %p143 = scmp.eq.s32.totalorder %s19, 0
    %p144 = por %p142, %p143
    %p145 = scmp.ne.s32.totalorder %s137, %s139
    %p146 = scmp.eq.s32.totalorder %s24, 1
    %p147 = por %p145, %p146
    %p148 = scmp.ne.s32.totalorder %s139, %s140
    %p149 = scmp.eq.s32.totalorder %s24, 0
    %p150 = por %p148, %p149
    %p151 = scmp.ne.s32.totalorder %s139, %s140
    %p152 = scmp.eq.s32.totalorder %s25, 1
    %p153 = por %p151, %p152
    %p155 = scmp.ne.s32.totalorder %s140, %s154
    %p156 = scmp.eq.s32.totalorder %s25, 0
    %p157 = por %p155, %p156
    %s159 = sadd.s32 %s158, 1
    %p162 = scmp.eq.s32.totalorder %s19, 1
    %p163 = scmp.ne.s32.totalorder %s158, %s160
    %p164 = scmp.eq.s32.totalorder %s19, 0
    %p165 = por %p163, %p164
    %p166 = scmp.ne.s32.totalorder %s158, %s160
    %p167 = scmp.eq.s32.totalorder %s24, 1
    %p168 = por %p166, %p167
    %p169 = scmp.ne.s32.totalorder %s160, %s161
    %p170 = scmp.eq.s32.totalorder %s24, 0
    %p171 = por %p169, %p170
    %p172 = scmp.ne.s32.totalorder %s160, %s161
    %p173 = scmp.eq.s32.totalorder %s25, 1
    %p174 = por %p172, %p173
    %p176 = scmp.ne.s32.totalorder %s161, %s175
    %p177 = scmp.eq.s32.totalorder %s25, 0
    %p178 = por %p176, %p177
    %s180 = sadd.s32 %s179, 1
    %p183 = scmp.eq.s32.totalorder %s19, 1
    %p184 = scmp.ne.s32.totalorder %s179, %s181
    %p185 = scmp.eq.s32.totalorder %s19, 0
    %p186 = por %p184, %p185
    %p187 = scmp.ne.s32.totalorder %s179, %s181
    %p188 = scmp.eq.s32.totalorder %s24, 1
    %p189 = por %p187, %p188
    %p190 = scmp.ne.s32.totalorder %s181, %s182
    %p191 = scmp.eq.s32.totalorder %s24, 0
    %p192 = por %p190, %p191
    %p193 = scmp.ne.s32.totalorder %s181, %s182
    %p194 = scmp.eq.s32.totalorder %s25, 1
    %p195 = por %p193, %p194
    %p197 = scmp.ne.s32.totalorder %s182, %s196
    %p198 = scmp.eq.s32.totalorder %s25, 0
    %p199 = por %p197, %p198
    %s201 = sadd.s32 %s200, 1
    %p204 = scmp.eq.s32.totalorder %s19, 1
    %p205 = scmp.ne.s32.totalorder %s200, %s202
    %p206 = scmp.eq.s32.totalorder %s19, 0
    %p207 = por %p205, %p206
    %p208 = scmp.ne.s32.totalorder %s200, %s202
    %p209 = scmp.eq.s32.totalorder %s24, 1
    %p210 = por %p208, %p209
    %p211 = scmp.ne.s32.totalorder %s202, %s203
    %p212 = scmp.eq.s32.totalorder %s24, 0
    %p213 = por %p211, %p212
    %p214 = scmp.ne.s32.totalorder %s202, %s203
    %p215 = scmp.eq.s32.totalorder %s25, 1
    %p216 = por %p214, %p215
    %p218 = scmp.ne.s32.totalorder %s203, %s217
    %p219 = scmp.eq.s32.totalorder %s25, 0
    %p220 = por %p218, %p219
    %s222 = sadd.s32 %s221, 1
    %p225 = scmp.eq.s32.totalorder %s19, 1
    %p226 = scmp.ne.s32.totalorder %s221, %s223
    %p227 = scmp.eq.s32.totalorder %s19, 0
    %p228 = por %p226, %p227
    %p229 = scmp.ne.s32.totalorder %s221, %s223
    %p230 = scmp.eq.s32.totalorder %s24, 1
    %p231 = por %p229, %p230
    %p232 = scmp.ne.s32.totalorder %s223, %s224
    %p233 = scmp.eq.s32.totalorder %s24, 0
    %p234 = por %p232, %p233
    %p235 = scmp.ne.s32.totalorder %s223, %s224
    %p236 = scmp.eq.s32.totalorder %s25, 1
    %p237 = por %p235, %p236
    %p239 = scmp.ne.s32.totalorder %s224, %s238
    %p240 = scmp.eq.s32.totalorder %s25, 0
    %p241 = por %p239, %p240
    %s243 = sadd.s32 %s242, 1
    %p246 = scmp.eq.s32.totalorder %s19, 1
    %p247 = scmp.ne.s32.totalorder %s242, %s244
    %p248 = scmp.eq.s32.totalorder %s19, 0
    %p249 = por %p247, %p248
    %p250 = scmp.ne.s32.totalorder %s242, %s244
    %p251 = scmp.eq.s32.totalorder %s24, 1
    %p252 = por %p250, %p251
    %p253 = scmp.ne.s32.totalorder %s244, %s245
    %p254 = scmp.eq.s32.totalorder %s24, 0
    %p255 = por %p253, %p254
    %p256 = scmp.ne.s32.totalorder %s244, %s245
    %p257 = scmp.eq.s32.totalorder %s25, 1
    %p258 = por %p256, %p257
    %p260 = scmp.ne.s32.totalorder %s245, %s259
    %p261 = scmp.eq.s32.totalorder %s25, 0
    %p262 = por %p260, %p261
    %s264 = sadd.s32 %s263, 1
    %p267 = scmp.eq.s32.totalorder %s19, 1
    %p268 = scmp.ne.s32.totalorder %s263, %s265
    %p269 = scmp.eq.s32.totalorder %s19, 0
    %p270 = por %p268, %p269
    %p271 = scmp.ne.s32.totalorder %s263, %s265
    %p272 = scmp.eq.s32.totalorder %s24, 1
    %p273 = por %p271, %p272
    %p274 = scmp.ne.s32.totalorder %s265, %s266
    %p275 = scmp.eq.s32.totalorder %s24, 0
    %p276 = por %p274, %p275
    %p277 = scmp.ne.s32.totalorder %s265, %s266
    %p278 = scmp.eq.s32.totalorder %s25, 1
    %p279 = por %p277, %p278
    %p281 = scmp.ne.s32.totalorder %s266, %s280
    %p282 = scmp.eq.s32.totalorder %s25, 0
    %p283 = por %p281, %p282
    %s285 = sadd.s32 %s284, 1
    %p288 = scmp.eq.s32.totalorder %s19, 1
    %p289 = scmp.ne.s32.totalorder %s284, %s286
    %p290 = scmp.eq.s32.totalorder %s19, 0
    %p291 = por %p289, %p290
    %p292 = scmp.ne.s32.totalorder %s284, %s286
    %p293 = scmp.eq.s32.totalorder %s24, 1
    %p294 = por %p292, %p293
    %p295 = scmp.ne.s32.totalorder %s286, %s287
    %p296 = scmp.eq.s32.totalorder %s24, 0
    %p297 = por %p295, %p296
    %p298 = scmp.ne.s32.totalorder %s286, %s287
    %p299 = scmp.eq.s32.totalorder %s25, 1
    %p300 = por %p298, %p299
    %p302 = scmp.ne.s32.totalorder %s287, %s301
    %p303 = scmp.eq.s32.totalorder %s25, 0
    %p304 = por %p302, %p303
    %s305 = ssub.s32 %s19, %s26
    %p306 = scmp.eq.s32.totalorder %s305, 0
    %s308 = sadd.s32 %s307, 1
    %s309 = scalar_select %p306, %s307, %s308
    %p312 = pneg %p306
    %p313 = scmp.eq.s32.totalorder %s19, 1
    %p314 = por %p312, %p313
    %p315 = scmp.ne.s32.totalorder %s307, %s310
    %p316 = scmp.eq.s32.totalorder %s19, 0
    %p317 = por %p315, %p316
    %p318 = scmp.ne.s32.totalorder %s307, %s310
    %p319 = scmp.eq.s32.totalorder %s24, 1
    %p320 = por %p318, %p319
    %p321 = scmp.ne.s32.totalorder %s310, %s311
    %p322 = scmp.eq.s32.totalorder %s24, 0
    %p323 = por %p321, %p322
    %p324 = scmp.ne.s32.totalorder %s310, %s311
    %p325 = scmp.eq.s32.totalorder %s25, 1
    %p326 = por %p324, %p325
    %p328 = scmp.ne.s32.totalorder %s311, %s327
    %p329 = scmp.eq.s32.totalorder %s25, 0
    %p330 = por %p328, %p329
    %p331 = scmp.le.s32.totalorder 1, %s19
    %p332 = scmp.lt.s32.totalorder %s19, 3
    %p333 = pnand %p331, %p332
    %p334 = pneg %p333
    // Predicated region
    $region9: #{tpu_custom_call.1} parent=5 // pred_check
      _
    $region10: #{tpu_custom_call.1} parent=5 // pred_check_branch
      %336 = sbr.rel (%p333) target = $region12
    $region11: #{tpu_custom_call.1} parent=5 // pred_region
      %s337 = ssub.s32 %s19, 1
      // Predicated region
      $region13: #{tpu_custom_call.1} parent=11 // pred_check
        %p338 = pneg %p66
      $region14: #{tpu_custom_call.1} parent=11 // pred_check_branch
        %340 = sbr.rel (%p338) target = $region16
      $region15: #{tpu_custom_call.1} parent=11 // pred_region
        _
      $region16: #{tpu_custom_call.1} parent=11 // pred_fallthru
        _
      // Predicated region
      $region17: #{tpu_custom_call.1} parent=11 // pred_check
        %p341 = pneg %p87
      $region18: #{tpu_custom_call.1} parent=11 // pred_check_branch
        %343 = sbr.rel (%p341) target = $region20
      $region19: #{tpu_custom_call.1} parent=11 // pred_region
        _
      $region20: #{tpu_custom_call.1} parent=11 // pred_fallthru
        _
      // Predicated region
      $region21: #{tpu_custom_call.1} parent=11 // pred_check
        %p344 = pneg %p108
      $region22: #{tpu_custom_call.1} parent=11 // pred_check_branch
        %346 = sbr.rel (%p344) target = $region24
      $region23: #{tpu_custom_call.1} parent=11 // pred_region
        _
      $region24: #{tpu_custom_call.1} parent=11 // pred_fallthru
        _
      // Predicated region
      $region25: #{tpu_custom_call.1} parent=11 // pred_check
        %p347 = pneg %p129
      $region26: #{tpu_custom_call.1} parent=11 // pred_check_branch
        %349 = sbr.rel (%p347) target = $region28
      $region27: #{tpu_custom_call.1} parent=11 // pred_region
        _
      $region28: #{tpu_custom_call.1} parent=11 // pred_fallthru
        _
      // Predicated region
      $region29: #{tpu_custom_call.1} parent=11 // pred_check
        %p350 = pneg %p150
      $region30: #{tpu_custom_call.1} parent=11 // pred_check_branch
        %352 = sbr.rel (%p350) target = $region32
      $region31: #{tpu_custom_call.1} parent=11 // pred_region
        _
      $region32: #{tpu_custom_call.1} parent=11 // pred_fallthru
        _
      // Predicated region
      $region33: #{tpu_custom_call.1} parent=11 // pred_check
        %p353 = pneg %p171
      $region34: #{tpu_custom_call.1} parent=11 // pred_check_branch
        %355 = sbr.rel (%p353) target = $region36
      $region35: #{tpu_custom_call.1} parent=11 // pred_region
        _
      $region36: #{tpu_custom_call.1} parent=11 // pred_fallthru
        _
      // Predicated region
      $region37: #{tpu_custom_call.1} parent=11 // pred_check
        %p356 = pneg %p192
      $region38: #{tpu_custom_call.1} parent=11 // pred_check_branch
        %358 = sbr.rel (%p356) target = $region40
      $region39: #{tpu_custom_call.1} parent=11 // pred_region
        _
      $region40: #{tpu_custom_call.1} parent=11 // pred_fallthru
        _
      // Predicated region
      $region41: #{tpu_custom_call.1} parent=11 // pred_check
        %p359 = pneg %p213
      $region42: #{tpu_custom_call.1} parent=11 // pred_check_branch
        %361 = sbr.rel (%p359) target = $region44
      $region43: #{tpu_custom_call.1} parent=11 // pred_region
        _
      $region44: #{tpu_custom_call.1} parent=11 // pred_fallthru
        _
      // Predicated region
      $region45: #{tpu_custom_call.1} parent=11 // pred_check
        %p362 = pneg %p234
      $region46: #{tpu_custom_call.1} parent=11 // pred_check_branch
        %364 = sbr.rel (%p362) target = $region48
      $region47: #{tpu_custom_call.1} parent=11 // pred_region
        _
      $region48: #{tpu_custom_call.1} parent=11 // pred_fallthru
        _
      // Predicated region
      $region49: #{tpu_custom_call.1} parent=11 // pred_check
        %p365 = pneg %p255
      $region50: #{tpu_custom_call.1} parent=11 // pred_check_branch
        %367 = sbr.rel (%p365) target = $region52
      $region51: #{tpu_custom_call.1} parent=11 // pred_region
        _
      $region52: #{tpu_custom_call.1} parent=11 // pred_fallthru
        _
      // Predicated region
      $region53: #{tpu_custom_call.1} parent=11 // pred_check
        %p368 = pneg %p276
      $region54: #{tpu_custom_call.1} parent=11 // pred_check_branch
        %370 = sbr.rel (%p368) target = $region56
      $region55: #{tpu_custom_call.1} parent=11 // pred_region
        _
      $region56: #{tpu_custom_call.1} parent=11 // pred_fallthru
        _
      // Predicated region
      $region57: #{tpu_custom_call.1} parent=11 // pred_check
        %p371 = pneg %p297
      $region58: #{tpu_custom_call.1} parent=11 // pred_check_branch
        %373 = sbr.rel (%p371) target = $region60
      $region59: #{tpu_custom_call.1} parent=11 // pred_region
        _
      $region60: #{tpu_custom_call.1} parent=11 // pred_fallthru
        _
    $region12: #{tpu_custom_call.1} parent=5 // pred_fallthru
      _
    %p374 = scmp.lt.s32.totalorder %s19, 2
    // Predicated region
    $region61: #{tpu_custom_call.1} parent=5 // pred_check
      %p375 = pneg %p374
    $region62: #{tpu_custom_call.1} parent=5 // pred_check_branch
      %377 = sbr.rel (%p375) target = $region64
    $region63: #{tpu_custom_call.1} parent=5 // pred_region
      // Predicated region
      $region65: #{tpu_custom_call.1} parent=63 // pred_check
        %p378 = pneg %p39
      $region66: #{tpu_custom_call.1} parent=63 // pred_check_branch
        %380 = sbr.rel (%p378) target = $region68
      $region67: #{tpu_custom_call.1} parent=63 // pred_region
        %p381 = scmp.lt.s32.totalorder %s19, 1
        %s382 = scalar_select %p381, %s19, 1
        %s383 = smul.addr %s382, 32
        %s384 = smul.addr %s383, 8
        %s385 = scalar_lea.vmem %s0, %s384
      $region68: #{tpu_custom_call.1} parent=63 // pred_fallthru
        _
    $region64: #{tpu_custom_call.1} parent=5 // pred_fallthru
      _
    %p386 = scmp.le.s32.totalorder 1, %s19
    %p387 = scmp.lt.s32.totalorder %s19, 3
    %p388 = pnand %p386, %p387
    %p389 = pneg %p388
    // Predicated region
    $region69: #{tpu_custom_call.1} parent=5 // pred_check
      _
    $region70: #{tpu_custom_call.1} parent=5 // pred_check_branch
      %391 = sbr.rel (%p388) target = $region72
    $region71: #{tpu_custom_call.1} parent=5 // pred_region
      %s392 = ssub.s32 %s19, 1
      %p393 = scmp.lt.s32.totalorder %s24, 1
      %s394 = scalar_select %p393, %s24, 1
      %s395 = smul.addr %s394, 32
      %s396 = smul.addr %s395, 8
      %s397 = scalar_lea.vmem %s0, %s396
      %p398 = pneg %p45
      %p399 = pneg %p42
      %p400 = pneg %p66
      %p401 = pneg %p63
      %p402 = pneg %p87
      %p403 = pneg %p84
      %p404 = pneg %p108
      %p405 = pneg %p105
      %p406 = pneg %p129
      %p407 = pneg %p126
      %p408 = pneg %p150
      %p409 = pneg %p147
      %p410 = pneg %p171
      %p411 = pneg %p168
      %p412 = pneg %p192
      %p413 = pneg %p189
      %p414 = pneg %p213
      %p415 = pneg %p210
      %p416 = pneg %p234
      %p417 = pneg %p231
      %p418 = pneg %p255
      %p419 = pneg %p252
      %p420 = pneg %p276
      %p421 = pneg %p273
      %p422 = pneg %p297
      %p423 = pneg %p294
      %p424 = pneg %p323
      %p425 = pneg %p320
      %p426 = scmp.lt.s32.totalorder %s24, 1
      %s427 = scalar_select %p426, %s24, 1
      %s428 = smul.addr %s427, 8
      %s429 = smul.addr %s428, 8
      %s430 = scalar_lea.vmem %s13, %s429
      %p431 = scmp.lt.s32.totalorder %s24, 1
      %s432 = scalar_select %p431, %s24, 1
      %s433 = smul.addr %s432, 32
      %s434 = smul.addr %s433, 8
      %s435 = scalar_lea.vmem %s0, %s434
      %p436 = scmp.lt.s32.totalorder %s24, 1
      %s437 = scalar_select %p436, %s24, 1
      %s438 = smul.addr %s437, 8
      %s439 = smul.addr %s438, 8
      %s440 = scalar_lea.vmem %s13, %s439
      %vm442 = vcmask 125952
      %443 = vst.msk [vmem:[#allocation2] sm:$0xf] %vm442, 0
      %444 = vst.msk [vmem:[#allocation2 + $0x4] sm:$0xf] %vm442, 0
      %445 = vst.msk [vmem:[#allocation2 + $0x88] sm:$0xf] %vm442, 0
      %446 = vst.msk [vmem:[#allocation2 + $0x8c] sm:$0xf] %vm442, 0
      %vm447 = vcmask 257024
      %448 = vst.msk [vmem:[#allocation3] sm:$0xf] %vm447, 0
      %449 = vst.msk [vmem:[#allocation3 + $0x24] sm:$0xf] %vm447, 0
      %450 = vst.msk [vmem:[#allocation3 + $0x28] sm:$0xf] %vm447, 0
      %451 = vst.msk [vmem:[#allocation3 + $0x4c] sm:$0xf] %vm447, 0
      %452 = vst.msk [vmem:[#allocation3 + $0x50] sm:$0xf] %vm447, 0
      %453 = vst.msk [vmem:[#allocation3 + $0x74] sm:$0xf] %vm447, 0
      %454 = vst.msk [vmem:[#allocation3 + $0x78] sm:$0xf] %vm447, 0
      %455 = vst.msk [vmem:[#allocation3 + $0x9c] sm:$0xf] %vm447, 0
      %v456 = vld [vmem:[%s435] sm:$0xff]
      %v457 = vld [vmem:[%s435 + $0x8] sm:$0xff]
      %v458 = vld [vmem:[%s435 + $0x10] sm:$0xff]
      %v459 = vld [vmem:[%s435 + $0x18] sm:$0xff]
      %v460 = vld [vmem:[%s435 + $0x20] sm:$0xff]
      %v461 = vld [vmem:[%s435 + $0x28] sm:$0xff]
      %v462 = vld [vmem:[%s435 + $0x30] sm:$0xff]
      %v463 = vld [vmem:[%s435 + $0x38] sm:$0xff]
      %v464 = vld [vmem:[%s435 + $0x40] sm:$0xff]
      %v465 = vld [vmem:[%s435 + $0x48] sm:$0xff]
      %v466 = vld [vmem:[%s435 + $0x50] sm:$0xff]
      %v467 = vld [vmem:[%s435 + $0x58] sm:$0xff]
      %v468 = vld [vmem:[%s435 + $0x60] sm:$0xff]
      %v469 = vld [vmem:[%s435 + $0x68] sm:$0xff]
      %v470 = vld [vmem:[%s435 + $0x70] sm:$0xff]
      %v471 = vld [vmem:[%s435 + $0x78] sm:$0xff]
      %v472 = vld [vmem:[%s435 + $0x80] sm:$0xff]
      %v473 = vld [vmem:[%s435 + $0x88] sm:$0xff]
      %v474 = vld [vmem:[%s435 + $0x90] sm:$0xff]
      %v475 = vld [vmem:[%s435 + $0x98] sm:$0xff]
      %v476 = vld [vmem:[%s435 + $0xa0] sm:$0xff]
      %v477 = vld [vmem:[%s435 + $0xa8] sm:$0xff]
      %v478 = vld [vmem:[%s435 + $0xb0] sm:$0xff]
      %v479 = vld [vmem:[%s435 + $0xb8] sm:$0xff]
      %v480 = vld [vmem:[%s435 + $0xc0] sm:$0xff]
      %v481 = vld [vmem:[%s435 + $0xc8] sm:$0xff]
      %v482 = vld [vmem:[%s435 + $0xd0] sm:$0xff]
      %v483 = vld [vmem:[%s435 + $0xd8] sm:$0xff]
      %v484 = vld [vmem:[%s435 + $0xe0] sm:$0xff]
      %v485 = vld [vmem:[%s435 + $0xe8] sm:$0xff]
      %v486 = vld [vmem:[%s435 + $0xf0] sm:$0xff]
      %v487 = vld [vmem:[%s435 + $0xf8] sm:$0xff]
      %v488 = vld [vmem:[%s1] sm:$0x1]
      %v490 = vlaneseq
      %v491 = vshrl.u32 %v490, 7
      %v492 = vsub.s32 0, %v491
      %v493 = vrot.slane %v488, %v492
      %v495 = vmul.f32 %v456, %v493
      %v496 = vmul.f32 %v457, %v493
      %v497 = vmul.f32 %v458, %v493
      %v498 = vmul.f32 %v459, %v493
      %v499 = vmul.f32 %v460, %v493
      %v500 = vmul.f32 %v461, %v493
      %v501 = vmul.f32 %v462, %v493
      %v502 = vmul.f32 %v463, %v493
      %v503 = vmul.f32 %v464, %v493
      %v504 = vmul.f32 %v465, %v493
      %v505 = vmul.f32 %v466, %v493
      %v506 = vmul.f32 %v467, %v493
      %v507 = vmul.f32 %v468, %v493
      %v508 = vmul.f32 %v469, %v493
      %v509 = vmul.f32 %v470, %v493
      %v510 = vmul.f32 %v471, %v493
      %v511 = vmul.f32 %v472, %v493
      %v512 = vmul.f32 %v473, %v493
      %v513 = vmul.f32 %v474, %v493
      %v514 = vmul.f32 %v475, %v493
      %v515 = vmul.f32 %v476, %v493
      %v516 = vmul.f32 %v477, %v493
      %v517 = vmul.f32 %v478, %v493
      %v518 = vmul.f32 %v479, %v493
      %v519 = vmul.f32 %v480, %v493
      %v520 = vmul.f32 %v481, %v493
      %v521 = vmul.f32 %v482, %v493
      %v522 = vmul.f32 %v483, %v493
      %v523 = vmul.f32 %v484, %v493
      %v524 = vmul.f32 %v485, %v493
      %v525 = vmul.f32 %v486, %v493
      %v526 = vmul.f32 %v487, %v493
      %v527 = vld [vmem:[%s2] sm:$0x1]
      %v529 = vlaneseq
      %v530 = vshrl.u32 %v529, 7
      %v531 = vsub.s32 0, %v530
      %v532 = vrot.slane %v527, %v531
      %v534 = vadd.f32 %v495, %v532
      %v535 = vadd.f32 %v496, %v532
      %v536 = vadd.f32 %v497, %v532
      %v537 = vadd.f32 %v498, %v532
      %v538 = vadd.f32 %v499, %v532
      %v539 = vadd.f32 %v500, %v532
      %v540 = vadd.f32 %v501, %v532
      %v541 = vadd.f32 %v502, %v532
      %v542 = vadd.f32 %v503, %v532
      %v543 = vadd.f32 %v504, %v532
      %v544 = vadd.f32 %v505, %v532
      %v545 = vadd.f32 %v506, %v532
      %v546 = vadd.f32 %v507, %v532
      %v547 = vadd.f32 %v508, %v532
      %v548 = vadd.f32 %v509, %v532
      %v549 = vadd.f32 %v510, %v532
      %v550 = vadd.f32 %v511, %v532
      %v551 = vadd.f32 %v512, %v532
      %v552 = vadd.f32 %v513, %v532
      %v553 = vadd.f32 %v514, %v532
      %v554 = vadd.f32 %v515, %v532
      %v555 = vadd.f32 %v516, %v532
      %v556 = vadd.f32 %v517, %v532
      %v557 = vadd.f32 %v518, %v532
      %v558 = vadd.f32 %v519, %v532
      %v559 = vadd.f32 %v520, %v532
      %v560 = vadd.f32 %v521, %v532
      %v561 = vadd.f32 %v522, %v532
      %v562 = vadd.f32 %v523, %v532
      %v563 = vadd.f32 %v524, %v532
      %v564 = vadd.f32 %v525, %v532
      %v565 = vadd.f32 %v526, %v532
      %v566 = vpack.c.bf16 %v535, %v534
      %v567 = vpack.c.bf16 %v537, %v536
      %v568 = vpack.c.bf16 %v539, %v538
      %v569 = vpack.c.bf16 %v541, %v540
      %v570 = vpack.c.bf16 %v543, %v542
      %v571 = vpack.c.bf16 %v545, %v544
      %v572 = vpack.c.bf16 %v547, %v546
      %v573 = vpack.c.bf16 %v549, %v548
      %v574 = vpack.c.bf16 %v551, %v550
      %v575 = vpack.c.bf16 %v553, %v552
      %v576 = vpack.c.bf16 %v555, %v554
      %v577 = vpack.c.bf16 %v557, %v556
      %v578 = vpack.c.bf16 %v559, %v558
      %v579 = vpack.c.bf16 %v561, %v560
      %v580 = vpack.c.bf16 %v563, %v562
      %v581 = vpack.c.bf16 %v565, %v564
      %v598 = vunpack.c.l.b16 %v566
      %v599 = vunpack.c.h.b16 %v566
      %v600 = vunpack.c.l.b16 %v567
      %v601 = vunpack.c.h.b16 %v567
      %v602 = vunpack.c.l.b16 %v568
      %v603 = vunpack.c.h.b16 %v568
      %v604 = vunpack.c.l.b16 %v569
      %v605 = vunpack.c.h.b16 %v569
      %v606 = vunpack.c.l.b16 %v570
      %v607 = vunpack.c.h.b16 %v570
      %v608 = vunpack.c.l.b16 %v571
      %v609 = vunpack.c.h.b16 %v571
      %v610 = vunpack.c.l.b16 %v572
      %v611 = vunpack.c.h.b16 %v572
      %v612 = vunpack.c.l.b16 %v573
      %v613 = vunpack.c.h.b16 %v573
      %v614 = vunpack.c.l.b16 %v574
      %v615 = vunpack.c.h.b16 %v574
      %v616 = vunpack.c.l.b16 %v575
      %v617 = vunpack.c.h.b16 %v575
      %v618 = vunpack.c.l.b16 %v576
      %v619 = vunpack.c.h.b16 %v576
      %v620 = vunpack.c.l.b16 %v577
      %v621 = vunpack.c.h.b16 %v577
      %v622 = vunpack.c.l.b16 %v578
      %v623 = vunpack.c.h.b16 %v578
      %v624 = vunpack.c.l.b16 %v579
      %v625 = vunpack.c.h.b16 %v579
      %v626 = vunpack.c.l.b16 %v580
      %v627 = vunpack.c.h.b16 %v580
      %v628 = vunpack.c.l.b16 %v581
      %v629 = vunpack.c.h.b16 %v581
      %v630 = vpack.c.b16 %v598, %v598
      %v631 = vpack.c.b16 %v599, %v599
      %v632 = vpack.c.b16 %v600, %v600
      %v633 = vpack.c.b16 %v601, %v601
      %v634 = vpack.c.b16 %v602, %v602
      %v635 = vpack.c.b16 %v603, %v603
      %v636 = vpack.c.b16 %v604, %v604
      %v637 = vpack.c.b16 %v605, %v605
      %v638 = vpack.c.b16 %v606, %v606
      %v639 = vpack.c.b16 %v607, %v607
      %v640 = vpack.c.b16 %v608, %v608
      %v641 = vpack.c.b16 %v609, %v609
      %v642 = vpack.c.b16 %v610, %v610
      %v643 = vpack.c.b16 %v611, %v611
      %v644 = vpack.c.b16 %v612, %v612
      %v645 = vpack.c.b16 %v613, %v613
      %v646 = vpack.c.b16 %v614, %v614
      %v647 = vpack.c.b16 %v615, %v615
      %v648 = vpack.c.b16 %v616, %v616
      %v649 = vpack.c.b16 %v617, %v617
      %v650 = vpack.c.b16 %v618, %v618
      %v651 = vpack.c.b16 %v619, %v619
      %v652 = vpack.c.b16 %v620, %v620
      %v653 = vpack.c.b16 %v621, %v621
      %v654 = vpack.c.b16 %v622, %v622
      %v655 = vpack.c.b16 %v623, %v623
      %v656 = vpack.c.b16 %v624, %v624
      %v657 = vpack.c.b16 %v625, %v625
      %v658 = vpack.c.b16 %v626, %v626
      %v659 = vpack.c.b16 %v627, %v627
      %v660 = vpack.c.b16 %v628, %v628
      %v661 = vpack.c.b16 %v629, %v629
      %694 = vst.msk [vmem:[#allocation2 + $0x8] sm:$0xf] %vm442, %v630
      %695 = vst.msk [vmem:[#allocation2 + $0xc] sm:$0xf] %vm442, %v631
      %696 = vst.msk [vmem:[#allocation2 + $0x10] sm:$0xf] %vm442, %v632
      %697 = vst.msk [vmem:[#allocation2 + $0x14] sm:$0xf] %vm442, %v633
      %698 = vst.msk [vmem:[#allocation2 + $0x18] sm:$0xf] %vm442, %v634
      %699 = vst.msk [vmem:[#allocation2 + $0x1c] sm:$0xf] %vm442, %v635
      %700 = vst.msk [vmem:[#allocation2 + $0x20] sm:$0xf] %vm442, %v636
      %701 = vst.msk [vmem:[#allocation2 + $0x24] sm:$0xf] %vm442, %v637
      %702 = vst.msk [vmem:[#allocation2 + $0x28] sm:$0xf] %vm442, %v638
      %703 = vst.msk [vmem:[#allocation2 + $0x2c] sm:$0xf] %vm442, %v639
      %704 = vst.msk [vmem:[#allocation2 + $0x30] sm:$0xf] %vm442, %v640
      %705 = vst.msk [vmem:[#allocation2 + $0x34] sm:$0xf] %vm442, %v641
      %706 = vst.msk [vmem:[#allocation2 + $0x38] sm:$0xf] %vm442, %v642
      %707 = vst.msk [vmem:[#allocation2 + $0x3c] sm:$0xf] %vm442, %v643
      %708 = vst.msk [vmem:[#allocation2 + $0x40] sm:$0xf] %vm442, %v644
      %709 = vst.msk [vmem:[#allocation2 + $0x44] sm:$0xf] %vm442, %v645
      %710 = vst.msk [vmem:[#allocation2 + $0x48] sm:$0xf] %vm442, %v646
      %711 = vst.msk [vmem:[#allocation2 + $0x4c] sm:$0xf] %vm442, %v647
      %712 = vst.msk [vmem:[#allocation2 + $0x50] sm:$0xf] %vm442, %v648
      %713 = vst.msk [vmem:[#allocation2 + $0x54] sm:$0xf] %vm442, %v649
      %714 = vst.msk [vmem:[#allocation2 + $0x58] sm:$0xf] %vm442, %v650
      %715 = vst.msk [vmem:[#allocation2 + $0x5c] sm:$0xf] %vm442, %v651
      %716 = vst.msk [vmem:[#allocation2 + $0x60] sm:$0xf] %vm442, %v652
      %717 = vst.msk [vmem:[#allocation2 + $0x64] sm:$0xf] %vm442, %v653
      %718 = vst.msk [vmem:[#allocation2 + $0x68] sm:$0xf] %vm442, %v654
      %719 = vst.msk [vmem:[#allocation2 + $0x6c] sm:$0xf] %vm442, %v655
      %720 = vst.msk [vmem:[#allocation2 + $0x70] sm:$0xf] %vm442, %v656
      %721 = vst.msk [vmem:[#allocation2 + $0x74] sm:$0xf] %vm442, %v657
      %722 = vst.msk [vmem:[#allocation2 + $0x78] sm:$0xf] %vm442, %v658
      %723 = vst.msk [vmem:[#allocation2 + $0x7c] sm:$0xf] %vm442, %v659
      %724 = vst.msk [vmem:[#allocation2 + $0x80] sm:$0xf] %vm442, %v660
      %725 = vst.msk [vmem:[#allocation2 + $0x84] sm:$0xf] %vm442, %v661
      %v726 = vlaneseq
      %v727 = vshrl.u32 %v726, 7
      %v728 = vadd.s32 %v727, 8
      %v729 = vadd.s32 %v727, 16
      %v730 = vadd.s32 %v727, 24
      %v731 = vadd.s32 %v727, 32
      %v732 = vadd.s32 %v727, 40
      %v733 = vadd.s32 %v727, 48
      %v734 = vadd.s32 %v727, 56
      %v735 = vadd.s32 %v727, 64
      %v736 = vadd.s32 %v727, 72
      %v737 = vadd.s32 %v727, 80
      %v738 = vadd.s32 %v727, 88
      %v739 = vadd.s32 %v727, 96
      %v740 = vadd.s32 %v727, 104
      %v741 = vadd.s32 %v727, 112
      %v742 = vadd.s32 %v727, 120
      %v743 = vadd.s32 %v727, 128
      %v744 = vadd.s32 %v727, 136
      %v745 = vadd.s32 %v727, 144
      %v746 = vadd.s32 %v727, 152
      %v747 = vadd.s32 %v727, 160
      %v748 = vadd.s32 %v727, 168
      %v749 = vadd.s32 %v727, 176
      %v750 = vadd.s32 %v727, 184
      %v751 = vadd.s32 %v727, 192
      %v752 = vadd.s32 %v727, 200
      %v753 = vadd.s32 %v727, 208
      %v754 = vadd.s32 %v727, 216
      %v755 = vadd.s32 %v727, 224
      %v756 = vadd.s32 %v727, 232
      %v757 = vadd.s32 %v727, 240
      %v758 = vadd.s32 %v727, 248
      %vm759 = vcmp.lt.s32.totalorder %v727, 0
      %v760 = vsub.s32 0, %v727
      %v761 = vsel %vm759, %v760, %v727
      %v762 = vshrl.u32 %v761, 4
      %v763 = vand.u32 %v761, 15
      %v764 = vsub.s32 0, %v763
      %v765 = vsel %vm759, %v764, %v763
      %vm766 = vcmp.lt.s32.totalorder %v728, 0
      %v767 = vsub.s32 0, %v728
      %v768 = vsel %vm766, %v767, %v728
      %v769 = vshrl.u32 %v768, 4
      %v770 = vand.u32 %v768, 15
      %v771 = vsub.s32 0, %v770
      %v772 = vsel %vm766, %v771, %v770
      %vm773 = vcmp.lt.s32.totalorder %v729, 0
      %v774 = vsub.s32 0, %v729
      %v775 = vsel %vm773, %v774, %v729
      %v776 = vshrl.u32 %v775, 4
      %v777 = vand.u32 %v775, 15
      %v778 = vsub.s32 0, %v777
      %v779 = vsel %vm773, %v778, %v777
      %vm780 = vcmp.lt.s32.totalorder %v730, 0
      %v781 = vsub.s32 0, %v730
      %v782 = vsel %vm780, %v781, %v730
      %v783 = vshrl.u32 %v782, 4
      %v784 = vand.u32 %v782, 15
      %v785 = vsub.s32 0, %v784
      %v786 = vsel %vm780, %v785, %v784
      %vm787 = vcmp.lt.s32.totalorder %v731, 0
      %v788 = vsub.s32 0, %v731
      %v789 = vsel %vm787, %v788, %v731
      %v790 = vshrl.u32 %v789, 4
      %v791 = vand.u32 %v789, 15
      %v792 = vsub.s32 0, %v791
      %v793 = vsel %vm787, %v792, %v791
      %vm794 = vcmp.lt.s32.totalorder %v732, 0
      %v795 = vsub.s32 0, %v732
      %v796 = vsel %vm794, %v795, %v732
      %v797 = vshrl.u32 %v796, 4
      %v798 = vand.u32 %v796, 15
      %v799 = vsub.s32 0, %v798
      %v800 = vsel %vm794, %v799, %v798
      %vm801 = vcmp.lt.s32.totalorder %v733, 0
      %v802 = vsub.s32 0, %v733
      %v803 = vsel %vm801, %v802, %v733
      %v804 = vshrl.u32 %v803, 4
      %v805 = vand.u32 %v803, 15
      %v806 = vsub.s32 0, %v805
      %v807 = vsel %vm801, %v806, %v805
      %vm808 = vcmp.lt.s32.totalorder %v734, 0
      %v809 = vsub.s32 0, %v734
      %v810 = vsel %vm808, %v809, %v734
      %v811 = vshrl.u32 %v810, 4
      %v812 = vand.u32 %v810, 15
      %v813 = vsub.s32 0, %v812
      %v814 = vsel %vm808, %v813, %v812
      %vm815 = vcmp.lt.s32.totalorder %v735, 0
      %v816 = vsub.s32 0, %v735
      %v817 = vsel %vm815, %v816, %v735
      %v818 = vshrl.u32 %v817, 4
      %v819 = vand.u32 %v817, 15
      %v820 = vsub.s32 0, %v819
      %v821 = vsel %vm815, %v820, %v819
      %vm822 = vcmp.lt.s32.totalorder %v736, 0
      %v823 = vsub.s32 0, %v736
      %v824 = vsel %vm822, %v823, %v736
      %v825 = vshrl.u32 %v824, 4
      %v826 = vand.u32 %v824, 15
      %v827 = vsub.s32 0, %v826
      %v828 = vsel %vm822, %v827, %v826
      %vm829 = vcmp.lt.s32.totalorder %v737, 0
      %v830 = vsub.s32 0, %v737
      %v831 = vsel %vm829, %v830, %v737
      %v832 = vshrl.u32 %v831, 4
      %v833 = vand.u32 %v831, 15
      %v834 = vsub.s32 0, %v833
      %v835 = vsel %vm829, %v834, %v833
      %vm836 = vcmp.lt.s32.totalorder %v738, 0
      %v837 = vsub.s32 0, %v738
      %v838 = vsel %vm836, %v837, %v738
      %v839 = vshrl.u32 %v838, 4
      %v840 = vand.u32 %v838, 15
      %v841 = vsub.s32 0, %v840
      %v842 = vsel %vm836, %v841, %v840
      %vm843 = vcmp.lt.s32.totalorder %v739, 0
      %v844 = vsub.s32 0, %v739
      %v845 = vsel %vm843, %v844, %v739
      %v846 = vshrl.u32 %v845, 4
      %v847 = vand.u32 %v845, 15
      %v848 = vsub.s32 0, %v847
      %v849 = vsel %vm843, %v848, %v847
      %vm850 = vcmp.lt.s32.totalorder %v740, 0
      %v851 = vsub.s32 0, %v740
      %v852 = vsel %vm850, %v851, %v740
      %v853 = vshrl.u32 %v852, 4
      %v854 = vand.u32 %v852, 15
      %v855 = vsub.s32 0, %v854
      %v856 = vsel %vm850, %v855, %v854
      %vm857 = vcmp.lt.s32.totalorder %v741, 0
      %v858 = vsub.s32 0, %v741
      %v859 = vsel %vm857, %v858, %v741
      %v860 = vshrl.u32 %v859, 4
      %v861 = vand.u32 %v859, 15
      %v862 = vsub.s32 0, %v861
      %v863 = vsel %vm857, %v862, %v861
      %vm864 = vcmp.lt.s32.totalorder %v742, 0
      %v865 = vsub.s32 0, %v742
      %v866 = vsel %vm864, %v865, %v742
      %v867 = vshrl.u32 %v866, 4
      %v868 = vand.u32 %v866, 15
      %v869 = vsub.s32 0, %v868
      %v870 = vsel %vm864, %v869, %v868
      %vm871 = vcmp.lt.s32.totalorder %v743, 0
      %v872 = vsub.s32 0, %v743
      %v873 = vsel %vm871, %v872, %v743
      %v874 = vshrl.u32 %v873, 4
      %v875 = vand.u32 %v873, 15
      %v876 = vsub.s32 0, %v875
      %v877 = vsel %vm871, %v876, %v875
      %vm878 = vcmp.lt.s32.totalorder %v744, 0
      %v879 = vsub.s32 0, %v744
      %v880 = vsel %vm878, %v879, %v744
      %v881 = vshrl.u32 %v880, 4
      %v882 = vand.u32 %v880, 15
      %v883 = vsub.s32 0, %v882
      %v884 = vsel %vm878, %v883, %v882
      %vm885 = vcmp.lt.s32.totalorder %v745, 0
      %v886 = vsub.s32 0, %v745
      %v887 = vsel %vm885, %v886, %v745
      %v888 = vshrl.u32 %v887, 4
      %v889 = vand.u32 %v887, 15
      %v890 = vsub.s32 0, %v889
      %v891 = vsel %vm885, %v890, %v889
      %vm892 = vcmp.lt.s32.totalorder %v746, 0
      %v893 = vsub.s32 0, %v746
      %v894 = vsel %vm892, %v893, %v746
      %v895 = vshrl.u32 %v894, 4
      %v896 = vand.u32 %v894, 15
      %v897 = vsub.s32 0, %v896
      %v898 = vsel %vm892, %v897, %v896
      %vm899 = vcmp.lt.s32.totalorder %v747, 0
      %v900 = vsub.s32 0, %v747
      %v901 = vsel %vm899, %v900, %v747
      %v902 = vshrl.u32 %v901, 4
      %v903 = vand.u32 %v901, 15
      %v904 = vsub.s32 0, %v903
      %v905 = vsel %vm899, %v904, %v903
      %vm906 = vcmp.lt.s32.totalorder %v748, 0
      %v907 = vsub.s32 0, %v748
      %v908 = vsel %vm906, %v907, %v748
      %v909 = vshrl.u32 %v908, 4
      %v910 = vand.u32 %v908, 15
      %v911 = vsub.s32 0, %v910
      %v912 = vsel %vm906, %v911, %v910
      %vm913 = vcmp.lt.s32.totalorder %v749, 0
      %v914 = vsub.s32 0, %v749
      %v915 = vsel %vm913, %v914, %v749
      %v916 = vshrl.u32 %v915, 4
      %v917 = vand.u32 %v915, 15
      %v918 = vsub.s32 0, %v917
      %v919 = vsel %vm913, %v918, %v917
      %vm920 = vcmp.lt.s32.totalorder %v750, 0
      %v921 = vsub.s32 0, %v750
      %v922 = vsel %vm920, %v921, %v750
      %v923 = vshrl.u32 %v922, 4
      %v924 = vand.u32 %v922, 15
      %v925 = vsub.s32 0, %v924
      %v926 = vsel %vm920, %v925, %v924
      %vm927 = vcmp.lt.s32.totalorder %v751, 0
      %v928 = vsub.s32 0, %v751
      %v929 = vsel %vm927, %v928, %v751
      %v930 = vshrl.u32 %v929, 4
      %v931 = vand.u32 %v929, 15
      %v932 = vsub.s32 0, %v931
      %v933 = vsel %vm927, %v932, %v931
      %vm934 = vcmp.lt.s32.totalorder %v752, 0
      %v935 = vsub.s32 0, %v752
      %v936 = vsel %vm934, %v935, %v752
      %v937 = vshrl.u32 %v936, 4
      %v938 = vand.u32 %v936, 15
      %v939 = vsub.s32 0, %v938
      %v940 = vsel %vm934, %v939, %v938
      %vm941 = vcmp.lt.s32.totalorder %v753, 0
      %v942 = vsub.s32 0, %v753
      %v943 = vsel %vm941, %v942, %v753
      %v944 = vshrl.u32 %v943, 4
      %v945 = vand.u32 %v943, 15
      %v946 = vsub.s32 0, %v945
      %v947 = vsel %vm941, %v946, %v945
      %vm948 = vcmp.lt.s32.totalorder %v754, 0
      %v949 = vsub.s32 0, %v754
      %v950 = vsel %vm948, %v949, %v754
      %v951 = vshrl.u32 %v950, 4
      %v952 = vand.u32 %v950, 15
      %v953 = vsub.s32 0, %v952
      %v954 = vsel %vm948, %v953, %v952
      %vm955 = vcmp.lt.s32.totalorder %v755, 0
      %v956 = vsub.s32 0, %v755
      %v957 = vsel %vm955, %v956, %v755
      %v958 = vshrl.u32 %v957, 4
      %v959 = vand.u32 %v957, 15
      %v960 = vsub.s32 0, %v959
      %v961 = vsel %vm955, %v960, %v959
      %vm962 = vcmp.lt.s32.totalorder %v756, 0
      %v963 = vsub.s32 0, %v756
      %v964 = vsel %vm962, %v963, %v756
      %v965 = vshrl.u32 %v964, 4
      %v966 = vand.u32 %v964, 15
      %v967 = vsub.s32 0, %v966
      %v968 = vsel %vm962, %v967, %v966
      %vm969 = vcmp.lt.s32.totalorder %v757, 0
      %v970 = vsub.s32 0, %v757
      %v971 = vsel %vm969, %v970, %v757
      %v972 = vshrl.u32 %v971, 4
      %v973 = vand.u32 %v971, 15
      %v974 = vsub.s32 0, %v973
      %v975 = vsel %vm969, %v974, %v973
      %vm976 = vcmp.lt.s32.totalorder %v758, 0
      %v977 = vsub.s32 0, %v758
      %v978 = vsel %vm976, %v977, %v758
      %v979 = vshrl.u32 %v978, 4
      %v980 = vand.u32 %v978, 15
      %v981 = vsub.s32 0, %v980
      %v982 = vsel %vm976, %v981, %v980
      %vm983 = vcmp.ne.s32.totalorder %v765, 0
      %vm984 = vcmp.ne.s32.totalorder %v772, 0
      %vm985 = vcmp.ne.s32.totalorder %v779, 0
      %vm986 = vcmp.ne.s32.totalorder %v786, 0
      %vm987 = vcmp.ne.s32.totalorder %v793, 0
      %vm988 = vcmp.ne.s32.totalorder %v800, 0
      %vm989 = vcmp.ne.s32.totalorder %v807, 0
      %vm990 = vcmp.ne.s32.totalorder %v814, 0
      %vm991 = vcmp.ne.s32.totalorder %v821, 0
      %vm992 = vcmp.ne.s32.totalorder %v828, 0
      %vm993 = vcmp.ne.s32.totalorder %v835, 0
      %vm994 = vcmp.ne.s32.totalorder %v842, 0
      %vm995 = vcmp.ne.s32.totalorder %v849, 0
      %vm996 = vcmp.ne.s32.totalorder %v856, 0
      %vm997 = vcmp.ne.s32.totalorder %v863, 0
      %vm998 = vcmp.ne.s32.totalorder %v870, 0
      %vm999 = vcmp.ne.s32.totalorder %v877, 0
      %vm1000 = vcmp.ne.s32.totalorder %v884, 0
      %vm1001 = vcmp.ne.s32.totalorder %v891, 0
      %vm1002 = vcmp.ne.s32.totalorder %v898, 0
      %vm1003 = vcmp.ne.s32.totalorder %v905, 0
      %vm1004 = vcmp.ne.s32.totalorder %v912, 0
      %vm1005 = vcmp.ne.s32.totalorder %v919, 0
      %vm1006 = vcmp.ne.s32.totalorder %v926, 0
      %vm1007 = vcmp.ne.s32.totalorder %v933, 0
      %vm1008 = vcmp.ne.s32.totalorder %v940, 0
      %vm1009 = vcmp.ne.s32.totalorder %v947, 0
      %vm1010 = vcmp.ne.s32.totalorder %v954, 0
      %vm1011 = vcmp.ne.s32.totalorder %v961, 0
      %vm1012 = vcmp.ne.s32.totalorder %v968, 0
      %vm1013 = vcmp.ne.s32.totalorder %v975, 0
      %vm1014 = vcmp.ne.s32.totalorder %v982, 0
      %vm1015 = vcmp.lt.s32.totalorder %v765, 0
      %vm1016 = vcmp.lt.s32.totalorder %v772, 0
      %vm1017 = vcmp.lt.s32.totalorder %v779, 0
      %vm1018 = vcmp.lt.s32.totalorder %v786, 0
      %vm1019 = vcmp.lt.s32.totalorder %v793, 0
      %vm1020 = vcmp.lt.s32.totalorder %v800, 0
      %vm1021 = vcmp.lt.s32.totalorder %v807, 0
      %vm1022 = vcmp.lt.s32.totalorder %v814, 0
      %vm1023 = vcmp.lt.s32.totalorder %v821, 0
      %vm1024 = vcmp.lt.s32.totalorder %v828, 0
      %vm1025 = vcmp.lt.s32.totalorder %v835, 0
      %vm1026 = vcmp.lt.s32.totalorder %v842, 0
      %vm1027 = vcmp.lt.s32.totalorder %v849, 0
      %vm1028 = vcmp.lt.s32.totalorder %v856, 0
      %vm1029 = vcmp.lt.s32.totalorder %v863, 0
      %vm1030 = vcmp.lt.s32.totalorder %v870, 0
      %vm1031 = vcmp.lt.s32.totalorder %v877, 0
      %vm1032 = vcmp.lt.s32.totalorder %v884, 0
      %vm1033 = vcmp.lt.s32.totalorder %v891, 0
      %vm1034 = vcmp.lt.s32.totalorder %v898, 0
      %vm1035 = vcmp.lt.s32.totalorder %v905, 0
      %vm1036 = vcmp.lt.s32.totalorder %v912, 0
      %vm1037 = vcmp.lt.s32.totalorder %v919, 0
      %vm1038 = vcmp.lt.s32.totalorder %v926, 0
      %vm1039 = vcmp.lt.s32.totalorder %v933, 0
      %vm1040 = vcmp.lt.s32.totalorder %v940, 0
      %vm1041 = vcmp.lt.s32.totalorder %v947, 0
      %vm1042 = vcmp.lt.s32.totalorder %v954, 0
      %vm1043 = vcmp.lt.s32.totalorder %v961, 0
      %vm1044 = vcmp.lt.s32.totalorder %v968, 0
      %vm1045 = vcmp.lt.s32.totalorder %v975, 0
      %vm1046 = vcmp.lt.s32.totalorder %v982, 0
      %vm1047 = vmand %vm1015, %vm983
      %vm1048 = vmand %vm1016, %vm984
      %vm1049 = vmand %vm1017, %vm985
      %vm1050 = vmand %vm1018, %vm986
      %vm1051 = vmand %vm1019, %vm987
      %vm1052 = vmand %vm1020, %vm988
      %vm1053 = vmand %vm1021, %vm989
      %vm1054 = vmand %vm1022, %vm990
      %vm1055 = vmand %vm1023, %vm991
      %vm1056 = vmand %vm1024, %vm992
      %vm1057 = vmand %vm1025, %vm993
      %vm1058 = vmand %vm1026, %vm994
      %vm1059 = vmand %vm1027, %vm995
      %vm1060 = vmand %vm1028, %vm996
      %vm1061 = vmand %vm1029, %vm997
      %vm1062 = vmand %vm1030, %vm998
      %vm1063 = vmand %vm1031, %vm999
      %vm1064 = vmand %vm1032, %vm1000
      %vm1065 = vmand %vm1033, %vm1001
      %vm1066 = vmand %vm1034, %vm1002
      %vm1067 = vmand %vm1035, %vm1003
      %vm1068 = vmand %vm1036, %vm1004
      %vm1069 = vmand %vm1037, %vm1005
      %vm1070 = vmand %vm1038, %vm1006
      %vm1071 = vmand %vm1039, %vm1007
      %vm1072 = vmand %vm1040, %vm1008
      %vm1073 = vmand %vm1041, %vm1009
      %vm1074 = vmand %vm1042, %vm1010
      %vm1075 = vmand %vm1043, %vm1011
      %vm1076 = vmand %vm1044, %vm1012
      %vm1077 = vmand %vm1045, %vm1013
      %vm1078 = vmand %vm1046, %vm1014
      %v1079 = vadd.s32 %v765, 16
      %v1080 = vadd.s32 %v772, 16
      %v1081 = vadd.s32 %v779, 16
      %v1082 = vadd.s32 %v786, 16
      %v1083 = vadd.s32 %v793, 16
      %v1084 = vadd.s32 %v800, 16
      %v1085 = vadd.s32 %v807, 16
      %v1086 = vadd.s32 %v814, 16
      %v1087 = vadd.s32 %v821, 16
      %v1088 = vadd.s32 %v828, 16
      %v1089 = vadd.s32 %v835, 16
      %v1090 = vadd.s32 %v842, 16
      %v1091 = vadd.s32 %v849, 16
      %v1092 = vadd.s32 %v856, 16
      %v1093 = vadd.s32 %v863, 16
      %v1094 = vadd.s32 %v870, 16
      %v1095 = vadd.s32 %v877, 16
      %v1096 = vadd.s32 %v884, 16
      %v1097 = vadd.s32 %v891, 16
      %v1098 = vadd.s32 %v898, 16
      %v1099 = vadd.s32 %v905, 16
      %v1100 = vadd.s32 %v912, 16
      %v1101 = vadd.s32 %v919, 16
      %v1102 = vadd.s32 %v926, 16
      %v1103 = vadd.s32 %v933, 16
      %v1104 = vadd.s32 %v940, 16
      %v1105 = vadd.s32 %v947, 16
      %v1106 = vadd.s32 %v954, 16
      %v1107 = vadd.s32 %v961, 16
      %v1108 = vadd.s32 %v968, 16
      %v1109 = vadd.s32 %v975, 16
      %v1110 = vadd.s32 %v982, 16
      %v1111 = vsel %vm1047, %v1079, %v765
      %v1112 = vsel %vm1048, %v1080, %v772
      %v1113 = vsel %vm1049, %v1081, %v779
      %v1114 = vsel %vm1050, %v1082, %v786
      %v1115 = vsel %vm1051, %v1083, %v793
      %v1116 = vsel %vm1052, %v1084, %v800
      %v1117 = vsel %vm1053, %v1085, %v807
      %v1118 = vsel %vm1054, %v1086, %v814
      %v1119 = vsel %vm1055, %v1087, %v821
      %v1120 = vsel %vm1056, %v1088, %v828
      %v1121 = vsel %vm1057, %v1089, %v835
      %v1122 = vsel %vm1058, %v1090, %v842
      %v1123 = vsel %vm1059, %v1091, %v849
      %v1124 = vsel %vm1060, %v1092, %v856
      %v1125 = vsel %vm1061, %v1093, %v863
      %v1126 = vsel %vm1062, %v1094, %v870
      %v1127 = vsel %vm1063, %v1095, %v877
      %v1128 = vsel %vm1064, %v1096, %v884
      %v1129 = vsel %vm1065, %v1097, %v891
      %v1130 = vsel %vm1066, %v1098, %v898
      %v1131 = vsel %vm1067, %v1099, %v905
      %v1132 = vsel %vm1068, %v1100, %v912
      %v1133 = vsel %vm1069, %v1101, %v919
      %v1134 = vsel %vm1070, %v1102, %v926
      %v1135 = vsel %vm1071, %v1103, %v933
      %v1136 = vsel %vm1072, %v1104, %v940
      %v1137 = vsel %vm1073, %v1105, %v947
      %v1138 = vsel %vm1074, %v1106, %v954
      %v1139 = vsel %vm1075, %v1107, %v961
      %v1140 = vsel %vm1076, %v1108, %v968
      %v1141 = vsel %vm1077, %v1109, %v975
      %v1142 = vsel %vm1078, %v1110, %v982
      %v1143 = vld [vmem:[#allocation2] sm:$0xf]
      %v1144 = vld [vmem:[#allocation2 + $0x4] sm:$0xf]
      %v1145 = vld [vmem:[#allocation2 + $0x8] sm:$0xf]
      %v1146 = vld [vmem:[#allocation2 + $0xc] sm:$0xf]
      %v1147 = vld [vmem:[#allocation2 + $0x10] sm:$0xf]
      %v1148 = vld [vmem:[#allocation2 + $0x14] sm:$0xf]
      %v1149 = vld [vmem:[#allocation2 + $0x18] sm:$0xf]
      %v1150 = vld [vmem:[#allocation2 + $0x1c] sm:$0xf]
      %v1151 = vld [vmem:[#allocation2 + $0x20] sm:$0xf]
      %v1152 = vld [vmem:[#allocation2 + $0x24] sm:$0xf]
      %v1153 = vld [vmem:[#allocation2 + $0x28] sm:$0xf]
      %v1154 = vld [vmem:[#allocation2 + $0x2c] sm:$0xf]
      %v1155 = vld [vmem:[#allocation2 + $0x30] sm:$0xf]
      %v1156 = vld [vmem:[#allocation2 + $0x34] sm:$0xf]
      %v1157 = vld [vmem:[#allocation2 + $0x38] sm:$0xf]
      %v1158 = vld [vmem:[#allocation2 + $0x3c] sm:$0xf]
      %v1159 = vld [vmem:[#allocation2 + $0x40] sm:$0xf]
      %v1160 = vld [vmem:[#allocation2 + $0x44] sm:$0xf]
      %v1161 = vld [vmem:[#allocation2 + $0x48] sm:$0xf]
      %v1162 = vld [vmem:[#allocation2 + $0x4c] sm:$0xf]
      %v1163 = vld [vmem:[#allocation2 + $0x50] sm:$0xf]
      %v1164 = vld [vmem:[#allocation2 + $0x54] sm:$0xf]
      %v1165 = vld [vmem:[#allocation2 + $0x58] sm:$0xf]
      %v1166 = vld [vmem:[#allocation2 + $0x5c] sm:$0xf]
      %v1167 = vld [vmem:[#allocation2 + $0x60] sm:$0xf]
      %v1168 = vld [vmem:[#allocation2 + $0x64] sm:$0xf]
      %v1169 = vld [vmem:[#allocation2 + $0x68] sm:$0xf]
      %v1170 = vld [vmem:[#allocation2 + $0x6c] sm:$0xf]
      %v1171 = vld [vmem:[#allocation2 + $0x70] sm:$0xf]
      %v1172 = vld [vmem:[#allocation2 + $0x74] sm:$0xf]
      %v1173 = vld [vmem:[#allocation2 + $0x78] sm:$0xf]
      %v1174 = vld [vmem:[#allocation2 + $0x7c] sm:$0xf]
      %v1175 = vunpack.c.l.bf16 %v1143
      %v1176 = vunpack.c.l.bf16 %v1144
      %v1177 = vunpack.c.l.bf16 %v1145
      %v1178 = vunpack.c.l.bf16 %v1146
      %v1179 = vunpack.c.l.bf16 %v1147
      %v1180 = vunpack.c.l.bf16 %v1148
      %v1181 = vunpack.c.l.bf16 %v1149
      %v1182 = vunpack.c.l.bf16 %v1150
      %v1183 = vunpack.c.l.bf16 %v1151
      %v1184 = vunpack.c.l.bf16 %v1152
      %v1185 = vunpack.c.l.bf16 %v1153
      %v1186 = vunpack.c.l.bf16 %v1154
      %v1187 = vunpack.c.l.bf16 %v1155
      %v1188 = vunpack.c.l.bf16 %v1156
      %v1189 = vunpack.c.l.bf16 %v1157
      %v1190 = vunpack.c.l.bf16 %v1158
      %v1191 = vunpack.c.l.bf16 %v1159
      %v1192 = vunpack.c.l.bf16 %v1160
      %v1193 = vunpack.c.l.bf16 %v1161
      %v1194 = vunpack.c.l.bf16 %v1162
      %v1195 = vunpack.c.l.bf16 %v1163
      %v1196 = vunpack.c.l.bf16 %v1164
      %v1197 = vunpack.c.l.bf16 %v1165
      %v1198 = vunpack.c.l.bf16 %v1166
      %v1199 = vunpack.c.l.bf16 %v1167
      %v1200 = vunpack.c.l.bf16 %v1168
      %v1201 = vunpack.c.l.bf16 %v1169
      %v1202 = vunpack.c.l.bf16 %v1170
      %v1203 = vunpack.c.l.bf16 %v1171
      %v1204 = vunpack.c.l.bf16 %v1172
      %v1205 = vunpack.c.l.bf16 %v1173
      %v1206 = vunpack.c.l.bf16 %v1174
      %vm1207 = vcmp.ne.s32.totalorder %v1111, 0
      %vm1208 = vcmp.ne.s32.totalorder %v1112, 0
      %vm1209 = vcmp.ne.s32.totalorder %v1113, 0
      %vm1210 = vcmp.ne.s32.totalorder %v1114, 0
      %vm1211 = vcmp.ne.s32.totalorder %v1115, 0
      %vm1212 = vcmp.ne.s32.totalorder %v1116, 0
      %vm1213 = vcmp.ne.s32.totalorder %v1117, 0
      %vm1214 = vcmp.ne.s32.totalorder %v1118, 0
      %vm1215 = vcmp.ne.s32.totalorder %v1119, 0
      %vm1216 = vcmp.ne.s32.totalorder %v1120, 0
      %vm1217 = vcmp.ne.s32.totalorder %v1121, 0
      %vm1218 = vcmp.ne.s32.totalorder %v1122, 0
      %vm1219 = vcmp.ne.s32.totalorder %v1123, 0
      %vm1220 = vcmp.ne.s32.totalorder %v1124, 0
      %vm1221 = vcmp.ne.s32.totalorder %v1125, 0
      %vm1222 = vcmp.ne.s32.totalorder %v1126, 0
      %vm1223 = vcmp.ne.s32.totalorder %v1127, 0
      %vm1224 = vcmp.ne.s32.totalorder %v1128, 0
      %vm1225 = vcmp.ne.s32.totalorder %v1129, 0
      %vm1226 = vcmp.ne.s32.totalorder %v1130, 0
      %vm1227 = vcmp.ne.s32.totalorder %v1131, 0
      %vm1228 = vcmp.ne.s32.totalorder %v1132, 0
      %vm1229 = vcmp.ne.s32.totalorder %v1133, 0
      %vm1230 = vcmp.ne.s32.totalorder %v1134, 0
      %vm1231 = vcmp.ne.s32.totalorder %v1135, 0
      %vm1232 = vcmp.ne.s32.totalorder %v1136, 0
      %vm1233 = vcmp.ne.s32.totalorder %v1137, 0
      %vm1234 = vcmp.ne.s32.totalorder %v1138, 0
      %vm1235 = vcmp.ne.s32.totalorder %v1139, 0
      %vm1236 = vcmp.ne.s32.totalorder %v1140, 0
      %vm1237 = vcmp.ne.s32.totalorder %v1141, 0
      %vm1238 = vcmp.ne.s32.totalorder %v1142, 0
      %v1239 = vrot.slane %v1175, 7
      %v1240 = vrot.slane %v1176, 7
      %v1241 = vrot.slane %v1177, 7
      %v1242 = vrot.slane %v1178, 7
      %v1243 = vrot.slane %v1179, 7
      %v1244 = vrot.slane %v1180, 7
      %v1245 = vrot.slane %v1181, 7
      %v1246 = vrot.slane %v1182, 7
      %v1247 = vrot.slane %v1183, 7
      %v1248 = vrot.slane %v1184, 7
      %v1249 = vrot.slane %v1185, 7
      %v1250 = vrot.slane %v1186, 7
      %v1251 = vrot.slane %v1187, 7
      %v1252 = vrot.slane %v1188, 7
      %v1253 = vrot.slane %v1189, 7
      %v1254 = vrot.slane %v1190, 7
      %v1255 = vrot.slane %v1191, 7
      %v1256 = vrot.slane %v1192, 7
      %v1257 = vrot.slane %v1193, 7
      %v1258 = vrot.slane %v1194, 7
      %v1259 = vrot.slane %v1195, 7
      %v1260 = vrot.slane %v1196, 7
      %v1261 = vrot.slane %v1197, 7
      %v1262 = vrot.slane %v1198, 7
      %v1263 = vrot.slane %v1199, 7
      %v1264 = vrot.slane %v1200, 7
      %v1265 = vrot.slane %v1201, 7
      %v1266 = vrot.slane %v1202, 7
      %v1267 = vrot.slane %v1203, 7
      %v1268 = vrot.slane %v1204, 7
      %v1269 = vrot.slane %v1205, 7
      %v1270 = vrot.slane %v1206, 7
      %vm1271 = vcmp.lt.s32.totalorder %v727, 1
      %v1272 = vsel %vm1271, %v1269, %v1270
      %v1273 = vsel %vm1271, %v1268, %v1269
      %v1274 = vsel %vm1271, %v1267, %v1268
      %v1275 = vsel %vm1271, %v1266, %v1267
      %v1276 = vsel %vm1271, %v1265, %v1266
      %v1277 = vsel %vm1271, %v1264, %v1265
      %v1278 = vsel %vm1271, %v1263, %v1264
      %v1279 = vsel %vm1271, %v1262, %v1263
      %v1280 = vsel %vm1271, %v1261, %v1262
      %v1281 = vsel %vm1271, %v1260, %v1261
      %v1282 = vsel %vm1271, %v1259, %v1260
      %v1283 = vsel %vm1271, %v1258, %v1259
      %v1284 = vsel %vm1271, %v1257, %v1258
      %v1285 = vsel %vm1271, %v1256, %v1257
      %v1286 = vsel %vm1271, %v1255, %v1256
      %v1287 = vsel %vm1271, %v1254, %v1255
      %v1288 = vsel %vm1271, %v1253, %v1254
      %v1289 = vsel %vm1271, %v1252, %v1253
      %v1290 = vsel %vm1271, %v1251, %v1252
      %v1291 = vsel %vm1271, %v1250, %v1251
      %v1292 = vsel %vm1271, %v1249, %v1250
      %v1293 = vsel %vm1271, %v1248, %v1249
      %v1294 = vsel %vm1271, %v1247, %v1248
      %v1295 = vsel %vm1271, %v1246, %v1247
      %v1296 = vsel %vm1271, %v1245, %v1246
      %v1297 = vsel %vm1271, %v1244, %v1245
      %v1298 = vsel %vm1271, %v1243, %v1244
      %v1299 = vsel %vm1271, %v1242, %v1243
      %v1300 = vsel %vm1271, %v1241, %v1242
      %v1301 = vsel %vm1271, %v1240, %v1241
      %v1302 = vsel %vm1271, %v1239, %v1240
      %v1303 = vsel %vm1271, %v1270, %v1239
      %v1304 = vsel %vm1207, 1, 0
      %v1305 = vsel %vm1208, 1, 0
      %v1306 = vsel %vm1209, 1, 0
      %v1307 = vsel %vm1210, 1, 0
      %v1308 = vsel %vm1211, 1, 0
      %v1309 = vsel %vm1212, 1, 0
      %v1310 = vsel %vm1213, 1, 0
      %v1311 = vsel %vm1214, 1, 0
      %v1312 = vsel %vm1215, 1, 0
      %v1313 = vsel %vm1216, 1, 0
      %v1314 = vsel %vm1217, 1, 0
      %v1315 = vsel %vm1218, 1, 0
      %v1316 = vsel %vm1219, 1, 0
      %v1317 = vsel %vm1220, 1, 0
      %v1318 = vsel %vm1221, 1, 0
      %v1319 = vsel %vm1222, 1, 0
      %v1320 = vsel %vm1223, 1, 0
      %v1321 = vsel %vm1224, 1, 0
      %v1322 = vsel %vm1225, 1, 0
      %v1323 = vsel %vm1226, 1, 0
      %v1324 = vsel %vm1227, 1, 0
      %v1325 = vsel %vm1228, 1, 0
      %v1326 = vsel %vm1229, 1, 0
      %v1327 = vsel %vm1230, 1, 0
      %v1328 = vsel %vm1231, 1, 0
      %v1329 = vsel %vm1232, 1, 0
      %v1330 = vsel %vm1233, 1, 0
      %v1331 = vsel %vm1234, 1, 0
      %v1332 = vsel %vm1235, 1, 0
      %v1333 = vsel %vm1236, 1, 0
      %v1334 = vsel %vm1237, 1, 0
      %v1335 = vsel %vm1238, 1, 0
      %vm1336 = vcmp.eq.s32.totalorder %v1304, 1
      %vm1337 = vcmp.eq.s32.totalorder %v1305, 1
      %vm1338 = vcmp.eq.s32.totalorder %v1306, 1
      %vm1339 = vcmp.eq.s32.totalorder %v1307, 1
      %vm1340 = vcmp.eq.s32.totalorder %v1308, 1
      %vm1341 = vcmp.eq.s32.totalorder %v1309, 1
      %vm1342 = vcmp.eq.s32.totalorder %v1310, 1
      %vm1343 = vcmp.eq.s32.totalorder %v1311, 1
      %vm1344 = vcmp.eq.s32.totalorder %v1312, 1
      %vm1345 = vcmp.eq.s32.totalorder %v1313, 1
      %vm1346 = vcmp.eq.s32.totalorder %v1314, 1
      %vm1347 = vcmp.eq.s32.totalorder %v1315, 1
      %vm1348 = vcmp.eq.s32.totalorder %v1316, 1
      %vm1349 = vcmp.eq.s32.totalorder %v1317, 1
      %vm1350 = vcmp.eq.s32.totalorder %v1318, 1
      %vm1351 = vcmp.eq.s32.totalorder %v1319, 1
      %vm1352 = vcmp.eq.s32.totalorder %v1320, 1
      %vm1353 = vcmp.eq.s32.totalorder %v1321, 1
      %vm1354 = vcmp.eq.s32.totalorder %v1322, 1
      %vm1355 = vcmp.eq.s32.totalorder %v1323, 1
      %vm1356 = vcmp.eq.s32.totalorder %v1324, 1
      %vm1357 = vcmp.eq.s32.totalorder %v1325, 1
      %vm1358 = vcmp.eq.s32.totalorder %v1326, 1
      %vm1359 = vcmp.eq.s32.totalorder %v1327, 1
      %vm1360 = vcmp.eq.s32.totalorder %v1328, 1
      %vm1361 = vcmp.eq.s32.totalorder %v1329, 1
      %vm1362 = vcmp.eq.s32.totalorder %v1330, 1
      %vm1363 = vcmp.eq.s32.totalorder %v1331, 1
      %vm1364 = vcmp.eq.s32.totalorder %v1332, 1
      %vm1365 = vcmp.eq.s32.totalorder %v1333, 1
      %vm1366 = vcmp.eq.s32.totalorder %v1334, 1
      %vm1367 = vcmp.eq.s32.totalorder %v1335, 1
      %v1368 = vsel %vm1336, %v1303, 0.0
      %v1369 = vsel %vm1337, %v1302, 0.0
      %v1370 = vsel %vm1338, %v1301, 0.0
      %v1371 = vsel %vm1339, %v1300, 0.0
      %v1372 = vsel %vm1340, %v1299, 0.0
      %v1373 = vsel %vm1341, %v1298, 0.0
      %v1374 = vsel %vm1342, %v1297, 0.0
      %v1375 = vsel %vm1343, %v1296, 0.0
      %v1376 = vsel %vm1344, %v1295, 0.0
      %v1377 = vsel %vm1345, %v1294, 0.0
      %v1378 = vsel %vm1346, %v1293, 0.0
      %v1379 = vsel %vm1347, %v1292, 0.0
      %v1380 = vsel %vm1348, %v1291, 0.0
      %v1381 = vsel %vm1349, %v1290, 0.0
      %v1382 = vsel %vm1350, %v1289, 0.0
      %v1383 = vsel %vm1351, %v1288, 0.0
      %v1384 = vsel %vm1352, %v1287, 0.0
      %v1385 = vsel %vm1353, %v1286, 0.0
      %v1386 = vsel %vm1354, %v1285, 0.0
      %v1387 = vsel %vm1355, %v1284, 0.0
      %v1388 = vsel %vm1356, %v1283, 0.0
      %v1389 = vsel %vm1357, %v1282, 0.0
      %v1390 = vsel %vm1358, %v1281, 0.0
      %v1391 = vsel %vm1359, %v1280, 0.0
      %v1392 = vsel %vm1360, %v1279, 0.0
      %v1393 = vsel %vm1361, %v1278, 0.0
      %v1394 = vsel %vm1362, %v1277, 0.0
      %v1395 = vsel %vm1363, %v1276, 0.0
      %v1396 = vsel %vm1364, %v1275, 0.0
      %v1397 = vsel %vm1365, %v1274, 0.0
      %v1398 = vsel %vm1366, %v1273, 0.0
      %v1399 = vsel %vm1367, %v1272, 0.0
      %vm1400 = vcmp.ne.s32.totalorder %v1111, 15
      %vm1401 = vcmp.ne.s32.totalorder %v1112, 15
      %vm1402 = vcmp.ne.s32.totalorder %v1113, 15
      %vm1403 = vcmp.ne.s32.totalorder %v1114, 15
      %vm1404 = vcmp.ne.s32.totalorder %v1115, 15
      %vm1405 = vcmp.ne.s32.totalorder %v1116, 15
      %vm1406 = vcmp.ne.s32.totalorder %v1117, 15
      %vm1407 = vcmp.ne.s32.totalorder %v1118, 15
      %vm1408 = vcmp.ne.s32.totalorder %v1119, 15
      %vm1409 = vcmp.ne.s32.totalorder %v1120, 15
      %vm1410 = vcmp.ne.s32.totalorder %v1121, 15
      %vm1411 = vcmp.ne.s32.totalorder %v1122, 15
      %vm1412 = vcmp.ne.s32.totalorder %v1123, 15
      %vm1413 = vcmp.ne.s32.totalorder %v1124, 15
      %vm1414 = vcmp.ne.s32.totalorder %v1125, 15
      %vm1415 = vcmp.ne.s32.totalorder %v1126, 15
      %vm1416 = vcmp.ne.s32.totalorder %v1127, 15
      %vm1417 = vcmp.ne.s32.totalorder %v1128, 15
      %vm1418 = vcmp.ne.s32.totalorder %v1129, 15
      %vm1419 = vcmp.ne.s32.totalorder %v1130, 15
      %vm1420 = vcmp.ne.s32.totalorder %v1131, 15
      %vm1421 = vcmp.ne.s32.totalorder %v1132, 15
      %vm1422 = vcmp.ne.s32.totalorder %v1133, 15
      %vm1423 = vcmp.ne.s32.totalorder %v1134, 15
      %vm1424 = vcmp.ne.s32.totalorder %v1135, 15
      %vm1425 = vcmp.ne.s32.totalorder %v1136, 15
      %vm1426 = vcmp.ne.s32.totalorder %v1137, 15
      %vm1427 = vcmp.ne.s32.totalorder %v1138, 15
      %vm1428 = vcmp.ne.s32.totalorder %v1139, 15
      %vm1429 = vcmp.ne.s32.totalorder %v1140, 15
      %vm1430 = vcmp.ne.s32.totalorder %v1141, 15
      %vm1431 = vcmp.ne.s32.totalorder %v1142, 15
      %v1432 = vrot.slane %v1175, 1
      %v1433 = vrot.slane %v1176, 1
      %v1434 = vrot.slane %v1177, 1
      %v1435 = vrot.slane %v1178, 1
      %v1436 = vrot.slane %v1179, 1
      %v1437 = vrot.slane %v1180, 1
      %v1438 = vrot.slane %v1181, 1
      %v1439 = vrot.slane %v1182, 1
      %v1440 = vrot.slane %v1183, 1
      %v1441 = vrot.slane %v1184, 1
      %v1442 = vrot.slane %v1185, 1
      %v1443 = vrot.slane %v1186, 1
      %v1444 = vrot.slane %v1187, 1
      %v1445 = vrot.slane %v1188, 1
      %v1446 = vrot.slane %v1189, 1
      %v1447 = vrot.slane %v1190, 1
      %v1448 = vrot.slane %v1191, 1
      %v1449 = vrot.slane %v1192, 1
      %v1450 = vrot.slane %v1193, 1
      %v1451 = vrot.slane %v1194, 1
      %v1452 = vrot.slane %v1195, 1
      %v1453 = vrot.slane %v1196, 1
      %v1454 = vrot.slane %v1197, 1
      %v1455 = vrot.slane %v1198, 1
      %v1456 = vrot.slane %v1199, 1
      %v1457 = vrot.slane %v1200, 1
      %v1458 = vrot.slane %v1201, 1
      %v1459 = vrot.slane %v1202, 1
      %v1460 = vrot.slane %v1203, 1
      %v1461 = vrot.slane %v1204, 1
      %v1462 = vrot.slane %v1205, 1
      %v1463 = vrot.slane %v1206, 1
      %vm1464 = vcmp.lt.s32.totalorder %v727, 7
      %v1465 = vsel %vm1464, %v1462, %v1463
      %v1466 = vsel %vm1464, %v1461, %v1462
      %v1467 = vsel %vm1464, %v1460, %v1461
      %v1468 = vsel %vm1464, %v1459, %v1460
      %v1469 = vsel %vm1464, %v1458, %v1459
      %v1470 = vsel %vm1464, %v1457, %v1458
      %v1471 = vsel %vm1464, %v1456, %v1457
      %v1472 = vsel %vm1464, %v1455, %v1456
      %v1473 = vsel %vm1464, %v1454, %v1455
      %v1474 = vsel %vm1464, %v1453, %v1454
      %v1475 = vsel %vm1464, %v1452, %v1453
      %v1476 = vsel %vm1464, %v1451, %v1452
      %v1477 = vsel %vm1464, %v1450, %v1451
      %v1478 = vsel %vm1464, %v1449, %v1450
      %v1479 = vsel %vm1464, %v1448, %v1449
      %v1480 = vsel %vm1464, %v1447, %v1448
      %v1481 = vsel %vm1464, %v1446, %v1447
      %v1482 = vsel %vm1464, %v1445, %v1446
      %v1483 = vsel %vm1464, %v1444, %v1445
      %v1484 = vsel %vm1464, %v1443, %v1444
      %v1485 = vsel %vm1464, %v1442, %v1443
      %v1486 = vsel %vm1464, %v1441, %v1442
      %v1487 = vsel %vm1464, %v1440, %v1441
      %v1488 = vsel %vm1464, %v1439, %v1440
      %v1489 = vsel %vm1464, %v1438, %v1439
      %v1490 = vsel %vm1464, %v1437, %v1438
      %v1491 = vsel %vm1464, %v1436, %v1437
      %v1492 = vsel %vm1464, %v1435, %v1436
      %v1493 = vsel %vm1464, %v1434, %v1435
      %v1494 = vsel %vm1464, %v1433, %v1434
      %v1495 = vsel %vm1464, %v1432, %v1433
      %v1496 = vsel %vm1464, %v1463, %v1432
      %v1497 = vsel %vm1400, 1, 0
      %v1498 = vsel %vm1401, 1, 0
      %v1499 = vsel %vm1402, 1, 0
      %v1500 = vsel %vm1403, 1, 0
      %v1501 = vsel %vm1404, 1, 0
      %v1502 = vsel %vm1405, 1, 0
      %v1503 = vsel %vm1406, 1, 0
      %v1504 = vsel %vm1407, 1, 0
      %v1505 = vsel %vm1408, 1, 0
      %v1506 = vsel %vm1409, 1, 0
      %v1507 = vsel %vm1410, 1, 0
      %v1508 = vsel %vm1411, 1, 0
      %v1509 = vsel %vm1412, 1, 0
      %v1510 = vsel %vm1413, 1, 0
      %v1511 = vsel %vm1414, 1, 0
      %v1512 = vsel %vm1415, 1, 0
      %v1513 = vsel %vm1416, 1, 0
      %v1514 = vsel %vm1417, 1, 0
      %v1515 = vsel %vm1418, 1, 0
      %v1516 = vsel %vm1419, 1, 0
      %v1517 = vsel %vm1420, 1, 0
      %v1518 = vsel %vm1421, 1, 0
      %v1519 = vsel %vm1422, 1, 0
      %v1520 = vsel %vm1423, 1, 0
      %v1521 = vsel %vm1424, 1, 0
      %v1522 = vsel %vm1425, 1, 0
      %v1523 = vsel %vm1426, 1, 0
      %v1524 = vsel %vm1427, 1, 0
      %v1525 = vsel %vm1428, 1, 0
      %v1526 = vsel %vm1429, 1, 0
      %v1527 = vsel %vm1430, 1, 0
      %v1528 = vsel %vm1431, 1, 0
      %vm1529 = vcmp.eq.s32.totalorder %v1497, 1
      %vm1530 = vcmp.eq.s32.totalorder %v1498, 1
      %vm1531 = vcmp.eq.s32.totalorder %v1499, 1
      %vm1532 = vcmp.eq.s32.totalorder %v1500, 1
      %vm1533 = vcmp.eq.s32.totalorder %v1501, 1
      %vm1534 = vcmp.eq.s32.totalorder %v1502, 1
      %vm1535 = vcmp.eq.s32.totalorder %v1503, 1
      %vm1536 = vcmp.eq.s32.totalorder %v1504, 1
      %vm1537 = vcmp.eq.s32.totalorder %v1505, 1
      %vm1538 = vcmp.eq.s32.totalorder %v1506, 1
      %vm1539 = vcmp.eq.s32.totalorder %v1507, 1
      %vm1540 = vcmp.eq.s32.totalorder %v1508, 1
      %vm1541 = vcmp.eq.s32.totalorder %v1509, 1
      %vm1542 = vcmp.eq.s32.totalorder %v1510, 1
      %vm1543 = vcmp.eq.s32.totalorder %v1511, 1
      %vm1544 = vcmp.eq.s32.totalorder %v1512, 1
      %vm1545 = vcmp.eq.s32.totalorder %v1513, 1
      %vm1546 = vcmp.eq.s32.totalorder %v1514, 1
      %vm1547 = vcmp.eq.s32.totalorder %v1515, 1
      %vm1548 = vcmp.eq.s32.totalorder %v1516, 1
      %vm1549 = vcmp.eq.s32.totalorder %v1517, 1
      %vm1550 = vcmp.eq.s32.totalorder %v1518, 1
      %vm1551 = vcmp.eq.s32.totalorder %v1519, 1
      %vm1552 = vcmp.eq.s32.totalorder %v1520, 1
      %vm1553 = vcmp.eq.s32.totalorder %v1521, 1
      %vm1554 = vcmp.eq.s32.totalorder %v1522, 1
      %vm1555 = vcmp.eq.s32.totalorder %v1523, 1
      %vm1556 = vcmp.eq.s32.totalorder %v1524, 1
      %vm1557 = vcmp.eq.s32.totalorder %v1525, 1
      %vm1558 = vcmp.eq.s32.totalorder %v1526, 1
      %vm1559 = vcmp.eq.s32.totalorder %v1527, 1
      %vm1560 = vcmp.eq.s32.totalorder %v1528, 1
      %v1561 = vsel %vm1529, %v1495, 0.0
      %v1562 = vsel %vm1530, %v1494, 0.0
      %v1563 = vsel %vm1531, %v1493, 0.0
      %v1564 = vsel %vm1532, %v1492, 0.0
      %v1565 = vsel %vm1533, %v1491, 0.0
      %v1566 = vsel %vm1534, %v1490, 0.0
      %v1567 = vsel %vm1535, %v1489, 0.0
      %v1568 = vsel %vm1536, %v1488, 0.0
      %v1569 = vsel %vm1537, %v1487, 0.0
      %v1570 = vsel %vm1538, %v1486, 0.0
      %v1571 = vsel %vm1539, %v1485, 0.0
      %v1572 = vsel %vm1540, %v1484, 0.0
      %v1573 = vsel %vm1541, %v1483, 0.0
      %v1574 = vsel %vm1542, %v1482, 0.0
      %v1575 = vsel %vm1543, %v1481, 0.0
      %v1576 = vsel %vm1544, %v1480, 0.0
      %v1577 = vsel %vm1545, %v1479, 0.0
      %v1578 = vsel %vm1546, %v1478, 0.0
      %v1579 = vsel %vm1547, %v1477, 0.0
      %v1580 = vsel %vm1548, %v1476, 0.0
      %v1581 = vsel %vm1549, %v1475, 0.0
      %v1582 = vsel %vm1550, %v1474, 0.0
      %v1583 = vsel %vm1551, %v1473, 0.0
      %v1584 = vsel %vm1552, %v1472, 0.0
      %v1585 = vsel %vm1553, %v1471, 0.0
      %v1586 = vsel %vm1554, %v1470, 0.0
      %v1587 = vsel %vm1555, %v1469, 0.0
      %v1588 = vsel %vm1556, %v1468, 0.0
      %v1589 = vsel %vm1557, %v1467, 0.0
      %v1590 = vsel %vm1558, %v1466, 0.0
      %v1591 = vsel %vm1559, %v1465, 0.0
      %v1592 = vsel %vm1560, %v1496, 0.0
      %v1593 = vld [vmem:[#allocation2 + $0x80] sm:$0xf]
      %v1594 = vld [vmem:[#allocation2 + $0x84] sm:$0xf]
      %v1595 = vunpack.c.l.bf16 %v1593
      %v1596 = vunpack.c.l.bf16 %v1594
      %v1597 = vrot.slane %v1595, 7
      %v1598 = vrot.slane %v1596, 7
      %v1599 = vsel %vm1271, %v1597, %v1598
      %v1600 = vsel %vm1271, %v1270, %v1597
      %v1601 = vsel %vm1271, %v1598, %v1241
      %v1602 = vsel %vm1336, %v1601, 0.0
      %v1603 = vsel %vm1337, %v1300, 0.0
      %v1604 = vsel %vm1338, %v1299, 0.0
      %v1605 = vsel %vm1339, %v1298, 0.0
      %v1606 = vsel %vm1340, %v1297, 0.0
      %v1607 = vsel %vm1341, %v1296, 0.0
      %v1608 = vsel %vm1342, %v1295, 0.0
      %v1609 = vsel %vm1343, %v1294, 0.0
      %v1610 = vsel %vm1344, %v1293, 0.0
      %v1611 = vsel %vm1345, %v1292, 0.0
      %v1612 = vsel %vm1346, %v1291, 0.0
      %v1613 = vsel %vm1347, %v1290, 0.0
      %v1614 = vsel %vm1348, %v1289, 0.0
      %v1615 = vsel %vm1349, %v1288, 0.0
      %v1616 = vsel %vm1350, %v1287, 0.0
      %v1617 = vsel %vm1351, %v1286, 0.0
      %v1618 = vsel %vm1352, %v1285, 0.0
      %v1619 = vsel %vm1353, %v1284, 0.0
      %v1620 = vsel %vm1354, %v1283, 0.0
      %v1621 = vsel %vm1355, %v1282, 0.0
      %v1622 = vsel %vm1356, %v1281, 0.0
      %v1623 = vsel %vm1357, %v1280, 0.0
      %v1624 = vsel %vm1358, %v1279, 0.0
      %v1625 = vsel %vm1359, %v1278, 0.0
      %v1626 = vsel %vm1360, %v1277, 0.0
      %v1627 = vsel %vm1361, %v1276, 0.0
      %v1628 = vsel %vm1362, %v1275, 0.0
      %v1629 = vsel %vm1363, %v1274, 0.0
      %v1630 = vsel %vm1364, %v1273, 0.0
      %v1631 = vsel %vm1365, %v1272, 0.0
      %v1632 = vsel %vm1366, %v1600, 0.0
      %v1633 = vsel %vm1367, %v1599, 0.0
      %v1634 = vrot.slane %v1595, 1
      %v1635 = vrot.slane %v1596, 1
      %v1636 = vsel %vm1464, %v1634, %v1635
      %v1637 = vsel %vm1464, %v1463, %v1634
      %v1638 = vsel %vm1464, %v1635, %v1434
      %v1639 = vsel %vm1529, %v1493, 0.0
      %v1640 = vsel %vm1530, %v1492, 0.0
      %v1641 = vsel %vm1531, %v1491, 0.0
      %v1642 = vsel %vm1532, %v1490, 0.0
      %v1643 = vsel %vm1533, %v1489, 0.0
      %v1644 = vsel %vm1534, %v1488, 0.0
      %v1645 = vsel %vm1535, %v1487, 0.0
      %v1646 = vsel %vm1536, %v1486, 0.0
      %v1647 = vsel %vm1537, %v1485, 0.0
      %v1648 = vsel %vm1538, %v1484, 0.0
      %v1649 = vsel %vm1539, %v1483, 0.0
      %v1650 = vsel %vm1540, %v1482, 0.0
      %v1651 = vsel %vm1541, %v1481, 0.0
      %v1652 = vsel %vm1542, %v1480, 0.0
      %v1653 = vsel %vm1543, %v1479, 0.0
      %v1654 = vsel %vm1544, %v1478, 0.0
      %v1655 = vsel %vm1545, %v1477, 0.0
      %v1656 = vsel %vm1546, %v1476, 0.0
      %v1657 = vsel %vm1547, %v1475, 0.0
      %v1658 = vsel %vm1548, %v1474, 0.0
      %v1659 = vsel %vm1549, %v1473, 0.0
      %v1660 = vsel %vm1550, %v1472, 0.0
      %v1661 = vsel %vm1551, %v1471, 0.0
      %v1662 = vsel %vm1552, %v1470, 0.0
      %v1663 = vsel %vm1553, %v1469, 0.0
      %v1664 = vsel %vm1554, %v1468, 0.0
      %v1665 = vsel %vm1555, %v1467, 0.0
      %v1666 = vsel %vm1556, %v1466, 0.0
      %v1667 = vsel %vm1557, %v1465, 0.0
      %v1668 = vsel %vm1558, %v1637, 0.0
      %v1669 = vsel %vm1559, %v1636, 0.0
      %v1670 = vsel %vm1560, %v1638, 0.0
      %v1671 = vld [vmem:[#allocation2 + $0x88] sm:$0xf]
      %v1672 = vld [vmem:[#allocation2 + $0x8c] sm:$0xf]
      %v1673 = vunpack.c.l.bf16 %v1671
      %v1674 = vunpack.c.l.bf16 %v1672
      %v1675 = vrot.slane %v1673, 7
      %v1676 = vrot.slane %v1674, 7
      %v1677 = vsel %vm1271, %v1675, %v1676
      %v1678 = vsel %vm1271, %v1598, %v1675
      %v1679 = vsel %vm1271, %v1676, %v1243
      %v1680 = vsel %vm1336, %v1679, 0.0
      %v1681 = vsel %vm1337, %v1298, 0.0
      %v1682 = vsel %vm1338, %v1297, 0.0
      %v1683 = vsel %vm1339, %v1296, 0.0
      %v1684 = vsel %vm1340, %v1295, 0.0
      %v1685 = vsel %vm1341, %v1294, 0.0
      %v1686 = vsel %vm1342, %v1293, 0.0
      %v1687 = vsel %vm1343, %v1292, 0.0
      %v1688 = vsel %vm1344, %v1291, 0.0
      %v1689 = vsel %vm1345, %v1290, 0.0
      %v1690 = vsel %vm1346, %v1289, 0.0
      %v1691 = vsel %vm1347, %v1288, 0.0
      %v1692 = vsel %vm1348, %v1287, 0.0
      %v1693 = vsel %vm1349, %v1286, 0.0
      %v1694 = vsel %vm1350, %v1285, 0.0
      %v1695 = vsel %vm1351, %v1284, 0.0
      %v1696 = vsel %vm1352, %v1283, 0.0
      %v1697 = vsel %vm1353, %v1282, 0.0
      %v1698 = vsel %vm1354, %v1281, 0.0
      %v1699 = vsel %vm1355, %v1280, 0.0
      %v1700 = vsel %vm1356, %v1279, 0.0
      %v1701 = vsel %vm1357, %v1278, 0.0
      %v1702 = vsel %vm1358, %v1277, 0.0
      %v1703 = vsel %vm1359, %v1276, 0.0
      %v1704 = vsel %vm1360, %v1275, 0.0
      %v1705 = vsel %vm1361, %v1274, 0.0
      %v1706 = vsel %vm1362, %v1273, 0.0
      %v1707 = vsel %vm1363, %v1272, 0.0
      %v1708 = vsel %vm1364, %v1600, 0.0
      %v1709 = vsel %vm1365, %v1599, 0.0
      %v1710 = vsel %vm1366, %v1678, 0.0
      %v1711 = vsel %vm1367, %v1677, 0.0
      %1744 = vrot.lane.b32.xlu0 %v1175, 16
      %v1745 = vpop.permute.xlu0 %1744
      %1746 = vrot.lane.b32.xlu0 %v1176, 16
      %v1747 = vpop.permute.xlu0 %1746
      %1748 = vrot.lane.b32.xlu0 %v1177, 16
      %v1749 = vpop.permute.xlu0 %1748
      %1750 = vrot.lane.b32.xlu0 %v1178, 16
      %v1751 = vpop.permute.xlu0 %1750
      %1752 = vrot.lane.b32.xlu0 %v1179, 16
      %v1753 = vpop.permute.xlu0 %1752
      %1754 = vrot.lane.b32.xlu0 %v1180, 16
      %v1755 = vpop.permute.xlu0 %1754
      %1756 = vrot.lane.b32.xlu0 %v1181, 16
      %v1757 = vpop.permute.xlu0 %1756
      %1758 = vrot.lane.b32.xlu0 %v1182, 16
      %v1759 = vpop.permute.xlu0 %1758
      %1760 = vrot.lane.b32.xlu0 %v1183, 16
      %v1761 = vpop.permute.xlu0 %1760
      %1762 = vrot.lane.b32.xlu0 %v1184, 16
      %v1763 = vpop.permute.xlu0 %1762
      %1764 = vrot.lane.b32.xlu0 %v1185, 16
      %v1765 = vpop.permute.xlu0 %1764
      %1766 = vrot.lane.b32.xlu0 %v1186, 16
      %v1767 = vpop.permute.xlu0 %1766
      %1768 = vrot.lane.b32.xlu0 %v1187, 16
      %v1769 = vpop.permute.xlu0 %1768
      %1770 = vrot.lane.b32.xlu0 %v1188, 16
      %v1771 = vpop.permute.xlu0 %1770
      %1772 = vrot.lane.b32.xlu0 %v1189, 16
      %v1773 = vpop.permute.xlu0 %1772
      %1774 = vrot.lane.b32.xlu0 %v1190, 16
      %v1775 = vpop.permute.xlu0 %1774
      %1776 = vrot.lane.b32.xlu0 %v1191, 16
      %v1777 = vpop.permute.xlu0 %1776
      %1778 = vrot.lane.b32.xlu0 %v1192, 16
      %v1779 = vpop.permute.xlu0 %1778
      %1780 = vrot.lane.b32.xlu0 %v1193, 16
      %v1781 = vpop.permute.xlu0 %1780
      %1782 = vrot.lane.b32.xlu0 %v1194, 16
      %v1783 = vpop.permute.xlu0 %1782
      %1784 = vrot.lane.b32.xlu0 %v1195, 16
      %v1785 = vpop.permute.xlu0 %1784
      %1786 = vrot.lane.b32.xlu0 %v1196, 16
      %v1787 = vpop.permute.xlu0 %1786
      %1788 = vrot.lane.b32.xlu0 %v1197, 16
      %v1789 = vpop.permute.xlu0 %1788
      %1790 = vrot.lane.b32.xlu0 %v1198, 16
      %v1791 = vpop.permute.xlu0 %1790
      %1792 = vrot.lane.b32.xlu0 %v1199, 16
      %v1793 = vpop.permute.xlu0 %1792
      %1794 = vrot.lane.b32.xlu0 %v1200, 16
      %v1795 = vpop.permute.xlu0 %1794
      %1796 = vrot.lane.b32.xlu0 %v1201, 16
      %v1797 = vpop.permute.xlu0 %1796
      %1798 = vrot.lane.b32.xlu0 %v1202, 16
      %v1799 = vpop.permute.xlu0 %1798
      %1800 = vrot.lane.b32.xlu0 %v1203, 16
      %v1801 = vpop.permute.xlu0 %1800
      %1802 = vrot.lane.b32.xlu0 %v1204, 16
      %v1803 = vpop.permute.xlu0 %1802
      %1804 = vrot.lane.b32.xlu0 %v1205, 16
      %v1805 = vpop.permute.xlu0 %1804
      %1806 = vrot.lane.b32.xlu0 %v1206, 16
      %v1807 = vpop.permute.xlu0 %1806
      %1872 = vrot.lane.b32.xlu0 %v1561, 32
      %v1873 = vpop.permute.xlu0 %1872
      %1874 = vrot.lane.b32.xlu0 %v1562, 32
      %v1875 = vpop.permute.xlu0 %1874
      %1876 = vrot.lane.b32.xlu0 %v1563, 32
      %v1877 = vpop.permute.xlu0 %1876
      %1878 = vrot.lane.b32.xlu0 %v1564, 32
      %v1879 = vpop.permute.xlu0 %1878
      %1880 = vrot.lane.b32.xlu0 %v1565, 32
      %v1881 = vpop.permute.xlu0 %1880
      %1882 = vrot.lane.b32.xlu0 %v1566, 32
      %v1883 = vpop.permute.xlu0 %1882
      %1884 = vrot.lane.b32.xlu0 %v1567, 32
      %v1885 = vpop.permute.xlu0 %1884
      %1886 = vrot.lane.b32.xlu0 %v1568, 32
      %v1887 = vpop.permute.xlu0 %1886
      %1888 = vrot.lane.b32.xlu0 %v1569, 32
      %v1889 = vpop.permute.xlu0 %1888
      %1890 = vrot.lane.b32.xlu0 %v1570, 32
      %v1891 = vpop.permute.xlu0 %1890
      %1892 = vrot.lane.b32.xlu0 %v1571, 32
      %v1893 = vpop.permute.xlu0 %1892
      %1894 = vrot.lane.b32.xlu0 %v1572, 32
      %v1895 = vpop.permute.xlu0 %1894
      %1896 = vrot.lane.b32.xlu0 %v1573, 32
      %v1897 = vpop.permute.xlu0 %1896
      %1898 = vrot.lane.b32.xlu0 %v1574, 32
      %v1899 = vpop.permute.xlu0 %1898
      %1900 = vrot.lane.b32.xlu0 %v1575, 32
      %v1901 = vpop.permute.xlu0 %1900
      %1902 = vrot.lane.b32.xlu0 %v1576, 32
      %v1903 = vpop.permute.xlu0 %1902
      %1904 = vrot.lane.b32.xlu0 %v1577, 32
      %v1905 = vpop.permute.xlu0 %1904
      %1906 = vrot.lane.b32.xlu0 %v1578, 32
      %v1907 = vpop.permute.xlu0 %1906
      %1908 = vrot.lane.b32.xlu0 %v1579, 32
      %v1909 = vpop.permute.xlu0 %1908
      %1910 = vrot.lane.b32.xlu0 %v1580, 32
      %v1911 = vpop.permute.xlu0 %1910
      %1912 = vrot.lane.b32.xlu0 %v1581, 32
      %v1913 = vpop.permute.xlu0 %1912
      %1914 = vrot.lane.b32.xlu0 %v1582, 32
      %v1915 = vpop.permute.xlu0 %1914
      %1916 = vrot.lane.b32.xlu0 %v1583, 32
      %v1917 = vpop.permute.xlu0 %1916
      %1918 = vrot.lane.b32.xlu0 %v1584, 32
      %v1919 = vpop.permute.xlu0 %1918
      %1920 = vrot.lane.b32.xlu0 %v1585, 32
      %v1921 = vpop.permute.xlu0 %1920
      %1922 = vrot.lane.b32.xlu0 %v1586, 32
      %v1923 = vpop.permute.xlu0 %1922
      %1924 = vrot.lane.b32.xlu0 %v1587, 32
      %v1925 = vpop.permute.xlu0 %1924
      %1926 = vrot.lane.b32.xlu0 %v1588, 32
      %v1927 = vpop.permute.xlu0 %1926
      %1928 = vrot.lane.b32.xlu0 %v1589, 32
      %v1929 = vpop.permute.xlu0 %1928
      %1930 = vrot.lane.b32.xlu0 %v1590, 32
      %v1931 = vpop.permute.xlu0 %1930
      %1932 = vrot.lane.b32.xlu0 %v1591, 32
      %v1933 = vpop.permute.xlu0 %1932
      %1934 = vrot.lane.b32.xlu0 %v1592, 32
      %v1935 = vpop.permute.xlu0 %1934
      %2000 = vrot.lane.b32.xlu0 %v1602, 48
      %v2001 = vpop.permute.xlu0 %2000
      %2002 = vrot.lane.b32.xlu0 %v1603, 48
      %v2003 = vpop.permute.xlu0 %2002
      %2004 = vrot.lane.b32.xlu0 %v1604, 48
      %v2005 = vpop.permute.xlu0 %2004
      %2006 = vrot.lane.b32.xlu0 %v1605, 48
      %v2007 = vpop.permute.xlu0 %2006
      %2008 = vrot.lane.b32.xlu0 %v1606, 48
      %v2009 = vpop.permute.xlu0 %2008
      %2010 = vrot.lane.b32.xlu0 %v1607, 48
      %v2011 = vpop.permute.xlu0 %2010
      %2012 = vrot.lane.b32.xlu0 %v1608, 48
      %v2013 = vpop.permute.xlu0 %2012
      %2014 = vrot.lane.b32.xlu0 %v1609, 48
      %v2015 = vpop.permute.xlu0 %2014
      %2016 = vrot.lane.b32.xlu0 %v1610, 48
      %v2017 = vpop.permute.xlu0 %2016
      %2018 = vrot.lane.b32.xlu0 %v1611, 48
      %v2019 = vpop.permute.xlu0 %2018
      %2020 = vrot.lane.b32.xlu0 %v1612, 48
      %v2021 = vpop.permute.xlu0 %2020
      %2022 = vrot.lane.b32.xlu0 %v1613, 48
      %v2023 = vpop.permute.xlu0 %2022
      %2024 = vrot.lane.b32.xlu0 %v1614, 48
      %v2025 = vpop.permute.xlu0 %2024
      %2026 = vrot.lane.b32.xlu0 %v1615, 48
      %v2027 = vpop.permute.xlu0 %2026
      %2028 = vrot.lane.b32.xlu0 %v1616, 48
      %v2029 = vpop.permute.xlu0 %2028
      %2030 = vrot.lane.b32.xlu0 %v1617, 48
      %v2031 = vpop.permute.xlu0 %2030
      %2032 = vrot.lane.b32.xlu0 %v1618, 48
      %v2033 = vpop.permute.xlu0 %2032
      %2034 = vrot.lane.b32.xlu0 %v1619, 48
      %v2035 = vpop.permute.xlu0 %2034
      %2036 = vrot.lane.b32.xlu0 %v1620, 48
      %v2037 = vpop.permute.xlu0 %2036
      %2038 = vrot.lane.b32.xlu0 %v1621, 48
      %v2039 = vpop.permute.xlu0 %2038
      %2040 = vrot.lane.b32.xlu0 %v1622, 48
      %v2041 = vpop.permute.xlu0 %2040
      %2042 = vrot.lane.b32.xlu0 %v1623, 48
      %v2043 = vpop.permute.xlu0 %2042
      %2044 = vrot.lane.b32.xlu0 %v1624, 48
      %v2045 = vpop.permute.xlu0 %2044
      %2046 = vrot.lane.b32.xlu0 %v1625, 48
      %v2047 = vpop.permute.xlu0 %2046
      %2048 = vrot.lane.b32.xlu0 %v1626, 48
      %v2049 = vpop.permute.xlu0 %2048
      %2050 = vrot.lane.b32.xlu0 %v1627, 48
      %v2051 = vpop.permute.xlu0 %2050
      %2052 = vrot.lane.b32.xlu0 %v1628, 48
      %v2053 = vpop.permute.xlu0 %2052
      %2054 = vrot.lane.b32.xlu0 %v1629, 48
      %v2055 = vpop.permute.xlu0 %2054
      %2056 = vrot.lane.b32.xlu0 %v1630, 48
      %v2057 = vpop.permute.xlu0 %2056
      %2058 = vrot.lane.b32.xlu0 %v1631, 48
      %v2059 = vpop.permute.xlu0 %2058
      %2060 = vrot.lane.b32.xlu0 %v1632, 48
      %v2061 = vpop.permute.xlu0 %2060
      %2062 = vrot.lane.b32.xlu0 %v1633, 48
      %v2063 = vpop.permute.xlu0 %2062
      %2098 = vrot.lane.b32.xlu0 %v1177, 64
      %v2099 = vpop.permute.xlu0 %2098
      %2100 = vrot.lane.b32.xlu0 %v1178, 64
      %v2101 = vpop.permute.xlu0 %2100
      %2102 = vrot.lane.b32.xlu0 %v1179, 64
      %v2103 = vpop.permute.xlu0 %2102
      %2104 = vrot.lane.b32.xlu0 %v1180, 64
      %v2105 = vpop.permute.xlu0 %2104
      %2106 = vrot.lane.b32.xlu0 %v1181, 64
      %v2107 = vpop.permute.xlu0 %2106
      %2108 = vrot.lane.b32.xlu0 %v1182, 64
      %v2109 = vpop.permute.xlu0 %2108
      %2110 = vrot.lane.b32.xlu0 %v1183, 64
      %v2111 = vpop.permute.xlu0 %2110
      %2112 = vrot.lane.b32.xlu0 %v1184, 64
      %v2113 = vpop.permute.xlu0 %2112
      %2114 = vrot.lane.b32.xlu0 %v1185, 64
      %v2115 = vpop.permute.xlu0 %2114
      %2116 = vrot.lane.b32.xlu0 %v1186, 64
      %v2117 = vpop.permute.xlu0 %2116
      %2118 = vrot.lane.b32.xlu0 %v1187, 64
      %v2119 = vpop.permute.xlu0 %2118
      %2120 = vrot.lane.b32.xlu0 %v1188, 64
      %v2121 = vpop.permute.xlu0 %2120
      %2122 = vrot.lane.b32.xlu0 %v1189, 64
      %v2123 = vpop.permute.xlu0 %2122
      %2124 = vrot.lane.b32.xlu0 %v1190, 64
      %v2125 = vpop.permute.xlu0 %2124
      %2126 = vrot.lane.b32.xlu0 %v1191, 64
      %v2127 = vpop.permute.xlu0 %2126
      %2128 = vrot.lane.b32.xlu0 %v1192, 64
      %v2129 = vpop.permute.xlu0 %2128
      %2130 = vrot.lane.b32.xlu0 %v1193, 64
      %v2131 = vpop.permute.xlu0 %2130
      %2132 = vrot.lane.b32.xlu0 %v1194, 64
      %v2133 = vpop.permute.xlu0 %2132
      %2134 = vrot.lane.b32.xlu0 %v1195, 64
      %v2135 = vpop.permute.xlu0 %2134
      %2136 = vrot.lane.b32.xlu0 %v1196, 64
      %v2137 = vpop.permute.xlu0 %2136
      %2138 = vrot.lane.b32.xlu0 %v1197, 64
      %v2139 = vpop.permute.xlu0 %2138
      %2140 = vrot.lane.b32.xlu0 %v1198, 64
      %v2141 = vpop.permute.xlu0 %2140
      %2142 = vrot.lane.b32.xlu0 %v1199, 64
      %v2143 = vpop.permute.xlu0 %2142
      %2144 = vrot.lane.b32.xlu0 %v1200, 64
      %v2145 = vpop.permute.xlu0 %2144
      %2146 = vrot.lane.b32.xlu0 %v1201, 64
      %v2147 = vpop.permute.xlu0 %2146
      %2148 = vrot.lane.b32.xlu0 %v1202, 64
      %v2149 = vpop.permute.xlu0 %2148
      %2150 = vrot.lane.b32.xlu0 %v1203, 64
      %v2151 = vpop.permute.xlu0 %2150
      %2152 = vrot.lane.b32.xlu0 %v1204, 64
      %v2153 = vpop.permute.xlu0 %2152
      %2154 = vrot.lane.b32.xlu0 %v1205, 64
      %v2155 = vpop.permute.xlu0 %2154
      %2156 = vrot.lane.b32.xlu0 %v1206, 64
      %v2157 = vpop.permute.xlu0 %2156
      %2158 = vrot.lane.b32.xlu0 %v1595, 64
      %v2159 = vpop.permute.xlu0 %2158
      %2160 = vrot.lane.b32.xlu0 %v1596, 64
      %v2161 = vpop.permute.xlu0 %2160
      %2226 = vrot.lane.b32.xlu0 %v1639, 80
      %v2227 = vpop.permute.xlu0 %2226
      %2228 = vrot.lane.b32.xlu0 %v1640, 80
      %v2229 = vpop.permute.xlu0 %2228
      %2230 = vrot.lane.b32.xlu0 %v1641, 80
      %v2231 = vpop.permute.xlu0 %2230
      %2232 = vrot.lane.b32.xlu0 %v1642, 80
      %v2233 = vpop.permute.xlu0 %2232
      %2234 = vrot.lane.b32.xlu0 %v1643, 80
      %v2235 = vpop.permute.xlu0 %2234
      %2236 = vrot.lane.b32.xlu0 %v1644, 80
      %v2237 = vpop.permute.xlu0 %2236
      %2238 = vrot.lane.b32.xlu0 %v1645, 80
      %v2239 = vpop.permute.xlu0 %2238
      %2240 = vrot.lane.b32.xlu0 %v1646, 80
      %v2241 = vpop.permute.xlu0 %2240
      %2242 = vrot.lane.b32.xlu0 %v1647, 80
      %v2243 = vpop.permute.xlu0 %2242
      %2244 = vrot.lane.b32.xlu0 %v1648, 80
      %v2245 = vpop.permute.xlu0 %2244
      %2246 = vrot.lane.b32.xlu0 %v1649, 80
      %v2247 = vpop.permute.xlu0 %2246
      %2248 = vrot.lane.b32.xlu0 %v1650, 80
      %v2249 = vpop.permute.xlu0 %2248
      %2250 = vrot.lane.b32.xlu0 %v1651, 80
      %v2251 = vpop.permute.xlu0 %2250
      %2252 = vrot.lane.b32.xlu0 %v1652, 80
      %v2253 = vpop.permute.xlu0 %2252
      %2254 = vrot.lane.b32.xlu0 %v1653, 80
      %v2255 = vpop.permute.xlu0 %2254
      %2256 = vrot.lane.b32.xlu0 %v1654, 80
      %v2257 = vpop.permute.xlu0 %2256
      %2258 = vrot.lane.b32.xlu0 %v1655, 80
      %v2259 = vpop.permute.xlu0 %2258
      %2260 = vrot.lane.b32.xlu0 %v1656, 80
      %v2261 = vpop.permute.xlu0 %2260
      %2262 = vrot.lane.b32.xlu0 %v1657, 80
      %v2263 = vpop.permute.xlu0 %2262
      %2264 = vrot.lane.b32.xlu0 %v1658, 80
      %v2265 = vpop.permute.xlu0 %2264
      %2266 = vrot.lane.b32.xlu0 %v1659, 80
      %v2267 = vpop.permute.xlu0 %2266
      %2268 = vrot.lane.b32.xlu0 %v1660, 80
      %v2269 = vpop.permute.xlu0 %2268
      %2270 = vrot.lane.b32.xlu0 %v1661, 80
      %v2271 = vpop.permute.xlu0 %2270
      %2272 = vrot.lane.b32.xlu0 %v1662, 80
      %v2273 = vpop.permute.xlu0 %2272
      %2274 = vrot.lane.b32.xlu0 %v1663, 80
      %v2275 = vpop.permute.xlu0 %2274
      %2276 = vrot.lane.b32.xlu0 %v1664, 80
      %v2277 = vpop.permute.xlu0 %2276
      %2278 = vrot.lane.b32.xlu0 %v1665, 80
      %v2279 = vpop.permute.xlu0 %2278
      %2280 = vrot.lane.b32.xlu0 %v1666, 80
      %v2281 = vpop.permute.xlu0 %2280
      %2282 = vrot.lane.b32.xlu0 %v1667, 80
      %v2283 = vpop.permute.xlu0 %2282
      %2284 = vrot.lane.b32.xlu0 %v1668, 80
      %v2285 = vpop.permute.xlu0 %2284
      %2286 = vrot.lane.b32.xlu0 %v1669, 80
      %v2287 = vpop.permute.xlu0 %2286
      %2288 = vrot.lane.b32.xlu0 %v1670, 80
      %v2289 = vpop.permute.xlu0 %2288
      %2354 = vrot.lane.b32.xlu0 %v1680, 96
      %v2355 = vpop.permute.xlu0 %2354
      %2356 = vrot.lane.b32.xlu0 %v1681, 96
      %v2357 = vpop.permute.xlu0 %2356
      %2358 = vrot.lane.b32.xlu0 %v1682, 96
      %v2359 = vpop.permute.xlu0 %2358
      %2360 = vrot.lane.b32.xlu0 %v1683, 96
      %v2361 = vpop.permute.xlu0 %2360
      %2362 = vrot.lane.b32.xlu0 %v1684, 96
      %v2363 = vpop.permute.xlu0 %2362
      %2364 = vrot.lane.b32.xlu0 %v1685, 96
      %v2365 = vpop.permute.xlu0 %2364
      %2366 = vrot.lane.b32.xlu0 %v1686, 96
      %v2367 = vpop.permute.xlu0 %2366
      %2368 = vrot.lane.b32.xlu0 %v1687, 96
      %v2369 = vpop.permute.xlu0 %2368
      %2370 = vrot.lane.b32.xlu0 %v1688, 96
      %v2371 = vpop.permute.xlu0 %2370
      %2372 = vrot.lane.b32.xlu0 %v1689, 96
      %v2373 = vpop.permute.xlu0 %2372
      %2374 = vrot.lane.b32.xlu0 %v1690, 96
      %v2375 = vpop.permute.xlu0 %2374
      %2376 = vrot.lane.b32.xlu0 %v1691, 96
      %v2377 = vpop.permute.xlu0 %2376
      %2378 = vrot.lane.b32.xlu0 %v1692, 96
      %v2379 = vpop.permute.xlu0 %2378
      %2380 = vrot.lane.b32.xlu0 %v1693, 96
      %v2381 = vpop.permute.xlu0 %2380
      %2382 = vrot.lane.b32.xlu0 %v1694, 96
      %v2383 = vpop.permute.xlu0 %2382
      %2384 = vrot.lane.b32.xlu0 %v1695, 96
      %v2385 = vpop.permute.xlu0 %2384
      %2386 = vrot.lane.b32.xlu0 %v1696, 96
      %v2387 = vpop.permute.xlu0 %2386
      %2388 = vrot.lane.b32.xlu0 %v1697, 96
      %v2389 = vpop.permute.xlu0 %2388
      %2390 = vrot.lane.b32.xlu0 %v1698, 96
      %v2391 = vpop.permute.xlu0 %2390
      %2392 = vrot.lane.b32.xlu0 %v1699, 96
      %v2393 = vpop.permute.xlu0 %2392
      %2394 = vrot.lane.b32.xlu0 %v1700, 96
      %v2395 = vpop.permute.xlu0 %2394
      %2396 = vrot.lane.b32.xlu0 %v1701, 96
      %v2397 = vpop.permute.xlu0 %2396
      %2398 = vrot.lane.b32.xlu0 %v1702, 96
      %v2399 = vpop.permute.xlu0 %2398
      %2400 = vrot.lane.b32.xlu0 %v1703, 96
      %v2401 = vpop.permute.xlu0 %2400
      %2402 = vrot.lane.b32.xlu0 %v1704, 96
      %v2403 = vpop.permute.xlu0 %2402
      %2404 = vrot.lane.b32.xlu0 %v1705, 96
      %v2405 = vpop.permute.xlu0 %2404
      %2406 = vrot.lane.b32.xlu0 %v1706, 96
      %v2407 = vpop.permute.xlu0 %2406
      %2408 = vrot.lane.b32.xlu0 %v1707, 96
      %v2409 = vpop.permute.xlu0 %2408
      %2410 = vrot.lane.b32.xlu0 %v1708, 96
      %v2411 = vpop.permute.xlu0 %2410
      %2412 = vrot.lane.b32.xlu0 %v1709, 96
      %v2413 = vpop.permute.xlu0 %2412
      %2414 = vrot.lane.b32.xlu0 %v1710, 96
      %v2415 = vpop.permute.xlu0 %2414
      %2416 = vrot.lane.b32.xlu0 %v1711, 96
      %v2417 = vpop.permute.xlu0 %2416
      %2452 = vrot.lane.b32.xlu0 %v1179, 112
      %v2453 = vpop.permute.xlu0 %2452
      %2454 = vrot.lane.b32.xlu0 %v1180, 112
      %v2455 = vpop.permute.xlu0 %2454
      %2456 = vrot.lane.b32.xlu0 %v1181, 112
      %v2457 = vpop.permute.xlu0 %2456
      %2458 = vrot.lane.b32.xlu0 %v1182, 112
      %v2459 = vpop.permute.xlu0 %2458
      %2460 = vrot.lane.b32.xlu0 %v1183, 112
      %v2461 = vpop.permute.xlu0 %2460
      %2462 = vrot.lane.b32.xlu0 %v1184, 112
      %v2463 = vpop.permute.xlu0 %2462
      %2464 = vrot.lane.b32.xlu0 %v1185, 112
      %v2465 = vpop.permute.xlu0 %2464
      %2466 = vrot.lane.b32.xlu0 %v1186, 112
      %v2467 = vpop.permute.xlu0 %2466
      %2468 = vrot.lane.b32.xlu0 %v1187, 112
      %v2469 = vpop.permute.xlu0 %2468
      %2470 = vrot.lane.b32.xlu0 %v1188, 112
      %v2471 = vpop.permute.xlu0 %2470
      %2472 = vrot.lane.b32.xlu0 %v1189, 112
      %v2473 = vpop.permute.xlu0 %2472
      %2474 = vrot.lane.b32.xlu0 %v1190, 112
      %v2475 = vpop.permute.xlu0 %2474
      %2476 = vrot.lane.b32.xlu0 %v1191, 112
      %v2477 = vpop.permute.xlu0 %2476
      %2478 = vrot.lane.b32.xlu0 %v1192, 112
      %v2479 = vpop.permute.xlu0 %2478
      %2480 = vrot.lane.b32.xlu0 %v1193, 112
      %v2481 = vpop.permute.xlu0 %2480
      %2482 = vrot.lane.b32.xlu0 %v1194, 112
      %v2483 = vpop.permute.xlu0 %2482
      %2484 = vrot.lane.b32.xlu0 %v1195, 112
      %v2485 = vpop.permute.xlu0 %2484
      %2486 = vrot.lane.b32.xlu0 %v1196, 112
      %v2487 = vpop.permute.xlu0 %2486
      %2488 = vrot.lane.b32.xlu0 %v1197, 112
      %v2489 = vpop.permute.xlu0 %2488
      %2490 = vrot.lane.b32.xlu0 %v1198, 112
      %v2491 = vpop.permute.xlu0 %2490
      %2492 = vrot.lane.b32.xlu0 %v1199, 112
      %v2493 = vpop.permute.xlu0 %2492
      %2494 = vrot.lane.b32.xlu0 %v1200, 112
      %v2495 = vpop.permute.xlu0 %2494
      %2496 = vrot.lane.b32.xlu0 %v1201, 112
      %v2497 = vpop.permute.xlu0 %2496
      %2498 = vrot.lane.b32.xlu0 %v1202, 112
      %v2499 = vpop.permute.xlu0 %2498
      %2500 = vrot.lane.b32.xlu0 %v1203, 112
      %v2501 = vpop.permute.xlu0 %2500
      %2502 = vrot.lane.b32.xlu0 %v1204, 112
      %v2503 = vpop.permute.xlu0 %2502
      %2504 = vrot.lane.b32.xlu0 %v1205, 112
      %v2505 = vpop.permute.xlu0 %2504
      %2506 = vrot.lane.b32.xlu0 %v1206, 112
      %v2507 = vpop.permute.xlu0 %2506
      %2508 = vrot.lane.b32.xlu0 %v1595, 112
      %v2509 = vpop.permute.xlu0 %2508
      %2510 = vrot.lane.b32.xlu0 %v1596, 112
      %v2511 = vpop.permute.xlu0 %2510
      %2512 = vrot.lane.b32.xlu0 %v1673, 112
      %v2513 = vpop.permute.xlu0 %2512
      %2514 = vrot.lane.b32.xlu0 %v1674, 112
      %v2515 = vpop.permute.xlu0 %2514
      %vm2548 = vcmask 130048
      %v2549 = vsel %vm2548, %v1368, %v1745
      %v2550 = vsel %vm2548, %v1369, %v1747
      %v2551 = vsel %vm2548, %v1370, %v1749
      %v2552 = vsel %vm2548, %v1371, %v1751
      %v2553 = vsel %vm2548, %v1372, %v1753
      %v2554 = vsel %vm2548, %v1373, %v1755
      %v2555 = vsel %vm2548, %v1374, %v1757
      %v2556 = vsel %vm2548, %v1375, %v1759
      %v2557 = vsel %vm2548, %v1376, %v1761
      %v2558 = vsel %vm2548, %v1377, %v1763
      %v2559 = vsel %vm2548, %v1378, %v1765
      %v2560 = vsel %vm2548, %v1379, %v1767
      %v2561 = vsel %vm2548, %v1380, %v1769
      %v2562 = vsel %vm2548, %v1381, %v1771
      %v2563 = vsel %vm2548, %v1382, %v1773
      %v2564 = vsel %vm2548, %v1383, %v1775
      %v2565 = vsel %vm2548, %v1384, %v1777
      %v2566 = vsel %vm2548, %v1385, %v1779
      %v2567 = vsel %vm2548, %v1386, %v1781
      %v2568 = vsel %vm2548, %v1387, %v1783
      %v2569 = vsel %vm2548, %v1388, %v1785
      %v2570 = vsel %vm2548, %v1389, %v1787
      %v2571 = vsel %vm2548, %v1390, %v1789
      %v2572 = vsel %vm2548, %v1391, %v1791
      %v2573 = vsel %vm2548, %v1392, %v1793
      %v2574 = vsel %vm2548, %v1393, %v1795
      %v2575 = vsel %vm2548, %v1394, %v1797
      %v2576 = vsel %vm2548, %v1395, %v1799
      %v2577 = vsel %vm2548, %v1396, %v1801
      %v2578 = vsel %vm2548, %v1397, %v1803
      %v2579 = vsel %vm2548, %v1398, %v1805
      %v2580 = vsel %vm2548, %v1399, %v1807
      %vm2581 = vcmask 261120
      %v2582 = vsel %vm2581, %v2549, %v1873
      %v2583 = vsel %vm2581, %v2550, %v1875
      %v2584 = vsel %vm2581, %v2551, %v1877
      %v2585 = vsel %vm2581, %v2552, %v1879
      %v2586 = vsel %vm2581, %v2553, %v1881
      %v2587 = vsel %vm2581, %v2554, %v1883
      %v2588 = vsel %vm2581, %v2555, %v1885
      %v2589 = vsel %vm2581, %v2556, %v1887
      %v2590 = vsel %vm2581, %v2557, %v1889
      %v2591 = vsel %vm2581, %v2558, %v1891
      %v2592 = vsel %vm2581, %v2559, %v1893
      %v2593 = vsel %vm2581, %v2560, %v1895
      %v2594 = vsel %vm2581, %v2561, %v1897
      %v2595 = vsel %vm2581, %v2562, %v1899
      %v2596 = vsel %vm2581, %v2563, %v1901
      %v2597 = vsel %vm2581, %v2564, %v1903
      %v2598 = vsel %vm2581, %v2565, %v1905
      %v2599 = vsel %vm2581, %v2566, %v1907
      %v2600 = vsel %vm2581, %v2567, %v1909
      %v2601 = vsel %vm2581, %v2568, %v1911
      %v2602 = vsel %vm2581, %v2569, %v1913
      %v2603 = vsel %vm2581, %v2570, %v1915
      %v2604 = vsel %vm2581, %v2571, %v1917
      %v2605 = vsel %vm2581, %v2572, %v1919
      %v2606 = vsel %vm2581, %v2573, %v1921
      %v2607 = vsel %vm2581, %v2574, %v1923
      %v2608 = vsel %vm2581, %v2575, %v1925
      %v2609 = vsel %vm2581, %v2576, %v1927
      %v2610 = vsel %vm2581, %v2577, %v1929
      %v2611 = vsel %vm2581, %v2578, %v1931
      %v2612 = vsel %vm2581, %v2579, %v1933
      %v2613 = vsel %vm2581, %v2580, %v1935
      %vm2614 = vcmask 392192
      %v2615 = vsel %vm2614, %v2582, %v2001
      %v2616 = vsel %vm2614, %v2583, %v2003
      %v2617 = vsel %vm2614, %v2584, %v2005
      %v2618 = vsel %vm2614, %v2585, %v2007
      %v2619 = vsel %vm2614, %v2586, %v2009
      %v2620 = vsel %vm2614, %v2587, %v2011
      %v2621 = vsel %vm2614, %v2588, %v2013
      %v2622 = vsel %vm2614, %v2589, %v2015
      %v2623 = vsel %vm2614, %v2590, %v2017
      %v2624 = vsel %vm2614, %v2591, %v2019
      %v2625 = vsel %vm2614, %v2592, %v2021
      %v2626 = vsel %vm2614, %v2593, %v2023
      %v2627 = vsel %vm2614, %v2594, %v2025
      %v2628 = vsel %vm2614, %v2595, %v2027
      %v2629 = vsel %vm2614, %v2596, %v2029
      %v2630 = vsel %vm2614, %v2597, %v2031
      %v2631 = vsel %vm2614, %v2598, %v2033
      %v2632 = vsel %vm2614, %v2599, %v2035
      %v2633 = vsel %vm2614, %v2600, %v2037
      %v2634 = vsel %vm2614, %v2601, %v2039
      %v2635 = vsel %vm2614, %v2602, %v2041
      %v2636 = vsel %vm2614, %v2603, %v2043
      %v2637 = vsel %vm2614, %v2604, %v2045
      %v2638 = vsel %vm2614, %v2605, %v2047
      %v2639 = vsel %vm2614, %v2606, %v2049
      %v2640 = vsel %vm2614, %v2607, %v2051
      %v2641 = vsel %vm2614, %v2608, %v2053
      %v2642 = vsel %vm2614, %v2609, %v2055
      %v2643 = vsel %vm2614, %v2610, %v2057
      %v2644 = vsel %vm2614, %v2611, %v2059
      %v2645 = vsel %vm2614, %v2612, %v2061
      %v2646 = vsel %vm2614, %v2613, %v2063
      %vm2647 = vcmask 523264
      %v2648 = vsel %vm2647, %v2615, %v2099
      %v2649 = vsel %vm2647, %v2616, %v2101
      %v2650 = vsel %vm2647, %v2617, %v2103
      %v2651 = vsel %vm2647, %v2618, %v2105
      %v2652 = vsel %vm2647, %v2619, %v2107
      %v2653 = vsel %vm2647, %v2620, %v2109
      %v2654 = vsel %vm2647, %v2621, %v2111
      %v2655 = vsel %vm2647, %v2622, %v2113
      %v2656 = vsel %vm2647, %v2623, %v2115
      %v2657 = vsel %vm2647, %v2624, %v2117
      %v2658 = vsel %vm2647, %v2625, %v2119
      %v2659 = vsel %vm2647, %v2626, %v2121
      %v2660 = vsel %vm2647, %v2627, %v2123
      %v2661 = vsel %vm2647, %v2628, %v2125
      %v2662 = vsel %vm2647, %v2629, %v2127
      %v2663 = vsel %vm2647, %v2630, %v2129
      %v2664 = vsel %vm2647, %v2631, %v2131
      %v2665 = vsel %vm2647, %v2632, %v2133
      %v2666 = vsel %vm2647, %v2633, %v2135
      %v2667 = vsel %vm2647, %v2634, %v2137
      %v2668 = vsel %vm2647, %v2635, %v2139
      %v2669 = vsel %vm2647, %v2636, %v2141
      %v2670 = vsel %vm2647, %v2637, %v2143
      %v2671 = vsel %vm2647, %v2638, %v2145
      %v2672 = vsel %vm2647, %v2639, %v2147
      %v2673 = vsel %vm2647, %v2640, %v2149
      %v2674 = vsel %vm2647, %v2641, %v2151
      %v2675 = vsel %vm2647, %v2642, %v2153
      %v2676 = vsel %vm2647, %v2643, %v2155
      %v2677 = vsel %vm2647, %v2644, %v2157
      %v2678 = vsel %vm2647, %v2645, %v2159
      %v2679 = vsel %vm2647, %v2646, %v2161
      %vm2680 = vcmask 654336
      %v2681 = vsel %vm2680, %v2648, %v2227
      %v2682 = vsel %vm2680, %v2649, %v2229
      %v2683 = vsel %vm2680, %v2650, %v2231
      %v2684 = vsel %vm2680, %v2651, %v2233
      %v2685 = vsel %vm2680, %v2652, %v2235
      %v2686 = vsel %vm2680, %v2653, %v2237
      %v2687 = vsel %vm2680, %v2654, %v2239
      %v2688 = vsel %vm2680, %v2655, %v2241
      %v2689 = vsel %vm2680, %v2656, %v2243
      %v2690 = vsel %vm2680, %v2657, %v2245
      %v2691 = vsel %vm2680, %v2658, %v2247
      %v2692 = vsel %vm2680, %v2659, %v2249
      %v2693 = vsel %vm2680, %v2660, %v2251
      %v2694 = vsel %vm2680, %v2661, %v2253
      %v2695 = vsel %vm2680, %v2662, %v2255
      %v2696 = vsel %vm2680, %v2663, %v2257
      %v2697 = vsel %vm2680, %v2664, %v2259
      %v2698 = vsel %vm2680, %v2665, %v2261
      %v2699 = vsel %vm2680, %v2666, %v2263
      %v2700 = vsel %vm2680, %v2667, %v2265
      %v2701 = vsel %vm2680, %v2668, %v2267
      %v2702 = vsel %vm2680, %v2669, %v2269
      %v2703 = vsel %vm2680, %v2670, %v2271
      %v2704 = vsel %vm2680, %v2671, %v2273
      %v2705 = vsel %vm2680, %v2672, %v2275
      %v2706 = vsel %vm2680, %v2673, %v2277
      %v2707 = vsel %vm2680, %v2674, %v2279
      %v2708 = vsel %vm2680, %v2675, %v2281
      %v2709 = vsel %vm2680, %v2676, %v2283
      %v2710 = vsel %vm2680, %v2677, %v2285
      %v2711 = vsel %vm2680, %v2678, %v2287
      %v2712 = vsel %vm2680, %v2679, %v2289
      %vm2713 = vcmask 785408
      %v2714 = vsel %vm2713, %v2681, %v2355
      %v2715 = vsel %vm2713, %v2682, %v2357
      %v2716 = vsel %vm2713, %v2683, %v2359
      %v2717 = vsel %vm2713, %v2684, %v2361
      %v2718 = vsel %vm2713, %v2685, %v2363
      %v2719 = vsel %vm2713, %v2686, %v2365
      %v2720 = vsel %vm2713, %v2687, %v2367
      %v2721 = vsel %vm2713, %v2688, %v2369
      %v2722 = vsel %vm2713, %v2689, %v2371
      %v2723 = vsel %vm2713, %v2690, %v2373
      %v2724 = vsel %vm2713, %v2691, %v2375
      %v2725 = vsel %vm2713, %v2692, %v2377
      %v2726 = vsel %vm2713, %v2693, %v2379
      %v2727 = vsel %vm2713, %v2694, %v2381
      %v2728 = vsel %vm2713, %v2695, %v2383
      %v2729 = vsel %vm2713, %v2696, %v2385
      %v2730 = vsel %vm2713, %v2697, %v2387
      %v2731 = vsel %vm2713, %v2698, %v2389
      %v2732 = vsel %vm2713, %v2699, %v2391
      %v2733 = vsel %vm2713, %v2700, %v2393
      %v2734 = vsel %vm2713, %v2701, %v2395
      %v2735 = vsel %vm2713, %v2702, %v2397
      %v2736 = vsel %vm2713, %v2703, %v2399
      %v2737 = vsel %vm2713, %v2704, %v2401
      %v2738 = vsel %vm2713, %v2705, %v2403
      %v2739 = vsel %vm2713, %v2706, %v2405
      %v2740 = vsel %vm2713, %v2707, %v2407
      %v2741 = vsel %vm2713, %v2708, %v2409
      %v2742 = vsel %vm2713, %v2709, %v2411
      %v2743 = vsel %vm2713, %v2710, %v2413
      %v2744 = vsel %vm2713, %v2711, %v2415
      %v2745 = vsel %vm2713, %v2712, %v2417
      %vm2746 = vcmask 916480
      %v2747 = vsel %vm2746, %v2714, %v2453
      %v2748 = vsel %vm2746, %v2715, %v2455
      %v2749 = vsel %vm2746, %v2716, %v2457
      %v2750 = vsel %vm2746, %v2717, %v2459
      %v2751 = vsel %vm2746, %v2718, %v2461
      %v2752 = vsel %vm2746, %v2719, %v2463
      %v2753 = vsel %vm2746, %v2720, %v2465
      %v2754 = vsel %vm2746, %v2721, %v2467
      %v2755 = vsel %vm2746, %v2722, %v2469
      %v2756 = vsel %vm2746, %v2723, %v2471
      %v2757 = vsel %vm2746, %v2724, %v2473
      %v2758 = vsel %vm2746, %v2725, %v2475
      %v2759 = vsel %vm2746, %v2726, %v2477
      %v2760 = vsel %vm2746, %v2727, %v2479
      %v2761 = vsel %vm2746, %v2728, %v2481
      %v2762 = vsel %vm2746, %v2729, %v2483
      %v2763 = vsel %vm2746, %v2730, %v2485
      %v2764 = vsel %vm2746, %v2731, %v2487
      %v2765 = vsel %vm2746, %v2732, %v2489
      %v2766 = vsel %vm2746, %v2733, %v2491
      %v2767 = vsel %vm2746, %v2734, %v2493
      %v2768 = vsel %vm2746, %v2735, %v2495
      %v2769 = vsel %vm2746, %v2736, %v2497
      %v2770 = vsel %vm2746, %v2737, %v2499
      %v2771 = vsel %vm2746, %v2738, %v2501
      %v2772 = vsel %vm2746, %v2739, %v2503
      %v2773 = vsel %vm2746, %v2740, %v2505
      %v2774 = vsel %vm2746, %v2741, %v2507
      %v2775 = vsel %vm2746, %v2742, %v2509
      %v2776 = vsel %vm2746, %v2743, %v2511
      %v2777 = vsel %vm2746, %v2744, %v2513
      %v2778 = vsel %vm2746, %v2745, %v2515
      %v2779 = vpack.c.bf16 %v2748, %v2747
      %v2780 = vpack.c.bf16 %v2750, %v2749
      %v2781 = vpack.c.bf16 %v2752, %v2751
      %v2782 = vpack.c.bf16 %v2754, %v2753
      %v2783 = vpack.c.bf16 %v2756, %v2755
      %v2784 = vpack.c.bf16 %v2758, %v2757
      %v2785 = vpack.c.bf16 %v2760, %v2759
      %v2786 = vpack.c.bf16 %v2762, %v2761
      %v2787 = vpack.c.bf16 %v2764, %v2763
      %v2788 = vpack.c.bf16 %v2766, %v2765
      %v2789 = vpack.c.bf16 %v2768, %v2767
      %v2790 = vpack.c.bf16 %v2770, %v2769
      %v2791 = vpack.c.bf16 %v2772, %v2771
      %v2792 = vpack.c.bf16 %v2774, %v2773
      %v2793 = vpack.c.bf16 %v2776, %v2775
      %v2794 = vpack.c.bf16 %v2778, %v2777
      %v2795 = vld [vmem:[%s3] sm:$0xf]
      %v2796 = vld [vmem:[%s3 + $0x4] sm:$0xf]
      %v2797 = vld [vmem:[%s3 + $0x8] sm:$0xf]
      %v2798 = vld [vmem:[%s3 + $0xc] sm:$0xf]
      %v2799 = vld [vmem:[%s3 + $0x10] sm:$0xf]
      %v2800 = vld [vmem:[%s3 + $0x14] sm:$0xf]
      %v2801 = vld [vmem:[%s3 + $0x18] sm:$0xf]
      %v2802 = vld [vmem:[%s3 + $0x1c] sm:$0xf]
      %v2803 = vld [vmem:[%s3 + $0x20] sm:$0xf]
      %v2804 = vld [vmem:[%s3 + $0x24] sm:$0xf]
      %v2805 = vld [vmem:[%s3 + $0x28] sm:$0xf]
      %v2806 = vld [vmem:[%s3 + $0x2c] sm:$0xf]
      %v2807 = vld [vmem:[%s3 + $0x30] sm:$0xf]
      %v2808 = vld [vmem:[%s3 + $0x34] sm:$0xf]
      %v2809 = vld [vmem:[%s3 + $0x38] sm:$0xf]
      %v2810 = vld [vmem:[%s3 + $0x3c] sm:$0xf]
      %v2811 = vrot.slane %v1673, 1
      %v2812 = vrot.slane %v1674, 1
      %v2813 = vsel %vm1464, %v2811, %v2812
      %v2814 = vsel %vm1464, %v1635, %v2811
      %v2815 = vsel %vm1464, %v2812, %v1436
      %v2816 = vsel %vm1529, %v1491, 0.0
      %v2817 = vsel %vm1530, %v1490, 0.0
      %v2818 = vsel %vm1531, %v1489, 0.0
      %v2819 = vsel %vm1532, %v1488, 0.0
      %v2820 = vsel %vm1533, %v1487, 0.0
      %v2821 = vsel %vm1534, %v1486, 0.0
      %v2822 = vsel %vm1535, %v1485, 0.0
      %v2823 = vsel %vm1536, %v1484, 0.0
      %v2824 = vsel %vm1537, %v1483, 0.0
      %v2825 = vsel %vm1538, %v1482, 0.0
      %v2826 = vsel %vm1539, %v1481, 0.0
      %v2827 = vsel %vm1540, %v1480, 0.0
      %v2828 = vsel %vm1541, %v1479, 0.0
      %v2829 = vsel %vm1542, %v1478, 0.0
      %v2830 = vsel %vm1543, %v1477, 0.0
      %v2831 = vsel %vm1544, %v1476, 0.0
      %v2832 = vsel %vm1545, %v1475, 0.0
      %v2833 = vsel %vm1546, %v1474, 0.0
      %v2834 = vsel %vm1547, %v1473, 0.0
      %v2835 = vsel %vm1548, %v1472, 0.0
      %v2836 = vsel %vm1549, %v1471, 0.0
      %v2837 = vsel %vm1550, %v1470, 0.0
      %v2838 = vsel %vm1551, %v1469, 0.0
      %v2839 = vsel %vm1552, %v1468, 0.0
      %v2840 = vsel %vm1553, %v1467, 0.0
      %v2841 = vsel %vm1554, %v1466, 0.0
      %v2842 = vsel %vm1555, %v1465, 0.0
      %v2843 = vsel %vm1556, %v1637, 0.0
      %v2844 = vsel %vm1557, %v1636, 0.0
      %v2845 = vsel %vm1558, %v2814, 0.0
      %v2846 = vsel %vm1559, %v2813, 0.0
      %v2847 = vsel %vm1560, %v2815, 0.0
      %v2848 = vsel %vm2548, %v2816, 0.0
      %v2849 = vsel %vm2548, %v2817, 0.0
      %v2850 = vsel %vm2548, %v2818, 0.0
      %v2851 = vsel %vm2548, %v2819, 0.0
      %v2852 = vsel %vm2548, %v2820, 0.0
      %v2853 = vsel %vm2548, %v2821, 0.0
      %v2854 = vsel %vm2548, %v2822, 0.0
      %v2855 = vsel %vm2548, %v2823, 0.0
      %v2856 = vsel %vm2548, %v2824, 0.0
      %v2857 = vsel %vm2548, %v2825, 0.0
      %v2858 = vsel %vm2548, %v2826, 0.0
      %v2859 = vsel %vm2548, %v2827, 0.0
      %v2860 = vsel %vm2548, %v2828, 0.0
      %v2861 = vsel %vm2548, %v2829, 0.0
      %v2862 = vsel %vm2548, %v2830, 0.0
      %v2863 = vsel %vm2548, %v2831, 0.0
      %v2864 = vsel %vm2548, %v2832, 0.0
      %v2865 = vsel %vm2548, %v2833, 0.0
      %v2866 = vsel %vm2548, %v2834, 0.0
      %v2867 = vsel %vm2548, %v2835, 0.0
      %v2868 = vsel %vm2548, %v2836, 0.0
      %v2869 = vsel %vm2548, %v2837, 0.0
      %v2870 = vsel %vm2548, %v2838, 0.0
      %v2871 = vsel %vm2548, %v2839, 0.0
      %v2872 = vsel %vm2548, %v2840, 0.0
      %v2873 = vsel %vm2548, %v2841, 0.0
      %v2874 = vsel %vm2548, %v2842, 0.0
      %v2875 = vsel %vm2548, %v2843, 0.0
      %v2876 = vsel %vm2548, %v2844, 0.0
      %v2877 = vsel %vm2548, %v2845, 0.0
      %v2878 = vsel %vm2548, %v2846, 0.0
      %v2879 = vsel %vm2548, %v2847, 0.0
      %v2880 = vpack.c.bf16 %v2849, %v2848
      %v2881 = vpack.c.bf16 %v2851, %v2850
      %v2882 = vpack.c.bf16 %v2853, %v2852
      %v2883 = vpack.c.bf16 %v2855, %v2854
      %v2884 = vpack.c.bf16 %v2857, %v2856
      %v2885 = vpack.c.bf16 %v2859, %v2858
      %v2886 = vpack.c.bf16 %v2861, %v2860
      %v2887 = vpack.c.bf16 %v2863, %v2862
      %v2888 = vpack.c.bf16 %v2865, %v2864
      %v2889 = vpack.c.bf16 %v2867, %v2866
      %v2890 = vpack.c.bf16 %v2869, %v2868
      %v2891 = vpack.c.bf16 %v2871, %v2870
      %v2892 = vpack.c.bf16 %v2873, %v2872
      %v2893 = vpack.c.bf16 %v2875, %v2874
      %v2894 = vpack.c.bf16 %v2877, %v2876
      %v2895 = vpack.c.bf16 %v2879, %v2878
      %v2896 = vld [vmem:[%s3 + $0x40] sm:$0xf]
      %v2897 = vld [vmem:[%s3 + $0x44] sm:$0xf]
      %v2898 = vld [vmem:[%s3 + $0x48] sm:$0xf]
      %v2899 = vld [vmem:[%s3 + $0x4c] sm:$0xf]
      %v2900 = vld [vmem:[%s3 + $0x50] sm:$0xf]
      %v2901 = vld [vmem:[%s3 + $0x54] sm:$0xf]
      %v2902 = vld [vmem:[%s3 + $0x58] sm:$0xf]
      %v2903 = vld [vmem:[%s3 + $0x5c] sm:$0xf]
      %v2904 = vld [vmem:[%s3 + $0x60] sm:$0xf]
      %v2905 = vld [vmem:[%s3 + $0x64] sm:$0xf]
      %v2906 = vld [vmem:[%s3 + $0x68] sm:$0xf]
      %v2907 = vld [vmem:[%s3 + $0x6c] sm:$0xf]
      %v2908 = vld [vmem:[%s3 + $0x70] sm:$0xf]
      %v2909 = vld [vmem:[%s3 + $0x74] sm:$0xf]
      %v2910 = vld [vmem:[%s3 + $0x78] sm:$0xf]
      %v2911 = vld [vmem:[%s3 + $0x7c] sm:$0xf]
      %v2928 = vunpack.c.l.b16 %v2896
      %v2929 = vunpack.c.l.b16 %v2897
      %v2930 = vunpack.c.l.b16 %v2898
      %v2931 = vunpack.c.l.b16 %v2899
      %v2932 = vunpack.c.l.b16 %v2900
      %v2933 = vunpack.c.l.b16 %v2901
      %v2934 = vunpack.c.l.b16 %v2902
      %v2935 = vunpack.c.l.b16 %v2903
      %v2936 = vunpack.c.l.b16 %v2904
      %v2937 = vunpack.c.l.b16 %v2905
      %v2938 = vunpack.c.l.b16 %v2906
      %v2939 = vunpack.c.l.b16 %v2907
      %v2940 = vunpack.c.l.b16 %v2908
      %v2941 = vunpack.c.l.b16 %v2909
      %v2942 = vunpack.c.l.b16 %v2910
      %v2943 = vunpack.c.l.b16 %v2911
      %v2944 = vpack.c.b16 %v2929, %v2928
      %v2945 = vpack.c.b16 %v2931, %v2930
      %v2946 = vpack.c.b16 %v2933, %v2932
      %v2947 = vpack.c.b16 %v2935, %v2934
      %v2948 = vpack.c.b16 %v2937, %v2936
      %v2949 = vpack.c.b16 %v2939, %v2938
      %v2950 = vpack.c.b16 %v2941, %v2940
      %v2951 = vpack.c.b16 %v2943, %v2942
      %2960 = vmatprep.subr.bf16.mxu0 0
      %2961 = vmatpush1.bf16.msra.mxu0 %v2951
      %2962 = vmatprep.subr.bf16.mxu0 0
      %2963 = vmatpush1.bf16.msra.mxu0 %v2950
      %2964 = vmatprep.subr.bf16.mxu0 0
      %2965 = vmatpush1.bf16.msra.mxu0 %v2949
      %2966 = vmatprep.subr.bf16.mxu0 0
      %2967 = vmatpush1.bf16.msra.mxu0 %v2948
      %2968 = vmatprep.subr.bf16.mxu0 0
      %2969 = vmatpush1.bf16.msra.mxu0 %v2947
      %2970 = vmatprep.subr.bf16.mxu0 0
      %2971 = vmatpush1.bf16.msra.mxu0 %v2946
      %2972 = vmatprep.subr.bf16.mxu0 0
      %2973 = vmatpush1.bf16.msra.mxu0 %v2945
      %2974 = vmatprep.subr.bf16.mxu0 0
      %2975 = vmatpush1.bf16.msra.mxu0 %v2944
      %2976 = vmatprep.subr.bf16.mxu0 0
      %2977 = vmatpush2.bf16.msra.mxu0 0
      %2978 = vmatprep.subr.bf16.mxu0 0
      %2979 = vmatpush2.bf16.msra.mxu0 0
      %2980 = vmatprep.subr.bf16.mxu0 0
      %2981 = vmatpush2.bf16.msra.mxu0 0
      %2982 = vmatprep.subr.bf16.mxu0 0
      %2983 = vmatpush2.bf16.msra.mxu0 0
      %2984 = vmatprep.subr.bf16.mxu0 0
      %2985 = vmatpush2.bf16.msra.mxu0 0
      %2986 = vmatprep.subr.bf16.mxu0 0
      %2987 = vmatpush2.bf16.msra.mxu0 0
      %2988 = vmatprep.subr.bf16.mxu0 0
      %2989 = vmatpush2.bf16.msra.mxu0 0
      %2990 = vmatprep.subr.bf16.mxu0 0
      %2991 = vmatpush2.bf16.msra.mxu0 0
      %2992 = vmatprep.mubr.bf16.mxu0 0
      %2993 = vmatmul.mubr.bf16.gmra.mxu0 %v2880
      %v2994 = vpop.f32.mrf.mxu0
      %v2995 = vadd.f32 0.0, %v2994
      %v2996 = vpop.f32.mrf.mxu0
      %v2997 = vpop.f32.mrf.mxu0
      %v2998 = vadd.f32 0.0, %v2997
      %v2999 = vpop.f32.mrf.mxu0
      %3000 = vmatprep.mubr.bf16.mxu0 0
      %3001 = vmatmul.mubr.bf16.gmra.mxu0 %v2881
      %v3002 = vpop.f32.mrf.mxu0
      %v3003 = vadd.f32 0.0, %v3002
      %v3004 = vpop.f32.mrf.mxu0
      %v3005 = vpop.f32.mrf.mxu0
      %v3006 = vadd.f32 0.0, %v3005
      %v3007 = vpop.f32.mrf.mxu0
      %3008 = vmatprep.mubr.bf16.mxu0 0
      %3009 = vmatmul.mubr.bf16.gmra.mxu0 %v2882
      %v3010 = vpop.f32.mrf.mxu0
      %v3011 = vadd.f32 0.0, %v3010
      %v3012 = vpop.f32.mrf.mxu0
      %v3013 = vpop.f32.mrf.mxu0
      %v3014 = vadd.f32 0.0, %v3013
      %v3015 = vpop.f32.mrf.mxu0
      %3016 = vmatprep.mubr.bf16.mxu0 0
      %3017 = vmatmul.mubr.bf16.gmra.mxu0 %v2883
      %v3018 = vpop.f32.mrf.mxu0
      %v3019 = vadd.f32 0.0, %v3018
      %v3020 = vpop.f32.mrf.mxu0
      %v3021 = vpop.f32.mrf.mxu0
      %v3022 = vadd.f32 0.0, %v3021
      %v3023 = vpop.f32.mrf.mxu0
      %3024 = vmatprep.mubr.bf16.mxu0 0
      %3025 = vmatmul.mubr.bf16.gmra.mxu0 %v2884
      %v3026 = vpop.f32.mrf.mxu0
      %v3027 = vadd.f32 0.0, %v3026
      %v3028 = vpop.f32.mrf.mxu0
      %v3029 = vpop.f32.mrf.mxu0
      %v3030 = vadd.f32 0.0, %v3029
      %v3031 = vpop.f32.mrf.mxu0
      %3032 = vmatprep.mubr.bf16.mxu0 0
      %3033 = vmatmul.mubr.bf16.gmra.mxu0 %v2885
      %v3034 = vpop.f32.mrf.mxu0
      %v3035 = vadd.f32 0.0, %v3034
      %v3036 = vpop.f32.mrf.mxu0
      %v3037 = vpop.f32.mrf.mxu0
      %v3038 = vadd.f32 0.0, %v3037
      %v3039 = vpop.f32.mrf.mxu0
      %3040 = vmatprep.mubr.bf16.mxu0 0
      %3041 = vmatmul.mubr.bf16.gmra.mxu0 %v2886
      %v3042 = vpop.f32.mrf.mxu0
      %v3043 = vadd.f32 0.0, %v3042
      %v3044 = vpop.f32.mrf.mxu0
      %v3045 = vpop.f32.mrf.mxu0
      %v3046 = vadd.f32 0.0, %v3045
      %v3047 = vpop.f32.mrf.mxu0
      %3048 = vmatprep.mubr.bf16.mxu0 0
      %3049 = vmatmul.mubr.bf16.gmra.mxu0 %v2887
      %v3050 = vpop.f32.mrf.mxu0
      %v3051 = vadd.f32 0.0, %v3050
      %v3052 = vpop.f32.mrf.mxu0
      %v3053 = vpop.f32.mrf.mxu0
      %v3054 = vadd.f32 0.0, %v3053
      %v3055 = vpop.f32.mrf.mxu0
      %3056 = vmatprep.mubr.bf16.mxu0 0
      %3057 = vmatmul.mubr.bf16.gmra.mxu0 %v2888
      %v3058 = vpop.f32.mrf.mxu0
      %v3059 = vadd.f32 0.0, %v3058
      %v3060 = vpop.f32.mrf.mxu0
      %v3061 = vpop.f32.mrf.mxu0
      %v3062 = vadd.f32 0.0, %v3061
      %v3063 = vpop.f32.mrf.mxu0
      %3064 = vmatprep.mubr.bf16.mxu0 0
      %3065 = vmatmul.mubr.bf16.gmra.mxu0 %v2889
      %v3066 = vpop.f32.mrf.mxu0
      %v3067 = vadd.f32 0.0, %v3066
      %v3068 = vpop.f32.mrf.mxu0
      %v3069 = vpop.f32.mrf.mxu0
      %v3070 = vadd.f32 0.0, %v3069
      %v3071 = vpop.f32.mrf.mxu0
      %3072 = vmatprep.mubr.bf16.mxu0 0
      %3073 = vmatmul.mubr.bf16.gmra.mxu0 %v2890
      %v3074 = vpop.f32.mrf.mxu0
      %v3075 = vadd.f32 0.0, %v3074
      %v3076 = vpop.f32.mrf.mxu0
      %v3077 = vpop.f32.mrf.mxu0
      %v3078 = vadd.f32 0.0, %v3077
      %v3079 = vpop.f32.mrf.mxu0
      %3080 = vmatprep.mubr.bf16.mxu0 0
      %3081 = vmatmul.mubr.bf16.gmra.mxu0 %v2891
      %v3082 = vpop.f32.mrf.mxu0
      %v3083 = vadd.f32 0.0, %v3082
      %v3084 = vpop.f32.mrf.mxu0
      %v3085 = vpop.f32.mrf.mxu0
      %v3086 = vadd.f32 0.0, %v3085
      %v3087 = vpop.f32.mrf.mxu0
      %3088 = vmatprep.mubr.bf16.mxu0 0
      %3089 = vmatmul.mubr.bf16.gmra.mxu0 %v2892
      %v3090 = vpop.f32.mrf.mxu0
      %v3091 = vadd.f32 0.0, %v3090
      %v3092 = vpop.f32.mrf.mxu0
      %v3093 = vpop.f32.mrf.mxu0
      %v3094 = vadd.f32 0.0, %v3093
      %v3095 = vpop.f32.mrf.mxu0
      %3096 = vmatprep.mubr.bf16.mxu0 0
      %3097 = vmatmul.mubr.bf16.gmra.mxu0 %v2893
      %v3098 = vpop.f32.mrf.mxu0
      %v3099 = vadd.f32 0.0, %v3098
      %v3100 = vpop.f32.mrf.mxu0
      %v3101 = vpop.f32.mrf.mxu0
      %v3102 = vadd.f32 0.0, %v3101
      %v3103 = vpop.f32.mrf.mxu0
      %3104 = vmatprep.mubr.bf16.mxu0 0
      %3105 = vmatmul.mubr.bf16.gmra.mxu0 %v2894
      %v3106 = vpop.f32.mrf.mxu0
      %v3107 = vadd.f32 0.0, %v3106
      %v3108 = vpop.f32.mrf.mxu0
      %v3109 = vpop.f32.mrf.mxu0
      %v3110 = vadd.f32 0.0, %v3109
      %v3111 = vpop.f32.mrf.mxu0
      %3112 = vmatprep.mubr.bf16.mxu0 0
      %3113 = vmatmul.mubr.bf16.gmra.mxu0 %v2895
      %v3114 = vpop.f32.mrf.mxu0
      %v3115 = vadd.f32 0.0, %v3114
      %v3116 = vpop.f32.mrf.mxu0
      %v3117 = vpop.f32.mrf.mxu0
      %v3118 = vadd.f32 0.0, %v3117
      %v3119 = vpop.f32.mrf.mxu0
      %3120 = vdwg.mxu0
      %v3137 = vunpack.c.l.b16 %v2795
      %v3138 = vunpack.c.l.b16 %v2796
      %v3139 = vunpack.c.l.b16 %v2797
      %v3140 = vunpack.c.l.b16 %v2798
      %v3141 = vunpack.c.l.b16 %v2799
      %v3142 = vunpack.c.l.b16 %v2800
      %v3143 = vunpack.c.l.b16 %v2801
      %v3144 = vunpack.c.l.b16 %v2802
      %v3145 = vunpack.c.l.b16 %v2803
      %v3146 = vunpack.c.l.b16 %v2804
      %v3147 = vunpack.c.l.b16 %v2805
      %v3148 = vunpack.c.l.b16 %v2806
      %v3149 = vunpack.c.l.b16 %v2807
      %v3150 = vunpack.c.l.b16 %v2808
      %v3151 = vunpack.c.l.b16 %v2809
      %v3152 = vunpack.c.l.b16 %v2810
      %v3153 = vpack.c.b16 %v3138, %v3137
      %v3154 = vpack.c.b16 %v3140, %v3139
      %v3155 = vpack.c.b16 %v3142, %v3141
      %v3156 = vpack.c.b16 %v3144, %v3143
      %v3157 = vpack.c.b16 %v3146, %v3145
      %v3158 = vpack.c.b16 %v3148, %v3147
      %v3159 = vpack.c.b16 %v3150, %v3149
      %v3160 = vpack.c.b16 %v3152, %v3151
      %3169 = vmatprep.subr.bf16.mxu0 0
      %3170 = vmatpush1.bf16.msra.mxu0 %v3160
      %3171 = vmatprep.subr.bf16.mxu0 0
      %3172 = vmatpush1.bf16.msra.mxu0 %v3159
      %3173 = vmatprep.subr.bf16.mxu0 0
      %3174 = vmatpush1.bf16.msra.mxu0 %v3158
      %3175 = vmatprep.subr.bf16.mxu0 0
      %3176 = vmatpush1.bf16.msra.mxu0 %v3157
      %3177 = vmatprep.subr.bf16.mxu0 0
      %3178 = vmatpush1.bf16.msra.mxu0 %v3156
      %3179 = vmatprep.subr.bf16.mxu0 0
      %3180 = vmatpush1.bf16.msra.mxu0 %v3155
      %3181 = vmatprep.subr.bf16.mxu0 0
      %3182 = vmatpush1.bf16.msra.mxu0 %v3154
      %3183 = vmatprep.subr.bf16.mxu0 0
      %3184 = vmatpush1.bf16.msra.mxu0 %v3153
      %3185 = vmatprep.subr.bf16.mxu0 0
      %3186 = vmatpush2.bf16.msra.mxu0 0
      %3187 = vmatprep.subr.bf16.mxu0 0
      %3188 = vmatpush2.bf16.msra.mxu0 0
      %3189 = vmatprep.subr.bf16.mxu0 0
      %3190 = vmatpush2.bf16.msra.mxu0 0
      %3191 = vmatprep.subr.bf16.mxu0 0
      %3192 = vmatpush2.bf16.msra.mxu0 0
      %3193 = vmatprep.subr.bf16.mxu0 0
      %3194 = vmatpush2.bf16.msra.mxu0 0
      %3195 = vmatprep.subr.bf16.mxu0 0
      %3196 = vmatpush2.bf16.msra.mxu0 0
      %3197 = vmatprep.subr.bf16.mxu0 0
      %3198 = vmatpush2.bf16.msra.mxu0 0
      %3199 = vmatprep.subr.bf16.mxu0 0
      %3200 = vmatpush2.bf16.msra.mxu0 0
      %3201 = vmatprep.mubr.bf16.mxu0 0
      %3202 = vmatmul.mubr.bf16.gmra.mxu0 %v2779
      %v3203 = vpop.f32.mrf.mxu0
      %v3204 = vadd.f32 %v2995, %v3203
      %v3205 = vpop.f32.mrf.mxu0
      %v3206 = vpop.f32.mrf.mxu0
      %v3207 = vadd.f32 %v2998, %v3206
      %v3208 = vpop.f32.mrf.mxu0
      %3209 = vmatprep.mubr.bf16.mxu0 0
      %3210 = vmatmul.mubr.bf16.gmra.mxu0 %v2780
      %v3211 = vpop.f32.mrf.mxu0
      %v3212 = vadd.f32 %v3003, %v3211
      %v3213 = vpop.f32.mrf.mxu0
      %v3214 = vpop.f32.mrf.mxu0
      %v3215 = vadd.f32 %v3006, %v3214
      %v3216 = vpop.f32.mrf.mxu0
      %3217 = vmatprep.mubr.bf16.mxu0 0
      %3218 = vmatmul.mubr.bf16.gmra.mxu0 %v2781
      %v3219 = vpop.f32.mrf.mxu0
      %v3220 = vadd.f32 %v3011, %v3219
      %v3221 = vpop.f32.mrf.mxu0
      %v3222 = vpop.f32.mrf.mxu0
      %v3223 = vadd.f32 %v3014, %v3222
      %v3224 = vpop.f32.mrf.mxu0
      %3225 = vmatprep.mubr.bf16.mxu0 0
      %3226 = vmatmul.mubr.bf16.gmra.mxu0 %v2782
      %v3227 = vpop.f32.mrf.mxu0
      %v3228 = vadd.f32 %v3019, %v3227
      %v3229 = vpop.f32.mrf.mxu0
      %v3230 = vpop.f32.mrf.mxu0
      %v3231 = vadd.f32 %v3022, %v3230
      %v3232 = vpop.f32.mrf.mxu0
      %3233 = vmatprep.mubr.bf16.mxu0 0
      %3234 = vmatmul.mubr.bf16.gmra.mxu0 %v2783
      %v3235 = vpop.f32.mrf.mxu0
      %v3236 = vadd.f32 %v3027, %v3235
      %v3237 = vpop.f32.mrf.mxu0
      %v3238 = vpop.f32.mrf.mxu0
      %v3239 = vadd.f32 %v3030, %v3238
      %v3240 = vpop.f32.mrf.mxu0
      %3241 = vmatprep.mubr.bf16.mxu0 0
      %3242 = vmatmul.mubr.bf16.gmra.mxu0 %v2784
      %v3243 = vpop.f32.mrf.mxu0
      %v3244 = vadd.f32 %v3035, %v3243
      %v3245 = vpop.f32.mrf.mxu0
      %v3246 = vpop.f32.mrf.mxu0
      %v3247 = vadd.f32 %v3038, %v3246
      %v3248 = vpop.f32.mrf.mxu0
      %3249 = vmatprep.mubr.bf16.mxu0 0
      %3250 = vmatmul.mubr.bf16.gmra.mxu0 %v2785
      %v3251 = vpop.f32.mrf.mxu0
      %v3252 = vadd.f32 %v3043, %v3251
      %v3253 = vpop.f32.mrf.mxu0
      %v3254 = vpop.f32.mrf.mxu0
      %v3255 = vadd.f32 %v3046, %v3254
      %v3256 = vpop.f32.mrf.mxu0
      %3257 = vmatprep.mubr.bf16.mxu0 0
      %3258 = vmatmul.mubr.bf16.gmra.mxu0 %v2786
      %v3259 = vpop.f32.mrf.mxu0
      %v3260 = vadd.f32 %v3051, %v3259
      %v3261 = vpop.f32.mrf.mxu0
      %v3262 = vpop.f32.mrf.mxu0
      %v3263 = vadd.f32 %v3054, %v3262
      %v3264 = vpop.f32.mrf.mxu0
      %3265 = vmatprep.mubr.bf16.mxu0 0
      %3266 = vmatmul.mubr.bf16.gmra.mxu0 %v2787
      %v3267 = vpop.f32.mrf.mxu0
      %v3268 = vadd.f32 %v3059, %v3267
      %v3269 = vpop.f32.mrf.mxu0
      %v3270 = vpop.f32.mrf.mxu0
      %v3271 = vadd.f32 %v3062, %v3270
      %v3272 = vpop.f32.mrf.mxu0
      %3273 = vmatprep.mubr.bf16.mxu0 0
      %3274 = vmatmul.mubr.bf16.gmra.mxu0 %v2788
      %v3275 = vpop.f32.mrf.mxu0
      %v3276 = vadd.f32 %v3067, %v3275
      %v3277 = vpop.f32.mrf.mxu0
      %v3278 = vpop.f32.mrf.mxu0
      %v3279 = vadd.f32 %v3070, %v3278
      %v3280 = vpop.f32.mrf.mxu0
      %3281 = vmatprep.mubr.bf16.mxu0 0
      %3282 = vmatmul.mubr.bf16.gmra.mxu0 %v2789
      %v3283 = vpop.f32.mrf.mxu0
      %v3284 = vadd.f32 %v3075, %v3283
      %v3285 = vpop.f32.mrf.mxu0
      %v3286 = vpop.f32.mrf.mxu0
      %v3287 = vadd.f32 %v3078, %v3286
      %v3288 = vpop.f32.mrf.mxu0
      %3289 = vmatprep.mubr.bf16.mxu0 0
      %3290 = vmatmul.mubr.bf16.gmra.mxu0 %v2790
      %v3291 = vpop.f32.mrf.mxu0
      %v3292 = vadd.f32 %v3083, %v3291
      %v3293 = vpop.f32.mrf.mxu0
      %v3294 = vpop.f32.mrf.mxu0
      %v3295 = vadd.f32 %v3086, %v3294
      %v3296 = vpop.f32.mrf.mxu0
      %3297 = vmatprep.mubr.bf16.mxu0 0
      %3298 = vmatmul.mubr.bf16.gmra.mxu0 %v2791
      %v3299 = vpop.f32.mrf.mxu0
      %v3300 = vadd.f32 %v3091, %v3299
      %v3301 = vpop.f32.mrf.mxu0
      %v3302 = vpop.f32.mrf.mxu0
      %v3303 = vadd.f32 %v3094, %v3302
      %v3304 = vpop.f32.mrf.mxu0
      %3305 = vmatprep.mubr.bf16.mxu0 0
      %3306 = vmatmul.mubr.bf16.gmra.mxu0 %v2792
      %v3307 = vpop.f32.mrf.mxu0
      %v3308 = vadd.f32 %v3099, %v3307
      %v3309 = vpop.f32.mrf.mxu0
      %v3310 = vpop.f32.mrf.mxu0
      %v3311 = vadd.f32 %v3102, %v3310
      %v3312 = vpop.f32.mrf.mxu0
      %3313 = vmatprep.mubr.bf16.mxu0 0
      %3314 = vmatmul.mubr.bf16.gmra.mxu0 %v2793
      %v3315 = vpop.f32.mrf.mxu0
      %v3316 = vadd.f32 %v3107, %v3315
      %v3317 = vpop.f32.mrf.mxu0
      %v3318 = vpop.f32.mrf.mxu0
      %v3319 = vadd.f32 %v3110, %v3318
      %v3320 = vpop.f32.mrf.mxu0
      %3321 = vmatprep.mubr.bf16.mxu0 0
      %3322 = vmatmul.mubr.bf16.gmra.mxu0 %v2794
      %v3323 = vpop.f32.mrf.mxu0
      %v3324 = vadd.f32 %v3115, %v3323
      %v3325 = vpop.f32.mrf.mxu0
      %v3326 = vpop.f32.mrf.mxu0
      %v3327 = vadd.f32 %v3118, %v3326
      %v3328 = vpop.f32.mrf.mxu0
      %3329 = vdwg.mxu0
      %vm3330 = vcmp.gt.f32.partialorder %v3204, 0.0
      %vm3331 = vcmp.gt.f32.partialorder %v3207, 0.0
      %vm3332 = vcmp.gt.f32.partialorder %v3212, 0.0
      %vm3333 = vcmp.gt.f32.partialorder %v3215, 0.0
      %vm3334 = vcmp.gt.f32.partialorder %v3220, 0.0
      %vm3335 = vcmp.gt.f32.partialorder %v3223, 0.0
      %vm3336 = vcmp.gt.f32.partialorder %v3228, 0.0
      %vm3337 = vcmp.gt.f32.partialorder %v3231, 0.0
      %vm3338 = vcmp.gt.f32.partialorder %v3236, 0.0
      %vm3339 = vcmp.gt.f32.partialorder %v3239, 0.0
      %vm3340 = vcmp.gt.f32.partialorder %v3244, 0.0
      %vm3341 = vcmp.gt.f32.partialorder %v3247, 0.0
      %vm3342 = vcmp.gt.f32.partialorder %v3252, 0.0
      %vm3343 = vcmp.gt.f32.partialorder %v3255, 0.0
      %vm3344 = vcmp.gt.f32.partialorder %v3260, 0.0
      %vm3345 = vcmp.gt.f32.partialorder %v3263, 0.0
      %vm3346 = vcmp.gt.f32.partialorder %v3268, 0.0
      %vm3347 = vcmp.gt.f32.partialorder %v3271, 0.0
      %vm3348 = vcmp.gt.f32.partialorder %v3276, 0.0
      %vm3349 = vcmp.gt.f32.partialorder %v3279, 0.0
      %vm3350 = vcmp.gt.f32.partialorder %v3284, 0.0
      %vm3351 = vcmp.gt.f32.partialorder %v3287, 0.0
      %vm3352 = vcmp.gt.f32.partialorder %v3292, 0.0
      %vm3353 = vcmp.gt.f32.partialorder %v3295, 0.0
      %vm3354 = vcmp.gt.f32.partialorder %v3300, 0.0
      %vm3355 = vcmp.gt.f32.partialorder %v3303, 0.0
      %vm3356 = vcmp.gt.f32.partialorder %v3308, 0.0
      %vm3357 = vcmp.gt.f32.partialorder %v3311, 0.0
      %vm3358 = vcmp.gt.f32.partialorder %v3316, 0.0
      %vm3359 = vcmp.gt.f32.partialorder %v3319, 0.0
      %vm3360 = vcmp.gt.f32.partialorder %v3324, 0.0
      %vm3361 = vcmp.gt.f32.partialorder %v3327, 0.0
      %v3362 = vld [vmem:[%s4] sm:$0x1]
      %v3364 = vlaneseq
      %v3365 = vshrl.u32 %v3364, 7
      %v3366 = vsub.s32 0, %v3365
      %v3367 = vrot.slane %v3362, %v3366
      %v3369 = vmul.f32 %v3204, %v3367
      %v3370 = vmul.f32 %v3207, %v3367
      %v3371 = vmul.f32 %v3212, %v3367
      %v3372 = vmul.f32 %v3215, %v3367
      %v3373 = vmul.f32 %v3220, %v3367
      %v3374 = vmul.f32 %v3223, %v3367
      %v3375 = vmul.f32 %v3228, %v3367
      %v3376 = vmul.f32 %v3231, %v3367
      %v3377 = vmul.f32 %v3236, %v3367
      %v3378 = vmul.f32 %v3239, %v3367
      %v3379 = vmul.f32 %v3244, %v3367
      %v3380 = vmul.f32 %v3247, %v3367
      %v3381 = vmul.f32 %v3252, %v3367
      %v3382 = vmul.f32 %v3255, %v3367
      %v3383 = vmul.f32 %v3260, %v3367
      %v3384 = vmul.f32 %v3263, %v3367
      %v3385 = vmul.f32 %v3268, %v3367
      %v3386 = vmul.f32 %v3271, %v3367
      %v3387 = vmul.f32 %v3276, %v3367
      %v3388 = vmul.f32 %v3279, %v3367
      %v3389 = vmul.f32 %v3284, %v3367
      %v3390 = vmul.f32 %v3287, %v3367
      %v3391 = vmul.f32 %v3292, %v3367
      %v3392 = vmul.f32 %v3295, %v3367
      %v3393 = vmul.f32 %v3300, %v3367
      %v3394 = vmul.f32 %v3303, %v3367
      %v3395 = vmul.f32 %v3308, %v3367
      %v3396 = vmul.f32 %v3311, %v3367
      %v3397 = vmul.f32 %v3316, %v3367
      %v3398 = vmul.f32 %v3319, %v3367
      %v3399 = vmul.f32 %v3324, %v3367
      %v3400 = vmul.f32 %v3327, %v3367
      %v3401 = vsel %vm3330, %v3204, %v3369
      %v3402 = vsel %vm3331, %v3207, %v3370
      %v3403 = vsel %vm3332, %v3212, %v3371
      %v3404 = vsel %vm3333, %v3215, %v3372
      %v3405 = vsel %vm3334, %v3220, %v3373
      %v3406 = vsel %vm3335, %v3223, %v3374
      %v3407 = vsel %vm3336, %v3228, %v3375
      %v3408 = vsel %vm3337, %v3231, %v3376
      %v3409 = vsel %vm3338, %v3236, %v3377
      %v3410 = vsel %vm3339, %v3239, %v3378
      %v3411 = vsel %vm3340, %v3244, %v3379
      %v3412 = vsel %vm3341, %v3247, %v3380
      %v3413 = vsel %vm3342, %v3252, %v3381
      %v3414 = vsel %vm3343, %v3255, %v3382
      %v3415 = vsel %vm3344, %v3260, %v3383
      %v3416 = vsel %vm3345, %v3263, %v3384
      %v3417 = vsel %vm3346, %v3268, %v3385
      %v3418 = vsel %vm3347, %v3271, %v3386
      %v3419 = vsel %vm3348, %v3276, %v3387
      %v3420 = vsel %vm3349, %v3279, %v3388
      %v3421 = vsel %vm3350, %v3284, %v3389
      %v3422 = vsel %vm3351, %v3287, %v3390
      %v3423 = vsel %vm3352, %v3292, %v3391
      %v3424 = vsel %vm3353, %v3295, %v3392
      %v3425 = vsel %vm3354, %v3300, %v3393
      %v3426 = vsel %vm3355, %v3303, %v3394
      %v3427 = vsel %vm3356, %v3308, %v3395
      %v3428 = vsel %vm3357, %v3311, %v3396
      %v3429 = vsel %vm3358, %v3316, %v3397
      %v3430 = vsel %vm3359, %v3319, %v3398
      %v3431 = vsel %vm3360, %v3324, %v3399
      %v3432 = vsel %vm3361, %v3327, %v3400
      %3433 = vst.msk [vmem:[#allocation4] sm:$0xff] %vm2581, %v3401
      %3434 = vst.msk [vmem:[#allocation4 + $0x8] sm:$0xff] %vm2581, %v3402
      %3435 = vst.msk [vmem:[#allocation4 + $0x10] sm:$0xff] %vm2581, %v3403
      %3436 = vst.msk [vmem:[#allocation4 + $0x18] sm:$0xff] %vm2581, %v3404
      %3437 = vst.msk [vmem:[#allocation4 + $0x20] sm:$0xff] %vm2581, %v3405
      %3438 = vst.msk [vmem:[#allocation4 + $0x28] sm:$0xff] %vm2581, %v3406
      %3439 = vst.msk [vmem:[#allocation4 + $0x30] sm:$0xff] %vm2581, %v3407
      %3440 = vst.msk [vmem:[#allocation4 + $0x38] sm:$0xff] %vm2581, %v3408
      %3441 = vst.msk [vmem:[#allocation4 + $0x40] sm:$0xff] %vm2581, %v3409
      %3442 = vst.msk [vmem:[#allocation4 + $0x48] sm:$0xff] %vm2581, %v3410
      %3443 = vst.msk [vmem:[#allocation4 + $0x50] sm:$0xff] %vm2581, %v3411
      %3444 = vst.msk [vmem:[#allocation4 + $0x58] sm:$0xff] %vm2581, %v3412
      %3445 = vst.msk [vmem:[#allocation4 + $0x60] sm:$0xff] %vm2581, %v3413
      %3446 = vst.msk [vmem:[#allocation4 + $0x68] sm:$0xff] %vm2581, %v3414
      %3447 = vst.msk [vmem:[#allocation4 + $0x70] sm:$0xff] %vm2581, %v3415
      %3448 = vst.msk [vmem:[#allocation4 + $0x78] sm:$0xff] %vm2581, %v3416
      %3449 = vst.msk [vmem:[#allocation4 + $0x80] sm:$0xff] %vm2581, %v3417
      %3450 = vst.msk [vmem:[#allocation4 + $0x88] sm:$0xff] %vm2581, %v3418
      %3451 = vst.msk [vmem:[#allocation4 + $0x90] sm:$0xff] %vm2581, %v3419
      %3452 = vst.msk [vmem:[#allocation4 + $0x98] sm:$0xff] %vm2581, %v3420
      %3453 = vst.msk [vmem:[#allocation4 + $0xa0] sm:$0xff] %vm2581, %v3421
      %3454 = vst.msk [vmem:[#allocation4 + $0xa8] sm:$0xff] %vm2581, %v3422
      %3455 = vst.msk [vmem:[#allocation4 + $0xb0] sm:$0xff] %vm2581, %v3423
      %3456 = vst.msk [vmem:[#allocation4 + $0xb8] sm:$0xff] %vm2581, %v3424
      %3457 = vst.msk [vmem:[#allocation4 + $0xc0] sm:$0xff] %vm2581, %v3425
      %3458 = vst.msk [vmem:[#allocation4 + $0xc8] sm:$0xff] %vm2581, %v3426
      %3459 = vst.msk [vmem:[#allocation4 + $0xd0] sm:$0xff] %vm2581, %v3427
      %3460 = vst.msk [vmem:[#allocation4 + $0xd8] sm:$0xff] %vm2581, %v3428
      %3461 = vst.msk [vmem:[#allocation4 + $0xe0] sm:$0xff] %vm2581, %v3429
      %3462 = vst.msk [vmem:[#allocation4 + $0xe8] sm:$0xff] %vm2581, %v3430
      %3463 = vst.msk [vmem:[#allocation4 + $0xf0] sm:$0xff] %vm2581, %v3431
      %3464 = vst.msk [vmem:[#allocation4 + $0xf8] sm:$0xff] %vm2581, %v3432
      %v3465 = vld [vmem:[#allocation4] ss:$2 sm:$0xff]
      %v3466 = vpack.c.bf16 %v3465, %v3465
      %3467 = vst.msk [vmem:[#allocation3 + $0x4] sm:$0xf] %vm447, %v3466
      %s3468 = scalar_lea.vmem [#allocation4], 32
      %v3469 = vld [vmem:[%s3468] ss:$2 sm:$0xff]
      %v3470 = vpack.c.bf16 %v3469, %v3469
      %3471 = vst.msk [vmem:[#allocation3 + $0x8] sm:$0xf] %vm447, %v3470
      %s3472 = scalar_lea.vmem [#allocation4], 64
      %v3473 = vld [vmem:[%s3472] ss:$2 sm:$0xff]
      %v3474 = vpack.c.bf16 %v3473, %v3473
      %3475 = vst.msk [vmem:[#allocation3 + $0xc] sm:$0xf] %vm447, %v3474
      %s3476 = scalar_lea.vmem [#allocation4], 96
      %v3477 = vld [vmem:[%s3476] ss:$2 sm:$0xff]
      %v3478 = vpack.c.bf16 %v3477, %v3477
      %3479 = vst.msk [vmem:[#allocation3 + $0x10] sm:$0xf] %vm447, %v3478
      %s3480 = scalar_lea.vmem [#allocation4], 128
      %v3481 = vld [vmem:[%s3480] ss:$2 sm:$0xff]
      %v3482 = vpack.c.bf16 %v3481, %v3481
      %3483 = vst.msk [vmem:[#allocation3 + $0x14] sm:$0xf] %vm447, %v3482
      %s3484 = scalar_lea.vmem [#allocation4], 160
      %v3485 = vld [vmem:[%s3484] ss:$2 sm:$0xff]
      %v3486 = vpack.c.bf16 %v3485, %v3485
      %3487 = vst.msk [vmem:[#allocation3 + $0x18] sm:$0xf] %vm447, %v3486
      %s3488 = scalar_lea.vmem [#allocation4], 192
      %v3489 = vld [vmem:[%s3488] ss:$2 sm:$0xff]
      %v3490 = vpack.c.bf16 %v3489, %v3489
      %3491 = vst.msk [vmem:[#allocation3 + $0x1c] sm:$0xf] %vm447, %v3490
      %s3492 = scalar_lea.vmem [#allocation4], 224
      %v3493 = vld [vmem:[%s3492] ss:$2 sm:$0xff]
      %v3494 = vpack.c.bf16 %v3493, %v3493
      %3495 = vst.msk [vmem:[#allocation3 + $0x20] sm:$0xf] %vm447, %v3494
      %s3496 = scalar_lea.vmem [#allocation4], 1
      %v3497 = vld [vmem:[%s3496] ss:$2 sm:$0xff]
      %v3498 = vpack.c.bf16 %v3497, %v3497
      %3499 = vst.msk [vmem:[#allocation3 + $0x2c] sm:$0xf] %vm447, %v3498
      %s3500 = scalar_lea.vmem [#allocation4], 33
      %v3501 = vld [vmem:[%s3500] ss:$2 sm:$0xff]
      %v3502 = vpack.c.bf16 %v3501, %v3501
      %3503 = vst.msk [vmem:[#allocation3 + $0x30] sm:$0xf] %vm447, %v3502
      %s3504 = scalar_lea.vmem [#allocation4], 65
      %v3505 = vld [vmem:[%s3504] ss:$2 sm:$0xff]
      %v3506 = vpack.c.bf16 %v3505, %v3505
      %3507 = vst.msk [vmem:[#allocation3 + $0x34] sm:$0xf] %vm447, %v3506
      %s3508 = scalar_lea.vmem [#allocation4], 97
      %v3509 = vld [vmem:[%s3508] ss:$2 sm:$0xff]
      %v3510 = vpack.c.bf16 %v3509, %v3509
      %3511 = vst.msk [vmem:[#allocation3 + $0x38] sm:$0xf] %vm447, %v3510
      %s3512 = scalar_lea.vmem [#allocation4], 129
      %v3513 = vld [vmem:[%s3512] ss:$2 sm:$0xff]
      %v3514 = vpack.c.bf16 %v3513, %v3513
      %3515 = vst.msk [vmem:[#allocation3 + $0x3c] sm:$0xf] %vm447, %v3514
      %s3516 = scalar_lea.vmem [#allocation4], 161
      %v3517 = vld [vmem:[%s3516] ss:$2 sm:$0xff]
      %v3518 = vpack.c.bf16 %v3517, %v3517
      %3519 = vst.msk [vmem:[#allocation3 + $0x40] sm:$0xf] %vm447, %v3518
      %s3520 = scalar_lea.vmem [#allocation4], 193
      %v3521 = vld [vmem:[%s3520] ss:$2 sm:$0xff]
      %v3522 = vpack.c.bf16 %v3521, %v3521
      %3523 = vst.msk [vmem:[#allocation3 + $0x44] sm:$0xf] %vm447, %v3522
      %s3524 = scalar_lea.vmem [#allocation4], 225
      %v3525 = vld [vmem:[%s3524] ss:$2 sm:$0xff]
      %v3526 = vpack.c.bf16 %v3525, %v3525
      %3527 = vst.msk [vmem:[#allocation3 + $0x48] sm:$0xf] %vm447, %v3526
      %s3528 = scalar_lea.vmem [#allocation4], 16
      %v3529 = vld [vmem:[%s3528] ss:$2 sm:$0xff]
      %v3530 = vpack.c.bf16 %v3529, %v3529
      %3531 = vst.msk [vmem:[#allocation3 + $0x54] sm:$0xf] %vm447, %v3530
      %s3532 = scalar_lea.vmem [#allocation4], 48
      %v3533 = vld [vmem:[%s3532] ss:$2 sm:$0xff]
      %v3534 = vpack.c.bf16 %v3533, %v3533
      %3535 = vst.msk [vmem:[#allocation3 + $0x58] sm:$0xf] %vm447, %v3534
      %s3536 = scalar_lea.vmem [#allocation4], 80
      %v3537 = vld [vmem:[%s3536] ss:$2 sm:$0xff]
      %v3538 = vpack.c.bf16 %v3537, %v3537
      %3539 = vst.msk [vmem:[#allocation3 + $0x5c] sm:$0xf] %vm447, %v3538
      %s3540 = scalar_lea.vmem [#allocation4], 112
      %v3541 = vld [vmem:[%s3540] ss:$2 sm:$0xff]
      %v3542 = vpack.c.bf16 %v3541, %v3541
      %3543 = vst.msk [vmem:[#allocation3 + $0x60] sm:$0xf] %vm447, %v3542
      %s3544 = scalar_lea.vmem [#allocation4], 144
      %v3545 = vld [vmem:[%s3544] ss:$2 sm:$0xff]
      %v3546 = vpack.c.bf16 %v3545, %v3545
      %3547 = vst.msk [vmem:[#allocation3 + $0x64] sm:$0xf] %vm447, %v3546
      %s3548 = scalar_lea.vmem [#allocation4], 176
      %v3549 = vld [vmem:[%s3548] ss:$2 sm:$0xff]
      %v3550 = vpack.c.bf16 %v3549, %v3549
      %3551 = vst.msk [vmem:[#allocation3 + $0x68] sm:$0xf] %vm447, %v3550
      %s3552 = scalar_lea.vmem [#allocation4], 208
      %v3553 = vld [vmem:[%s3552] ss:$2 sm:$0xff]
      %v3554 = vpack.c.bf16 %v3553, %v3553
      %3555 = vst.msk [vmem:[#allocation3 + $0x6c] sm:$0xf] %vm447, %v3554
      %s3556 = scalar_lea.vmem [#allocation4], 240
      %v3557 = vld [vmem:[%s3556] ss:$2 sm:$0xff]
      %v3558 = vpack.c.bf16 %v3557, %v3557
      %3559 = vst.msk [vmem:[#allocation3 + $0x70] sm:$0xf] %vm447, %v3558
      %s3560 = scalar_lea.vmem [#allocation4], 17
      %v3561 = vld [vmem:[%s3560] ss:$2 sm:$0xff]
      %v3562 = vpack.c.bf16 %v3561, %v3561
      %3563 = vst.msk [vmem:[#allocation3 + $0x7c] sm:$0xf] %vm447, %v3562
      %s3564 = scalar_lea.vmem [#allocation4], 49
      %v3565 = vld [vmem:[%s3564] ss:$2 sm:$0xff]
      %v3566 = vpack.c.bf16 %v3565, %v3565
      %3567 = vst.msk [vmem:[#allocation3 + $0x80] sm:$0xf] %vm447, %v3566
      %s3568 = scalar_lea.vmem [#allocation4], 81
      %v3569 = vld [vmem:[%s3568] ss:$2 sm:$0xff]
      %v3570 = vpack.c.bf16 %v3569, %v3569
      %3571 = vst.msk [vmem:[#allocation3 + $0x84] sm:$0xf] %vm447, %v3570
      %s3572 = scalar_lea.vmem [#allocation4], 113
      %v3573 = vld [vmem:[%s3572] ss:$2 sm:$0xff]
      %v3574 = vpack.c.bf16 %v3573, %v3573
      %3575 = vst.msk [vmem:[#allocation3 + $0x88] sm:$0xf] %vm447, %v3574
      %s3576 = scalar_lea.vmem [#allocation4], 145
      %v3577 = vld [vmem:[%s3576] ss:$2 sm:$0xff]
      %v3578 = vpack.c.bf16 %v3577, %v3577
      %3579 = vst.msk [vmem:[#allocation3 + $0x8c] sm:$0xf] %vm447, %v3578
      %s3580 = scalar_lea.vmem [#allocation4], 177
      %v3581 = vld [vmem:[%s3580] ss:$2 sm:$0xff]
      %v3582 = vpack.c.bf16 %v3581, %v3581
      %3583 = vst.msk [vmem:[#allocation3 + $0x90] sm:$0xf] %vm447, %v3582
      %s3584 = scalar_lea.vmem [#allocation4], 209
      %v3585 = vld [vmem:[%s3584] ss:$2 sm:$0xff]
      %v3586 = vpack.c.bf16 %v3585, %v3585
      %3587 = vst.msk [vmem:[#allocation3 + $0x94] sm:$0xf] %vm447, %v3586
      %s3588 = scalar_lea.vmem [#allocation4], 241
      %v3589 = vld [vmem:[%s3588] ss:$2 sm:$0xff]
      %v3590 = vpack.c.bf16 %v3589, %v3589
      %3591 = vst.msk [vmem:[#allocation3 + $0x98] sm:$0xf] %vm447, %v3590
      %vm3592 = vcmp.lt.s32.totalorder %v727, 0
      %v3593 = vsub.s32 0, %v727
      %v3594 = vsel %vm3592, %v3593, %v727
      %v3595 = vshrl.u32 %v3594, 3
      %v3596 = vand.u32 %v3594, 7
      %v3597 = vsub.s32 0, %v3596
      %v3598 = vsel %vm3592, %v3597, %v3596
      %vm3599 = vcmp.lt.s32.totalorder %v728, 0
      %v3600 = vsub.s32 0, %v728
      %v3601 = vsel %vm3599, %v3600, %v728
      %v3602 = vshrl.u32 %v3601, 3
      %v3603 = vand.u32 %v3601, 7
      %v3604 = vsub.s32 0, %v3603
      %v3605 = vsel %vm3599, %v3604, %v3603
      %vm3606 = vcmp.lt.s32.totalorder %v729, 0
      %v3607 = vsub.s32 0, %v729
      %v3608 = vsel %vm3606, %v3607, %v729
      %v3609 = vshrl.u32 %v3608, 3
      %v3610 = vand.u32 %v3608, 7
      %v3611 = vsub.s32 0, %v3610
      %v3612 = vsel %vm3606, %v3611, %v3610
      %vm3613 = vcmp.lt.s32.totalorder %v730, 0
      %v3614 = vsub.s32 0, %v730
      %v3615 = vsel %vm3613, %v3614, %v730
      %v3616 = vshrl.u32 %v3615, 3
      %v3617 = vand.u32 %v3615, 7
      %v3618 = vsub.s32 0, %v3617
      %v3619 = vsel %vm3613, %v3618, %v3617
      %vm3620 = vcmp.lt.s32.totalorder %v731, 0
      %v3621 = vsub.s32 0, %v731
      %v3622 = vsel %vm3620, %v3621, %v731
      %v3623 = vshrl.u32 %v3622, 3
      %v3624 = vand.u32 %v3622, 7
      %v3625 = vsub.s32 0, %v3624
      %v3626 = vsel %vm3620, %v3625, %v3624
      %vm3627 = vcmp.lt.s32.totalorder %v732, 0
      %v3628 = vsub.s32 0, %v732
      %v3629 = vsel %vm3627, %v3628, %v732
      %v3630 = vshrl.u32 %v3629, 3
      %v3631 = vand.u32 %v3629, 7
      %v3632 = vsub.s32 0, %v3631
      %v3633 = vsel %vm3627, %v3632, %v3631
      %vm3634 = vcmp.lt.s32.totalorder %v733, 0
      %v3635 = vsub.s32 0, %v733
      %v3636 = vsel %vm3634, %v3635, %v733
      %v3637 = vshrl.u32 %v3636, 3
      %v3638 = vand.u32 %v3636, 7
      %v3639 = vsub.s32 0, %v3638
      %v3640 = vsel %vm3634, %v3639, %v3638
      %vm3641 = vcmp.lt.s32.totalorder %v734, 0
      %v3642 = vsub.s32 0, %v734
      %v3643 = vsel %vm3641, %v3642, %v734
      %v3644 = vshrl.u32 %v3643, 3
      %v3645 = vand.u32 %v3643, 7
      %v3646 = vsub.s32 0, %v3645
      %v3647 = vsel %vm3641, %v3646, %v3645
      %vm3648 = vcmp.ne.s32.totalorder %v3598, 0
      %vm3649 = vcmp.ne.s32.totalorder %v3605, 0
      %vm3650 = vcmp.ne.s32.totalorder %v3612, 0
      %vm3651 = vcmp.ne.s32.totalorder %v3619, 0
      %vm3652 = vcmp.ne.s32.totalorder %v3626, 0
      %vm3653 = vcmp.ne.s32.totalorder %v3633, 0
      %vm3654 = vcmp.ne.s32.totalorder %v3640, 0
      %vm3655 = vcmp.ne.s32.totalorder %v3647, 0
      %vm3656 = vcmp.lt.s32.totalorder %v3598, 0
      %vm3657 = vcmp.lt.s32.totalorder %v3605, 0
      %vm3658 = vcmp.lt.s32.totalorder %v3612, 0
      %vm3659 = vcmp.lt.s32.totalorder %v3619, 0
      %vm3660 = vcmp.lt.s32.totalorder %v3626, 0
      %vm3661 = vcmp.lt.s32.totalorder %v3633, 0
      %vm3662 = vcmp.lt.s32.totalorder %v3640, 0
      %vm3663 = vcmp.lt.s32.totalorder %v3647, 0
      %vm3664 = vmand %vm3656, %vm3648
      %vm3665 = vmand %vm3657, %vm3649
      %vm3666 = vmand %vm3658, %vm3650
      %vm3667 = vmand %vm3659, %vm3651
      %vm3668 = vmand %vm3660, %vm3652
      %vm3669 = vmand %vm3661, %vm3653
      %vm3670 = vmand %vm3662, %vm3654
      %vm3671 = vmand %vm3663, %vm3655
      %v3672 = vadd.s32 %v3598, 8
      %v3673 = vadd.s32 %v3605, 8
      %v3674 = vadd.s32 %v3612, 8
      %v3675 = vadd.s32 %v3619, 8
      %v3676 = vadd.s32 %v3626, 8
      %v3677 = vadd.s32 %v3633, 8
      %v3678 = vadd.s32 %v3640, 8
      %v3679 = vadd.s32 %v3647, 8
      %v3680 = vsel %vm3664, %v3672, %v3598
      %v3681 = vsel %vm3665, %v3673, %v3605
      %v3682 = vsel %vm3666, %v3674, %v3612
      %v3683 = vsel %vm3667, %v3675, %v3619
      %v3684 = vsel %vm3668, %v3676, %v3626
      %v3685 = vsel %vm3669, %v3677, %v3633
      %v3686 = vsel %vm3670, %v3678, %v3640
      %v3687 = vsel %vm3671, %v3679, %v3647
      %v3688 = vld [vmem:[#allocation3 + $0x78] sm:$0xf]
      %v3689 = vld [vmem:[#allocation3 + $0x7c] sm:$0xf]
      %v3690 = vld [vmem:[#allocation3 + $0x80] sm:$0xf]
      %v3691 = vld [vmem:[#allocation3 + $0x84] sm:$0xf]
      %v3692 = vld [vmem:[#allocation3 + $0x88] sm:$0xf]
      %v3693 = vld [vmem:[#allocation3 + $0x8c] sm:$0xf]
      %v3694 = vld [vmem:[#allocation3 + $0x90] sm:$0xf]
      %v3695 = vld [vmem:[#allocation3 + $0x94] sm:$0xf]
      %v3696 = vunpack.c.l.bf16 %v3688
      %v3697 = vunpack.c.l.bf16 %v3689
      %v3698 = vunpack.c.l.bf16 %v3690
      %v3699 = vunpack.c.l.bf16 %v3691
      %v3700 = vunpack.c.l.bf16 %v3692
      %v3701 = vunpack.c.l.bf16 %v3693
      %v3702 = vunpack.c.l.bf16 %v3694
      %v3703 = vunpack.c.l.bf16 %v3695
      %vm3704 = vcmp.ne.s32.totalorder %v3680, 0
      %vm3705 = vcmp.ne.s32.totalorder %v3681, 0
      %vm3706 = vcmp.ne.s32.totalorder %v3682, 0
      %vm3707 = vcmp.ne.s32.totalorder %v3683, 0
      %vm3708 = vcmp.ne.s32.totalorder %v3684, 0
      %vm3709 = vcmp.ne.s32.totalorder %v3685, 0
      %vm3710 = vcmp.ne.s32.totalorder %v3686, 0
      %vm3711 = vcmp.ne.s32.totalorder %v3687, 0
      %v3712 = vrot.slane %v3696, 7
      %v3713 = vrot.slane %v3697, 7
      %v3714 = vrot.slane %v3698, 7
      %v3715 = vrot.slane %v3699, 7
      %v3716 = vrot.slane %v3700, 7
      %v3717 = vrot.slane %v3701, 7
      %v3718 = vrot.slane %v3702, 7
      %v3719 = vrot.slane %v3703, 7
      %v3720 = vsel %vm1271, %v3718, %v3719
      %v3721 = vsel %vm1271, %v3717, %v3718
      %v3722 = vsel %vm1271, %v3716, %v3717
      %v3723 = vsel %vm1271, %v3715, %v3716
      %v3724 = vsel %vm1271, %v3714, %v3715
      %v3725 = vsel %vm1271, %v3713, %v3714
      %v3726 = vsel %vm1271, %v3712, %v3713
      %v3727 = vsel %vm1271, %v3719, %v3712
      %v3728 = vsel %vm3704, 1, 0
      %v3729 = vsel %vm3705, 1, 0
      %v3730 = vsel %vm3706, 1, 0
      %v3731 = vsel %vm3707, 1, 0
      %v3732 = vsel %vm3708, 1, 0
      %v3733 = vsel %vm3709, 1, 0
      %v3734 = vsel %vm3710, 1, 0
      %v3735 = vsel %vm3711, 1, 0
      %vm3736 = vcmp.eq.s32.totalorder %v3728, 1
      %vm3737 = vcmp.eq.s32.totalorder %v3729, 1
      %vm3738 = vcmp.eq.s32.totalorder %v3730, 1
      %vm3739 = vcmp.eq.s32.totalorder %v3731, 1
      %vm3740 = vcmp.eq.s32.totalorder %v3732, 1
      %vm3741 = vcmp.eq.s32.totalorder %v3733, 1
      %vm3742 = vcmp.eq.s32.totalorder %v3734, 1
      %vm3743 = vcmp.eq.s32.totalorder %v3735, 1
      %v3744 = vsel %vm3736, %v3727, 0.0
      %v3745 = vsel %vm3737, %v3726, 0.0
      %v3746 = vsel %vm3738, %v3725, 0.0
      %v3747 = vsel %vm3739, %v3724, 0.0
      %v3748 = vsel %vm3740, %v3723, 0.0
      %v3749 = vsel %vm3741, %v3722, 0.0
      %v3750 = vsel %vm3742, %v3721, 0.0
      %v3751 = vsel %vm3743, %v3720, 0.0
      %v3752 = vld [vmem:[#allocation3 + $0x50] sm:$0xf]
      %v3753 = vld [vmem:[#allocation3 + $0x54] sm:$0xf]
      %v3754 = vld [vmem:[#allocation3 + $0x58] sm:$0xf]
      %v3755 = vld [vmem:[#allocation3 + $0x5c] sm:$0xf]
      %v3756 = vld [vmem:[#allocation3 + $0x60] sm:$0xf]
      %v3757 = vld [vmem:[#allocation3 + $0x64] sm:$0xf]
      %v3758 = vld [vmem:[#allocation3 + $0x68] sm:$0xf]
      %v3759 = vld [vmem:[#allocation3 + $0x6c] sm:$0xf]
      %v3760 = vunpack.c.l.bf16 %v3752
      %v3761 = vunpack.c.l.bf16 %v3753
      %v3762 = vunpack.c.l.bf16 %v3754
      %v3763 = vunpack.c.l.bf16 %v3755
      %v3764 = vunpack.c.l.bf16 %v3756
      %v3765 = vunpack.c.l.bf16 %v3757
      %v3766 = vunpack.c.l.bf16 %v3758
      %v3767 = vunpack.c.l.bf16 %v3759
      %v3768 = vld [vmem:[#allocation3 + $0x2c] sm:$0xf]
      %v3769 = vld [vmem:[#allocation3 + $0x30] sm:$0xf]
      %v3770 = vld [vmem:[#allocation3 + $0x34] sm:$0xf]
      %v3771 = vld [vmem:[#allocation3 + $0x38] sm:$0xf]
      %v3772 = vld [vmem:[#allocation3 + $0x3c] sm:$0xf]
      %v3773 = vld [vmem:[#allocation3 + $0x40] sm:$0xf]
      %v3774 = vld [vmem:[#allocation3 + $0x44] sm:$0xf]
      %v3775 = vld [vmem:[#allocation3 + $0x48] sm:$0xf]
      %v3776 = vunpack.c.l.bf16 %v3768
      %v3777 = vunpack.c.l.bf16 %v3769
      %v3778 = vunpack.c.l.bf16 %v3770
      %v3779 = vunpack.c.l.bf16 %v3771
      %v3780 = vunpack.c.l.bf16 %v3772
      %v3781 = vunpack.c.l.bf16 %v3773
      %v3782 = vunpack.c.l.bf16 %v3774
      %v3783 = vunpack.c.l.bf16 %v3775
      %v3784 = vrot.slane %v3776, 7
      %v3785 = vrot.slane %v3777, 7
      %v3786 = vrot.slane %v3778, 7
      %v3787 = vrot.slane %v3779, 7
      %v3788 = vrot.slane %v3780, 7
      %v3789 = vrot.slane %v3781, 7
      %v3790 = vrot.slane %v3782, 7
      %v3791 = vrot.slane %v3783, 7
      %v3792 = vsel %vm1271, %v3790, %v3791
      %v3793 = vsel %vm1271, %v3789, %v3790
      %v3794 = vsel %vm1271, %v3788, %v3789
      %v3795 = vsel %vm1271, %v3787, %v3788
      %v3796 = vsel %vm1271, %v3786, %v3787
      %v3797 = vsel %vm1271, %v3785, %v3786
      %v3798 = vsel %vm1271, %v3784, %v3785
      %v3799 = vsel %vm1271, %v3791, %v3784
      %v3800 = vsel %vm3736, %v3799, 0.0
      %v3801 = vsel %vm3737, %v3798, 0.0
      %v3802 = vsel %vm3738, %v3797, 0.0
      %v3803 = vsel %vm3739, %v3796, 0.0
      %v3804 = vsel %vm3740, %v3795, 0.0
      %v3805 = vsel %vm3741, %v3794, 0.0
      %v3806 = vsel %vm3742, %v3793, 0.0
      %v3807 = vsel %vm3743, %v3792, 0.0
      %3816 = vrot.lane.b32.xlu0 %v3760, 32
      %v3817 = vpop.permute.xlu0 %3816
      %3818 = vrot.lane.b32.xlu0 %v3761, 32
      %v3819 = vpop.permute.xlu0 %3818
      %3820 = vrot.lane.b32.xlu0 %v3762, 32
      %v3821 = vpop.permute.xlu0 %3820
      %3822 = vrot.lane.b32.xlu0 %v3763, 32
      %v3823 = vpop.permute.xlu0 %3822
      %3824 = vrot.lane.b32.xlu0 %v3764, 32
      %v3825 = vpop.permute.xlu0 %3824
      %3826 = vrot.lane.b32.xlu0 %v3765, 32
      %v3827 = vpop.permute.xlu0 %3826
      %3828 = vrot.lane.b32.xlu0 %v3766, 32
      %v3829 = vpop.permute.xlu0 %3828
      %3830 = vrot.lane.b32.xlu0 %v3767, 32
      %v3831 = vpop.permute.xlu0 %3830
      %3848 = vrot.lane.b32.xlu0 %v3696, 64
      %v3849 = vpop.permute.xlu0 %3848
      %3850 = vrot.lane.b32.xlu0 %v3697, 64
      %v3851 = vpop.permute.xlu0 %3850
      %3852 = vrot.lane.b32.xlu0 %v3698, 64
      %v3853 = vpop.permute.xlu0 %3852
      %3854 = vrot.lane.b32.xlu0 %v3699, 64
      %v3855 = vpop.permute.xlu0 %3854
      %3856 = vrot.lane.b32.xlu0 %v3700, 64
      %v3857 = vpop.permute.xlu0 %3856
      %3858 = vrot.lane.b32.xlu0 %v3701, 64
      %v3859 = vpop.permute.xlu0 %3858
      %3860 = vrot.lane.b32.xlu0 %v3702, 64
      %v3861 = vpop.permute.xlu0 %3860
      %3862 = vrot.lane.b32.xlu0 %v3703, 64
      %v3863 = vpop.permute.xlu0 %3862
      %3880 = vrot.lane.b32.xlu0 %v3800, 96
      %v3881 = vpop.permute.xlu0 %3880
      %3882 = vrot.lane.b32.xlu0 %v3801, 96
      %v3883 = vpop.permute.xlu0 %3882
      %3884 = vrot.lane.b32.xlu0 %v3802, 96
      %v3885 = vpop.permute.xlu0 %3884
      %3886 = vrot.lane.b32.xlu0 %v3803, 96
      %v3887 = vpop.permute.xlu0 %3886
      %3888 = vrot.lane.b32.xlu0 %v3804, 96
      %v3889 = vpop.permute.xlu0 %3888
      %3890 = vrot.lane.b32.xlu0 %v3805, 96
      %v3891 = vpop.permute.xlu0 %3890
      %3892 = vrot.lane.b32.xlu0 %v3806, 96
      %v3893 = vpop.permute.xlu0 %3892
      %3894 = vrot.lane.b32.xlu0 %v3807, 96
      %v3895 = vpop.permute.xlu0 %3894
      %v3904 = vsel %vm2581, %v3744, %v3817
      %v3905 = vsel %vm2581, %v3745, %v3819
      %v3906 = vsel %vm2581, %v3746, %v3821
      %v3907 = vsel %vm2581, %v3747, %v3823
      %v3908 = vsel %vm2581, %v3748, %v3825
      %v3909 = vsel %vm2581, %v3749, %v3827
      %v3910 = vsel %vm2581, %v3750, %v3829
      %v3911 = vsel %vm2581, %v3751, %v3831
      %v3912 = vsel %vm2647, %v3904, %v3849
      %v3913 = vsel %vm2647, %v3905, %v3851
      %v3914 = vsel %vm2647, %v3906, %v3853
      %v3915 = vsel %vm2647, %v3907, %v3855
      %v3916 = vsel %vm2647, %v3908, %v3857
      %v3917 = vsel %vm2647, %v3909, %v3859
      %v3918 = vsel %vm2647, %v3910, %v3861
      %v3919 = vsel %vm2647, %v3911, %v3863
      %v3920 = vsel %vm2713, %v3912, %v3881
      %v3921 = vsel %vm2713, %v3913, %v3883
      %v3922 = vsel %vm2713, %v3914, %v3885
      %v3923 = vsel %vm2713, %v3915, %v3887
      %v3924 = vsel %vm2713, %v3916, %v3889
      %v3925 = vsel %vm2713, %v3917, %v3891
      %v3926 = vsel %vm2713, %v3918, %v3893
      %v3927 = vsel %vm2713, %v3919, %v3895
      %v3928 = vpack.c.bf16 %v3921, %v3920
      %v3929 = vpack.c.bf16 %v3923, %v3922
      %v3930 = vpack.c.bf16 %v3925, %v3924
      %v3931 = vpack.c.bf16 %v3927, %v3926
      %v3932 = vld [vmem:[%s5] sm:$0xf]
      %v3933 = vld [vmem:[%s5 + $0x4] sm:$0xf]
      %v3934 = vld [vmem:[%s5 + $0x8] sm:$0xf]
      %v3935 = vld [vmem:[%s5 + $0xc] sm:$0xf]
      %v3936 = vld [vmem:[%s5 + $0x10] sm:$0xf]
      %v3937 = vld [vmem:[%s5 + $0x14] sm:$0xf]
      %v3938 = vld [vmem:[%s5 + $0x18] sm:$0xf]
      %v3939 = vld [vmem:[%s5 + $0x1c] sm:$0xf]
      %v3940 = vld [vmem:[%s5 + $0x20] sm:$0xf]
      %v3941 = vld [vmem:[%s5 + $0x24] sm:$0xf]
      %v3942 = vld [vmem:[%s5 + $0x28] sm:$0xf]
      %v3943 = vld [vmem:[%s5 + $0x2c] sm:$0xf]
      %v3944 = vld [vmem:[%s5 + $0x30] sm:$0xf]
      %v3945 = vld [vmem:[%s5 + $0x34] sm:$0xf]
      %v3946 = vld [vmem:[%s5 + $0x38] sm:$0xf]
      %v3947 = vld [vmem:[%s5 + $0x3c] sm:$0xf]
      %v3948 = vld [vmem:[#allocation3 + $0x4] sm:$0xf]
      %v3949 = vld [vmem:[#allocation3 + $0x8] sm:$0xf]
      %v3950 = vld [vmem:[#allocation3 + $0xc] sm:$0xf]
      %v3951 = vld [vmem:[#allocation3 + $0x10] sm:$0xf]
      %v3952 = vld [vmem:[#allocation3 + $0x14] sm:$0xf]
      %v3953 = vld [vmem:[#allocation3 + $0x18] sm:$0xf]
      %v3954 = vld [vmem:[#allocation3 + $0x1c] sm:$0xf]
      %v3955 = vld [vmem:[#allocation3 + $0x20] sm:$0xf]
      %v3956 = vunpack.c.l.bf16 %v3948
      %v3957 = vunpack.c.l.bf16 %v3949
      %v3958 = vunpack.c.l.bf16 %v3950
      %v3959 = vunpack.c.l.bf16 %v3951
      %v3960 = vunpack.c.l.bf16 %v3952
      %v3961 = vunpack.c.l.bf16 %v3953
      %v3962 = vunpack.c.l.bf16 %v3954
      %v3963 = vunpack.c.l.bf16 %v3955
      %v3964 = vld [vmem:[#allocation3 + $0x98] sm:$0xf]
      %v3965 = vunpack.c.l.bf16 %v3964
      %v3966 = vrot.slane %v3965, 7
      %v3967 = vsel %vm1271, %v3719, %v3966
      %v3968 = vsel %vm1271, %v3966, %v3713
      %v3969 = vsel %vm3736, %v3968, 0.0
      %v3970 = vsel %vm3737, %v3725, 0.0
      %v3971 = vsel %vm3738, %v3724, 0.0
      %v3972 = vsel %vm3739, %v3723, 0.0
      %v3973 = vsel %vm3740, %v3722, 0.0
      %v3974 = vsel %vm3741, %v3721, 0.0
      %v3975 = vsel %vm3742, %v3720, 0.0
      %v3976 = vsel %vm3743, %v3967, 0.0
      %v3977 = vld [vmem:[#allocation3 + $0x70] sm:$0xf]
      %v3978 = vunpack.c.l.bf16 %v3977
      %3987 = vrot.lane.b32.xlu0 %v3776, 32
      %v3988 = vpop.permute.xlu0 %3987
      %3989 = vrot.lane.b32.xlu0 %v3777, 32
      %v3990 = vpop.permute.xlu0 %3989
      %3991 = vrot.lane.b32.xlu0 %v3778, 32
      %v3992 = vpop.permute.xlu0 %3991
      %3993 = vrot.lane.b32.xlu0 %v3779, 32
      %v3994 = vpop.permute.xlu0 %3993
      %3995 = vrot.lane.b32.xlu0 %v3780, 32
      %v3996 = vpop.permute.xlu0 %3995
      %3997 = vrot.lane.b32.xlu0 %v3781, 32
      %v3998 = vpop.permute.xlu0 %3997
      %3999 = vrot.lane.b32.xlu0 %v3782, 32
      %v4000 = vpop.permute.xlu0 %3999
      %4001 = vrot.lane.b32.xlu0 %v3783, 32
      %v4002 = vpop.permute.xlu0 %4001
      %4019 = vrot.lane.b32.xlu0 %v3969, 64
      %v4020 = vpop.permute.xlu0 %4019
      %4021 = vrot.lane.b32.xlu0 %v3970, 64
      %v4022 = vpop.permute.xlu0 %4021
      %4023 = vrot.lane.b32.xlu0 %v3971, 64
      %v4024 = vpop.permute.xlu0 %4023
      %4025 = vrot.lane.b32.xlu0 %v3972, 64
      %v4026 = vpop.permute.xlu0 %4025
      %4027 = vrot.lane.b32.xlu0 %v3973, 64
      %v4028 = vpop.permute.xlu0 %4027
      %4029 = vrot.lane.b32.xlu0 %v3974, 64
      %v4030 = vpop.permute.xlu0 %4029
      %4031 = vrot.lane.b32.xlu0 %v3975, 64
      %v4032 = vpop.permute.xlu0 %4031
      %4033 = vrot.lane.b32.xlu0 %v3976, 64
      %v4034 = vpop.permute.xlu0 %4033
      %4044 = vrot.lane.b32.xlu0 %v3761, 96
      %v4045 = vpop.permute.xlu0 %4044
      %4046 = vrot.lane.b32.xlu0 %v3762, 96
      %v4047 = vpop.permute.xlu0 %4046
      %4048 = vrot.lane.b32.xlu0 %v3763, 96
      %v4049 = vpop.permute.xlu0 %4048
      %4050 = vrot.lane.b32.xlu0 %v3764, 96
      %v4051 = vpop.permute.xlu0 %4050
      %4052 = vrot.lane.b32.xlu0 %v3765, 96
      %v4053 = vpop.permute.xlu0 %4052
      %4054 = vrot.lane.b32.xlu0 %v3766, 96
      %v4055 = vpop.permute.xlu0 %4054
      %4056 = vrot.lane.b32.xlu0 %v3767, 96
      %v4057 = vpop.permute.xlu0 %4056
      %4058 = vrot.lane.b32.xlu0 %v3978, 96
      %v4059 = vpop.permute.xlu0 %4058
      %v4068 = vsel %vm2581, %v3956, %v3988
      %v4069 = vsel %vm2581, %v3957, %v3990
      %v4070 = vsel %vm2581, %v3958, %v3992
      %v4071 = vsel %vm2581, %v3959, %v3994
      %v4072 = vsel %vm2581, %v3960, %v3996
      %v4073 = vsel %vm2581, %v3961, %v3998
      %v4074 = vsel %vm2581, %v3962, %v4000
      %v4075 = vsel %vm2581, %v3963, %v4002
      %v4076 = vsel %vm2647, %v4068, %v4020
      %v4077 = vsel %vm2647, %v4069, %v4022
      %v4078 = vsel %vm2647, %v4070, %v4024
      %v4079 = vsel %vm2647, %v4071, %v4026
      %v4080 = vsel %vm2647, %v4072, %v4028
      %v4081 = vsel %vm2647, %v4073, %v4030
      %v4082 = vsel %vm2647, %v4074, %v4032
      %v4083 = vsel %vm2647, %v4075, %v4034
      %v4084 = vsel %vm2713, %v4076, %v4045
      %v4085 = vsel %vm2713, %v4077, %v4047
      %v4086 = vsel %vm2713, %v4078, %v4049
      %v4087 = vsel %vm2713, %v4079, %v4051
      %v4088 = vsel %vm2713, %v4080, %v4053
      %v4089 = vsel %vm2713, %v4081, %v4055
      %v4090 = vsel %vm2713, %v4082, %v4057
      %v4091 = vsel %vm2713, %v4083, %v4059
      %v4092 = vpack.c.bf16 %v4085, %v4084
      %v4093 = vpack.c.bf16 %v4087, %v4086
      %v4094 = vpack.c.bf16 %v4089, %v4088
      %v4095 = vpack.c.bf16 %v4091, %v4090
      %v4096 = vld [vmem:[%s5 + $0x40] sm:$0xf]
      %v4097 = vld [vmem:[%s5 + $0x44] sm:$0xf]
      %v4098 = vld [vmem:[%s5 + $0x48] sm:$0xf]
      %v4099 = vld [vmem:[%s5 + $0x4c] sm:$0xf]
      %v4100 = vld [vmem:[%s5 + $0x50] sm:$0xf]
      %v4101 = vld [vmem:[%s5 + $0x54] sm:$0xf]
      %v4102 = vld [vmem:[%s5 + $0x58] sm:$0xf]
      %v4103 = vld [vmem:[%s5 + $0x5c] sm:$0xf]
      %v4104 = vld [vmem:[%s5 + $0x60] sm:$0xf]
      %v4105 = vld [vmem:[%s5 + $0x64] sm:$0xf]
      %v4106 = vld [vmem:[%s5 + $0x68] sm:$0xf]
      %v4107 = vld [vmem:[%s5 + $0x6c] sm:$0xf]
      %v4108 = vld [vmem:[%s5 + $0x70] sm:$0xf]
      %v4109 = vld [vmem:[%s5 + $0x74] sm:$0xf]
      %v4110 = vld [vmem:[%s5 + $0x78] sm:$0xf]
      %v4111 = vld [vmem:[%s5 + $0x7c] sm:$0xf]
      %v4128 = vunpack.c.l.b16 %v4096
      %v4129 = vunpack.c.l.b16 %v4097
      %v4130 = vunpack.c.l.b16 %v4098
      %v4131 = vunpack.c.l.b16 %v4099
      %v4132 = vunpack.c.l.b16 %v4100
      %v4133 = vunpack.c.l.b16 %v4101
      %v4134 = vunpack.c.l.b16 %v4102
      %v4135 = vunpack.c.l.b16 %v4103
      %v4136 = vunpack.c.l.b16 %v4104
      %v4137 = vunpack.c.l.b16 %v4105
      %v4138 = vunpack.c.l.b16 %v4106
      %v4139 = vunpack.c.l.b16 %v4107
      %v4140 = vunpack.c.l.b16 %v4108
      %v4141 = vunpack.c.l.b16 %v4109
      %v4142 = vunpack.c.l.b16 %v4110
      %v4143 = vunpack.c.l.b16 %v4111
      %v4144 = vpack.c.b16 %v4129, %v4128
      %v4145 = vpack.c.b16 %v4131, %v4130
      %v4146 = vpack.c.b16 %v4133, %v4132
      %v4147 = vpack.c.b16 %v4135, %v4134
      %v4148 = vpack.c.b16 %v4137, %v4136
      %v4149 = vpack.c.b16 %v4139, %v4138
      %v4150 = vpack.c.b16 %v4141, %v4140
      %v4151 = vpack.c.b16 %v4143, %v4142
      %4160 = vmatprep.subr.bf16.mxu0 0
      %4161 = vmatpush1.bf16.msra.mxu0 %v4151
      %4162 = vmatprep.subr.bf16.mxu0 0
      %4163 = vmatpush1.bf16.msra.mxu0 %v4150
      %4164 = vmatprep.subr.bf16.mxu0 0
      %4165 = vmatpush1.bf16.msra.mxu0 %v4149
      %4166 = vmatprep.subr.bf16.mxu0 0
      %4167 = vmatpush1.bf16.msra.mxu0 %v4148
      %4168 = vmatprep.subr.bf16.mxu0 0
      %4169 = vmatpush1.bf16.msra.mxu0 %v4147
      %4170 = vmatprep.subr.bf16.mxu0 0
      %4171 = vmatpush1.bf16.msra.mxu0 %v4146
      %4172 = vmatprep.subr.bf16.mxu0 0
      %4173 = vmatpush1.bf16.msra.mxu0 %v4145
      %4174 = vmatprep.subr.bf16.mxu0 0
      %4175 = vmatpush1.bf16.msra.mxu0 %v4144
      %4176 = vmatprep.subr.bf16.mxu0 0
      %4177 = vmatpush2.bf16.msra.mxu0 0
      %4178 = vmatprep.subr.bf16.mxu0 0
      %4179 = vmatpush2.bf16.msra.mxu0 0
      %4180 = vmatprep.subr.bf16.mxu0 0
      %4181 = vmatpush2.bf16.msra.mxu0 0
      %4182 = vmatprep.subr.bf16.mxu0 0
      %4183 = vmatpush2.bf16.msra.mxu0 0
      %4184 = vmatprep.subr.bf16.mxu0 0
      %4185 = vmatpush2.bf16.msra.mxu0 0
      %4186 = vmatprep.subr.bf16.mxu0 0
      %4187 = vmatpush2.bf16.msra.mxu0 0
      %4188 = vmatprep.subr.bf16.mxu0 0
      %4189 = vmatpush2.bf16.msra.mxu0 0
      %4190 = vmatprep.subr.bf16.mxu0 0
      %4191 = vmatpush2.bf16.msra.mxu0 0
      %4192 = vmatprep.mubr.bf16.mxu0 0
      %4193 = vmatmul.mubr.bf16.gmra.mxu0 %v4092
      %v4194 = vpop.f32.mrf.mxu0
      %v4195 = vadd.f32 0.0, %v4194
      %v4196 = vpop.f32.mrf.mxu0
      %v4197 = vpop.f32.mrf.mxu0
      %v4198 = vadd.f32 0.0, %v4197
      %v4199 = vpop.f32.mrf.mxu0
      %4200 = vmatprep.mubr.bf16.mxu0 0
      %4201 = vmatmul.mubr.bf16.gmra.mxu0 %v4093
      %v4202 = vpop.f32.mrf.mxu0
      %v4203 = vadd.f32 0.0, %v4202
      %v4204 = vpop.f32.mrf.mxu0
      %v4205 = vpop.f32.mrf.mxu0
      %v4206 = vadd.f32 0.0, %v4205
      %v4207 = vpop.f32.mrf.mxu0
      %4208 = vmatprep.mubr.bf16.mxu0 0
      %4209 = vmatmul.mubr.bf16.gmra.mxu0 %v4094
      %v4210 = vpop.f32.mrf.mxu0
      %v4211 = vadd.f32 0.0, %v4210
      %v4212 = vpop.f32.mrf.mxu0
      %v4213 = vpop.f32.mrf.mxu0
      %v4214 = vadd.f32 0.0, %v4213
      %v4215 = vpop.f32.mrf.mxu0
      %4216 = vmatprep.mubr.bf16.mxu0 0
      %4217 = vmatmul.mubr.bf16.gmra.mxu0 %v4095
      %v4218 = vpop.f32.mrf.mxu0
      %v4219 = vadd.f32 0.0, %v4218
      %v4220 = vpop.f32.mrf.mxu0
      %v4221 = vpop.f32.mrf.mxu0
      %v4222 = vadd.f32 0.0, %v4221
      %v4223 = vpop.f32.mrf.mxu0
      %4224 = vdwg.mxu0
      %v4241 = vunpack.c.l.b16 %v3932
      %v4242 = vunpack.c.l.b16 %v3933
      %v4243 = vunpack.c.l.b16 %v3934
      %v4244 = vunpack.c.l.b16 %v3935
      %v4245 = vunpack.c.l.b16 %v3936
      %v4246 = vunpack.c.l.b16 %v3937
      %v4247 = vunpack.c.l.b16 %v3938
      %v4248 = vunpack.c.l.b16 %v3939
      %v4249 = vunpack.c.l.b16 %v3940
      %v4250 = vunpack.c.l.b16 %v3941
      %v4251 = vunpack.c.l.b16 %v3942
      %v4252 = vunpack.c.l.b16 %v3943
      %v4253 = vunpack.c.l.b16 %v3944
      %v4254 = vunpack.c.l.b16 %v3945
      %v4255 = vunpack.c.l.b16 %v3946
      %v4256 = vunpack.c.l.b16 %v3947
      %v4257 = vpack.c.b16 %v4242, %v4241
      %v4258 = vpack.c.b16 %v4244, %v4243
      %v4259 = vpack.c.b16 %v4246, %v4245
      %v4260 = vpack.c.b16 %v4248, %v4247
      %v4261 = vpack.c.b16 %v4250, %v4249
      %v4262 = vpack.c.b16 %v4252, %v4251
      %v4263 = vpack.c.b16 %v4254, %v4253
      %v4264 = vpack.c.b16 %v4256, %v4255
      %4273 = vmatprep.subr.bf16.mxu0 0
      %4274 = vmatpush1.bf16.msra.mxu0 %v4264
      %4275 = vmatprep.subr.bf16.mxu0 0
      %4276 = vmatpush1.bf16.msra.mxu0 %v4263
      %4277 = vmatprep.subr.bf16.mxu0 0
      %4278 = vmatpush1.bf16.msra.mxu0 %v4262
      %4279 = vmatprep.subr.bf16.mxu0 0
      %4280 = vmatpush1.bf16.msra.mxu0 %v4261
      %4281 = vmatprep.subr.bf16.mxu0 0
      %4282 = vmatpush1.bf16.msra.mxu0 %v4260
      %4283 = vmatprep.subr.bf16.mxu0 0
      %4284 = vmatpush1.bf16.msra.mxu0 %v4259
      %4285 = vmatprep.subr.bf16.mxu0 0
      %4286 = vmatpush1.bf16.msra.mxu0 %v4258
      %4287 = vmatprep.subr.bf16.mxu0 0
      %4288 = vmatpush1.bf16.msra.mxu0 %v4257
      %4289 = vmatprep.subr.bf16.mxu0 0
      %4290 = vmatpush2.bf16.msra.mxu0 0
      %4291 = vmatprep.subr.bf16.mxu0 0
      %4292 = vmatpush2.bf16.msra.mxu0 0
      %4293 = vmatprep.subr.bf16.mxu0 0
      %4294 = vmatpush2.bf16.msra.mxu0 0
      %4295 = vmatprep.subr.bf16.mxu0 0
      %4296 = vmatpush2.bf16.msra.mxu0 0
      %4297 = vmatprep.subr.bf16.mxu0 0
      %4298 = vmatpush2.bf16.msra.mxu0 0
      %4299 = vmatprep.subr.bf16.mxu0 0
      %4300 = vmatpush2.bf16.msra.mxu0 0
      %4301 = vmatprep.subr.bf16.mxu0 0
      %4302 = vmatpush2.bf16.msra.mxu0 0
      %4303 = vmatprep.subr.bf16.mxu0 0
      %4304 = vmatpush2.bf16.msra.mxu0 0
      %4305 = vmatprep.mubr.bf16.mxu0 0
      %4306 = vmatmul.mubr.bf16.gmra.mxu0 %v3928
      %v4307 = vpop.f32.mrf.mxu0
      %v4308 = vadd.f32 %v4195, %v4307
      %v4309 = vpop.f32.mrf.mxu0
      %v4310 = vpop.f32.mrf.mxu0
      %v4311 = vadd.f32 %v4198, %v4310
      %v4312 = vpop.f32.mrf.mxu0
      %4313 = vmatprep.mubr.bf16.mxu0 0
      %4314 = vmatmul.mubr.bf16.gmra.mxu0 %v3929
      %v4315 = vpop.f32.mrf.mxu0
      %v4316 = vadd.f32 %v4203, %v4315
      %v4317 = vpop.f32.mrf.mxu0
      %v4318 = vpop.f32.mrf.mxu0
      %v4319 = vadd.f32 %v4206, %v4318
      %v4320 = vpop.f32.mrf.mxu0
      %4321 = vmatprep.mubr.bf16.mxu0 0
      %4322 = vmatmul.mubr.bf16.gmra.mxu0 %v3930
      %v4323 = vpop.f32.mrf.mxu0
      %v4324 = vadd.f32 %v4211, %v4323
      %v4325 = vpop.f32.mrf.mxu0
      %v4326 = vpop.f32.mrf.mxu0
      %v4327 = vadd.f32 %v4214, %v4326
      %v4328 = vpop.f32.mrf.mxu0
      %4329 = vmatprep.mubr.bf16.mxu0 0
      %4330 = vmatmul.mubr.bf16.gmra.mxu0 %v3931
      %v4331 = vpop.f32.mrf.mxu0
      %v4332 = vadd.f32 %v4219, %v4331
      %v4333 = vpop.f32.mrf.mxu0
      %v4334 = vpop.f32.mrf.mxu0
      %v4335 = vadd.f32 %v4222, %v4334
      %v4336 = vpop.f32.mrf.mxu0
      %4337 = vdwg.mxu0
      %v4338 = vsel %vm2581, %v3697, 0.0
      %v4339 = vsel %vm2581, %v3698, 0.0
      %v4340 = vsel %vm2581, %v3699, 0.0
      %v4341 = vsel %vm2581, %v3700, 0.0
      %v4342 = vsel %vm2581, %v3701, 0.0
      %v4343 = vsel %vm2581, %v3702, 0.0
      %v4344 = vsel %vm2581, %v3703, 0.0
      %v4345 = vsel %vm2581, %v3965, 0.0
      %v4346 = vpack.c.bf16 %v4339, %v4338
      %v4347 = vpack.c.bf16 %v4341, %v4340
      %v4348 = vpack.c.bf16 %v4343, %v4342
      %v4349 = vpack.c.bf16 %v4345, %v4344
      %v4350 = vld [vmem:[%s5 + $0x80] sm:$0xf]
      %v4351 = vld [vmem:[%s5 + $0x84] sm:$0xf]
      %v4352 = vld [vmem:[%s5 + $0x88] sm:$0xf]
      %v4353 = vld [vmem:[%s5 + $0x8c] sm:$0xf]
      %v4354 = vld [vmem:[%s5 + $0x90] sm:$0xf]
      %v4355 = vld [vmem:[%s5 + $0x94] sm:$0xf]
      %v4356 = vld [vmem:[%s5 + $0x98] sm:$0xf]
      %v4357 = vld [vmem:[%s5 + $0x9c] sm:$0xf]
      %v4358 = vld [vmem:[%s5 + $0xa0] sm:$0xf]
      %v4359 = vld [vmem:[%s5 + $0xa4] sm:$0xf]
      %v4360 = vld [vmem:[%s5 + $0xa8] sm:$0xf]
      %v4361 = vld [vmem:[%s5 + $0xac] sm:$0xf]
      %v4362 = vld [vmem:[%s5 + $0xb0] sm:$0xf]
      %v4363 = vld [vmem:[%s5 + $0xb4] sm:$0xf]
      %v4364 = vld [vmem:[%s5 + $0xb8] sm:$0xf]
      %v4365 = vld [vmem:[%s5 + $0xbc] sm:$0xf]
      %v4382 = vunpack.c.l.b16 %v4350
      %v4383 = vunpack.c.l.b16 %v4351
      %v4384 = vunpack.c.l.b16 %v4352
      %v4385 = vunpack.c.l.b16 %v4353
      %v4386 = vunpack.c.l.b16 %v4354
      %v4387 = vunpack.c.l.b16 %v4355
      %v4388 = vunpack.c.l.b16 %v4356
      %v4389 = vunpack.c.l.b16 %v4357
      %v4390 = vunpack.c.l.b16 %v4358
      %v4391 = vunpack.c.l.b16 %v4359
      %v4392 = vunpack.c.l.b16 %v4360
      %v4393 = vunpack.c.l.b16 %v4361
      %v4394 = vunpack.c.l.b16 %v4362
      %v4395 = vunpack.c.l.b16 %v4363
      %v4396 = vunpack.c.l.b16 %v4364
      %v4397 = vunpack.c.l.b16 %v4365
      %v4398 = vpack.c.b16 %v4383, %v4382
      %v4399 = vpack.c.b16 %v4385, %v4384
      %v4400 = vpack.c.b16 %v4387, %v4386
      %v4401 = vpack.c.b16 %v4389, %v4388
      %v4402 = vpack.c.b16 %v4391, %v4390
      %v4403 = vpack.c.b16 %v4393, %v4392
      %v4404 = vpack.c.b16 %v4395, %v4394
      %v4405 = vpack.c.b16 %v4397, %v4396
      %4414 = vmatprep.subr.bf16.mxu0 0
      %4415 = vmatpush1.bf16.msra.mxu0 %v4405
      %4416 = vmatprep.subr.bf16.mxu0 0
      %4417 = vmatpush1.bf16.msra.mxu0 %v4404
      %4418 = vmatprep.subr.bf16.mxu0 0
      %4419 = vmatpush1.bf16.msra.mxu0 %v4403
      %4420 = vmatprep.subr.bf16.mxu0 0
      %4421 = vmatpush1.bf16.msra.mxu0 %v4402
      %4422 = vmatprep.subr.bf16.mxu0 0
      %4423 = vmatpush1.bf16.msra.mxu0 %v4401
      %4424 = vmatprep.subr.bf16.mxu0 0
      %4425 = vmatpush1.bf16.msra.mxu0 %v4400
      %4426 = vmatprep.subr.bf16.mxu0 0
      %4427 = vmatpush1.bf16.msra.mxu0 %v4399
      %4428 = vmatprep.subr.bf16.mxu0 0
      %4429 = vmatpush1.bf16.msra.mxu0 %v4398
      %4430 = vmatprep.subr.bf16.mxu0 0
      %4431 = vmatpush2.bf16.msra.mxu0 0
      %4432 = vmatprep.subr.bf16.mxu0 0
      %4433 = vmatpush2.bf16.msra.mxu0 0
      %4434 = vmatprep.subr.bf16.mxu0 0
      %4435 = vmatpush2.bf16.msra.mxu0 0
      %4436 = vmatprep.subr.bf16.mxu0 0
      %4437 = vmatpush2.bf16.msra.mxu0 0
      %4438 = vmatprep.subr.bf16.mxu0 0
      %4439 = vmatpush2.bf16.msra.mxu0 0
      %4440 = vmatprep.subr.bf16.mxu0 0
      %4441 = vmatpush2.bf16.msra.mxu0 0
      %4442 = vmatprep.subr.bf16.mxu0 0
      %4443 = vmatpush2.bf16.msra.mxu0 0
      %4444 = vmatprep.subr.bf16.mxu0 0
      %4445 = vmatpush2.bf16.msra.mxu0 0
      %4446 = vmatprep.mubr.bf16.mxu0 0
      %4447 = vmatmul.mubr.bf16.gmra.mxu0 %v4346
      %v4448 = vpop.f32.mrf.mxu0
      %v4449 = vadd.f32 0.0, %v4448
      %v4450 = vpop.f32.mrf.mxu0
      %v4451 = vpop.f32.mrf.mxu0
      %v4452 = vadd.f32 0.0, %v4451
      %v4453 = vpop.f32.mrf.mxu0
      %4454 = vmatprep.mubr.bf16.mxu0 0
      %4455 = vmatmul.mubr.bf16.gmra.mxu0 %v4347
      %v4456 = vpop.f32.mrf.mxu0
      %v4457 = vadd.f32 0.0, %v4456
      %v4458 = vpop.f32.mrf.mxu0
      %v4459 = vpop.f32.mrf.mxu0
      %v4460 = vadd.f32 0.0, %v4459
      %v4461 = vpop.f32.mrf.mxu0
      %4462 = vmatprep.mubr.bf16.mxu0 0
      %4463 = vmatmul.mubr.bf16.gmra.mxu0 %v4348
      %v4464 = vpop.f32.mrf.mxu0
      %v4465 = vadd.f32 0.0, %v4464
      %v4466 = vpop.f32.mrf.mxu0
      %v4467 = vpop.f32.mrf.mxu0
      %v4468 = vadd.f32 0.0, %v4467
      %v4469 = vpop.f32.mrf.mxu0
      %4470 = vmatprep.mubr.bf16.mxu0 0
      %4471 = vmatmul.mubr.bf16.gmra.mxu0 %v4349
      %v4472 = vpop.f32.mrf.mxu0
      %v4473 = vadd.f32 0.0, %v4472
      %v4474 = vpop.f32.mrf.mxu0
      %v4475 = vpop.f32.mrf.mxu0
      %v4476 = vadd.f32 0.0, %v4475
      %v4477 = vpop.f32.mrf.mxu0
      %4478 = vdwg.mxu0
      %v4479 = vadd.f32 %v4308, %v4449
      %v4480 = vadd.f32 %v4311, %v4452
      %v4481 = vadd.f32 %v4316, %v4457
      %v4482 = vadd.f32 %v4319, %v4460
      %v4483 = vadd.f32 %v4324, %v4465
      %v4484 = vadd.f32 %v4327, %v4468
      %v4485 = vadd.f32 %v4332, %v4473
      %v4486 = vadd.f32 %v4335, %v4476
      %v4487 = vld [vmem:[%s6] sm:$0x1]
      %v4489 = vlaneseq
      %v4490 = vshrl.u32 %v4489, 7
      %v4491 = vsub.s32 0, %v4490
      %v4492 = vrot.slane %v4487, %v4491
      %v4494 = vmul.f32 %v4479, %v4492
      %v4495 = vmul.f32 %v4480, %v4492
      %v4496 = vmul.f32 %v4481, %v4492
      %v4497 = vmul.f32 %v4482, %v4492
      %v4498 = vmul.f32 %v4483, %v4492
      %v4499 = vmul.f32 %v4484, %v4492
      %v4500 = vmul.f32 %v4485, %v4492
      %v4501 = vmul.f32 %v4486, %v4492
      %v4502 = vld [vmem:[%s7] sm:$0x1]
      %v4504 = vlaneseq
      %v4505 = vshrl.u32 %v4504, 7
      %v4506 = vsub.s32 0, %v4505
      %v4507 = vrot.slane %v4502, %v4506
      %v4509 = vadd.f32 %v4494, %v4507
      %v4510 = vadd.f32 %v4495, %v4507
      %v4511 = vadd.f32 %v4496, %v4507
      %v4512 = vadd.f32 %v4497, %v4507
      %v4513 = vadd.f32 %v4498, %v4507
      %v4514 = vadd.f32 %v4499, %v4507
      %v4515 = vadd.f32 %v4500, %v4507
      %v4516 = vadd.f32 %v4501, %v4507
      %v4517 = vsel %vm2581, %v4509, 0.0
      %v4518 = vsel %vm2581, %v4510, 0.0
      %v4519 = vadd.f32 %v4517, %v4518
      %v4520 = vsel %vm2581, %v4511, 0.0
      %v4521 = vadd.f32 %v4519, %v4520
      %v4522 = vsel %vm2581, %v4512, 0.0
      %v4523 = vadd.f32 %v4521, %v4522
      %v4524 = vsel %vm2581, %v4513, 0.0
      %v4525 = vadd.f32 %v4523, %v4524
      %v4526 = vsel %vm2581, %v4514, 0.0
      %v4527 = vadd.f32 %v4525, %v4526
      %v4528 = vsel %vm2581, %v4515, 0.0
      %v4529 = vadd.f32 %v4527, %v4528
      %v4530 = vsel %vm2581, %v4516, 0.0
      %v4531 = vadd.f32 %v4529, %v4530
      %v4532 = vrot.slane %v4531, 4
      %v4533 = vadd.f32 %v4531, %v4532
      %v4534 = vrot.slane %v4533, 2
      %v4535 = vadd.f32 %v4533, %v4534
      %v4536 = vrot.slane %v4535, 1
      %v4537 = vadd.f32 %v4535, %v4536
      %v4538 = vrcp.pop 64.0
      %v4539 = vmul.f32 %v4537, %v4538
      %v4540 = vld [vmem:[%s8] sm:$0xff]
      %v4541 = vld [vmem:[%s8 + $0x8] sm:$0xff]
      %v4542 = vld [vmem:[%s8 + $0x10] sm:$0xff]
      %v4543 = vld [vmem:[%s8 + $0x18] sm:$0xff]
      %v4545 = vsel %vm2581, %v4539, 0
      %4547 = vmatprep.subr.mxu0 0.0
      %4548 = vmatpush1.msra.mxu0 0.0
      %4549 = vmatprep.subr.mxu0 0.0
      %4550 = vmatpush1.msra.mxu0 0.0
      %4551 = vmatprep.subr.mxu0 0.0
      %4552 = vmatpush1.msra.mxu0 0.0
      %4553 = vmatprep.subr.mxu0 0.0
      %4554 = vmatpush1.msra.mxu0 0.0
      %4555 = vmatprep.subr.mxu0 0.0
      %4556 = vmatpush1.msra.mxu0 0.0
      %4557 = vmatprep.subr.mxu0 0.0
      %4558 = vmatpush1.msra.mxu0 0.0
      %4559 = vmatprep.subr.mxu0 0.0
      %4560 = vmatpush1.msra.mxu0 0.0
      %4561 = vmatprep.subr.mxu0 0.0
      %4562 = vmatpush1.msra.mxu0 0.0
      %4563 = vmatprep.subr.mxu0 0.0
      %4564 = vmatpush1.msra.mxu0 0.0
      %4565 = vmatprep.subr.mxu0 0.0
      %4566 = vmatpush1.msra.mxu0 0.0
      %4567 = vmatprep.subr.mxu0 0.0
      %4568 = vmatpush1.msra.mxu0 0.0
      %4569 = vmatprep.subr.mxu0 0.0
      %4570 = vmatpush1.msra.mxu0 0.0
      %4571 = vmatprep.subr.mxu0 0.0
      %4572 = vmatpush1.msra.mxu0 %v4543
      %4573 = vmatprep.subr.mxu0 0.0
      %4574 = vmatpush1.msra.mxu0 %v4542
      %4575 = vmatprep.subr.mxu0 0.0
      %4576 = vmatpush1.msra.mxu0 %v4541
      %4577 = vmatprep.subr.mxu0 0.0
      %4578 = vmatpush1.msra.mxu0 %v4540
      %4579 = vmatprep.subr.mxu0 0.0
      %4580 = vmatpush2.msra.mxu0 0.0
      %4581 = vmatprep.subr.mxu0 0.0
      %4582 = vmatpush2.msra.mxu0 0.0
      %4583 = vmatprep.subr.mxu0 0.0
      %4584 = vmatpush2.msra.mxu0 0.0
      %4585 = vmatprep.subr.mxu0 0.0
      %4586 = vmatpush2.msra.mxu0 0.0
      %4587 = vmatprep.subr.mxu0 0.0
      %4588 = vmatpush2.msra.mxu0 0.0
      %4589 = vmatprep.subr.mxu0 0.0
      %4590 = vmatpush2.msra.mxu0 0.0
      %4591 = vmatprep.subr.mxu0 0.0
      %4592 = vmatpush2.msra.mxu0 0.0
      %4593 = vmatprep.subr.mxu0 0.0
      %4594 = vmatpush2.msra.mxu0 0.0
      %4595 = vmatprep.subr.mxu0 0.0
      %4596 = vmatpush2.msra.mxu0 0.0
      %4597 = vmatprep.subr.mxu0 0.0
      %4598 = vmatpush2.msra.mxu0 0.0
      %4599 = vmatprep.subr.mxu0 0.0
      %4600 = vmatpush2.msra.mxu0 0.0
      %4601 = vmatprep.subr.mxu0 0.0
      %4602 = vmatpush2.msra.mxu0 0.0
      %4603 = vmatprep.subr.mxu0 0.0
      %4604 = vmatpush2.msra.mxu0 0.0
      %4605 = vmatprep.subr.mxu0 0.0
      %4606 = vmatpush2.msra.mxu0 0.0
      %4607 = vmatprep.subr.mxu0 0.0
      %4608 = vmatpush2.msra.mxu0 0.0
      %4609 = vmatprep.subr.mxu0 0.0
      %4610 = vmatpush2.msra.mxu0 0.0
      %4611 = vmatprep.mubr.f32.mxu0 0.0
      %4612 = vmatmul.mubr.f32.gmra.mxu0 %v4545
      %v4613 = vpop.f32.mrf.mxu0
      %v4614 = vadd.f32 0.0, %v4613
      %v4615 = vpop.f32.mrf.mxu0
      %4616 = vdwg.mxu0
      %v4617 = vmax.f32 %v4614, 0.0
      %v4618 = vld [vmem:[%s9] sm:$0x3]
      %vm4619 = vcmask 15360
      %v4621 = vsel %vm4619, %v4617, 0
      %vm4623 = vcmask 1041408
      %v4625 = vsel %vm4623, %v4618, 0
      %4627 = vmatprep.subr.mxu0 0.0
      %4628 = vmatpush1.msra.mxu0 0.0
      %4629 = vmatprep.subr.mxu0 0.0
      %4630 = vmatpush1.msra.mxu0 0.0
      %4631 = vmatprep.subr.mxu0 0.0
      %4632 = vmatpush1.msra.mxu0 0.0
      %4633 = vmatprep.subr.mxu0 0.0
      %4634 = vmatpush1.msra.mxu0 0.0
      %4635 = vmatprep.subr.mxu0 0.0
      %4636 = vmatpush1.msra.mxu0 0.0
      %4637 = vmatprep.subr.mxu0 0.0
      %4638 = vmatpush1.msra.mxu0 0.0
      %4639 = vmatprep.subr.mxu0 0.0
      %4640 = vmatpush1.msra.mxu0 0.0
      %4641 = vmatprep.subr.mxu0 0.0
      %4642 = vmatpush1.msra.mxu0 0.0
      %4643 = vmatprep.subr.mxu0 0.0
      %4644 = vmatpush1.msra.mxu0 0.0
      %4645 = vmatprep.subr.mxu0 0.0
      %4646 = vmatpush1.msra.mxu0 0.0
      %4647 = vmatprep.subr.mxu0 0.0
      %4648 = vmatpush1.msra.mxu0 0.0
      %4649 = vmatprep.subr.mxu0 0.0
      %4650 = vmatpush1.msra.mxu0 0.0
      %4651 = vmatprep.subr.mxu0 0.0
      %4652 = vmatpush1.msra.mxu0 0.0
      %4653 = vmatprep.subr.mxu0 0.0
      %4654 = vmatpush1.msra.mxu0 0.0
      %4655 = vmatprep.subr.mxu0 0.0
      %4656 = vmatpush1.msra.mxu0 0.0
      %4657 = vmatprep.subr.mxu0 0.0
      %4658 = vmatpush1.msra.mxu0 %v4625
      %4659 = vmatprep.subr.mxu0 0.0
      %4660 = vmatpush2.msra.mxu0 0.0
      %4661 = vmatprep.subr.mxu0 0.0
      %4662 = vmatpush2.msra.mxu0 0.0
      %4663 = vmatprep.subr.mxu0 0.0
      %4664 = vmatpush2.msra.mxu0 0.0
      %4665 = vmatprep.subr.mxu0 0.0
      %4666 = vmatpush2.msra.mxu0 0.0
      %4667 = vmatprep.subr.mxu0 0.0
      %4668 = vmatpush2.msra.mxu0 0.0
      %4669 = vmatprep.subr.mxu0 0.0
      %4670 = vmatpush2.msra.mxu0 0.0
      %4671 = vmatprep.subr.mxu0 0.0
      %4672 = vmatpush2.msra.mxu0 0.0
      %4673 = vmatprep.subr.mxu0 0.0
      %4674 = vmatpush2.msra.mxu0 0.0
      %4675 = vmatprep.subr.mxu0 0.0
      %4676 = vmatpush2.msra.mxu0 0.0
      %4677 = vmatprep.subr.mxu0 0.0
      %4678 = vmatpush2.msra.mxu0 0.0
      %4679 = vmatprep.subr.mxu0 0.0
      %4680 = vmatpush2.msra.mxu0 0.0
      %4681 = vmatprep.subr.mxu0 0.0
      %4682 = vmatpush2.msra.mxu0 0.0
      %4683 = vmatprep.subr.mxu0 0.0
      %4684 = vmatpush2.msra.mxu0 0.0
      %4685 = vmatprep.subr.mxu0 0.0
      %4686 = vmatpush2.msra.mxu0 0.0
      %4687 = vmatprep.subr.mxu0 0.0
      %4688 = vmatpush2.msra.mxu0 0.0
      %4689 = vmatprep.subr.mxu0 0.0
      %4690 = vmatpush2.msra.mxu0 0.0
      %4691 = vmatprep.mubr.f32.mxu0 0.0
      %4692 = vmatmul.mubr.f32.gmra.mxu0 %v4621
      %v4693 = vpop.f32.mrf.mxu0
      %v4694 = vadd.f32 0.0, %v4693
      %v4695 = vpop.f32.mrf.mxu0
      %4696 = vdwg.mxu0
      %v4697 = vxor.u32 %v4694, 2147483648
      %v4698 = vmul.f32 %v4697, 1.442695
      %v4699 = vpow.pop %v4698
      %v4700 = vadd.f32 %v4699, 1.0
      %v4701 = vrcp.pop %v4700
      %v4702 = vmul.f32 1.0, %v4701
      %v4703 = vld [vmem:[%s435] ss:$2 sm:$0xff]
      %s4704 = scalar_lea.vmem %s435, 32
      %v4705 = vld [vmem:[%s4704] ss:$2 sm:$0xff]
      %s4706 = scalar_lea.vmem %s435, 64
      %v4707 = vld [vmem:[%s4706] ss:$2 sm:$0xff]
      %s4708 = scalar_lea.vmem %s435, 96
      %v4709 = vld [vmem:[%s4708] ss:$2 sm:$0xff]
      %s4710 = scalar_lea.vmem %s435, 128
      %v4711 = vld [vmem:[%s4710] ss:$2 sm:$0xff]
      %s4712 = scalar_lea.vmem %s435, 160
      %v4713 = vld [vmem:[%s4712] ss:$2 sm:$0xff]
      %s4714 = scalar_lea.vmem %s435, 192
      %v4715 = vld [vmem:[%s4714] ss:$2 sm:$0xff]
      %s4716 = scalar_lea.vmem %s435, 224
      %v4717 = vld [vmem:[%s4716] ss:$2 sm:$0xff]
      %v4718 = vpack.c.bf16 %v4705, %v4703
      %v4719 = vpack.c.bf16 %v4709, %v4707
      %v4720 = vpack.c.bf16 %v4713, %v4711
      %v4721 = vpack.c.bf16 %v4717, %v4715
      %v4722 = vld [vmem:[%s10] sm:$0xf]
      %v4723 = vld [vmem:[%s10 + $0x4] sm:$0xf]
      %v4726 = vunpack.c.l.b16 %v4722
      %v4727 = vunpack.c.l.b16 %v4723
      %v4728 = vpack.c.b16 %v4727, %v4726
      %v4731 = vsel %vm2548, %v4718, 0
      %v4734 = vsel %vm2548, %v4719, 0
      %v4737 = vsel %vm2548, %v4720, 0
      %v4740 = vsel %vm2548, %v4721, 0
      %4742 = vmatprep.subr.bf16.mxu0 0
      %4743 = vmatpush1.bf16.msra.mxu0 0
      %4744 = vmatprep.subr.bf16.mxu0 0
      %4745 = vmatpush1.bf16.msra.mxu0 0
      %4746 = vmatprep.subr.bf16.mxu0 0
      %4747 = vmatpush1.bf16.msra.mxu0 0
      %4748 = vmatprep.subr.bf16.mxu0 0
      %4749 = vmatpush1.bf16.msra.mxu0 0
      %4750 = vmatprep.subr.bf16.mxu0 0
      %4751 = vmatpush1.bf16.msra.mxu0 0
      %4752 = vmatprep.subr.bf16.mxu0 0
      %4753 = vmatpush1.bf16.msra.mxu0 0
      %4754 = vmatprep.subr.bf16.mxu0 0
      %4755 = vmatpush1.bf16.msra.mxu0 0
      %4756 = vmatprep.subr.bf16.mxu0 0
      %4757 = vmatpush1.bf16.msra.mxu0 %v4728
      %4758 = vmatprep.subr.bf16.mxu0 0
      %4759 = vmatpush2.bf16.msra.mxu0 0
      %4760 = vmatprep.subr.bf16.mxu0 0
      %4761 = vmatpush2.bf16.msra.mxu0 0
      %4762 = vmatprep.subr.bf16.mxu0 0
      %4763 = vmatpush2.bf16.msra.mxu0 0
      %4764 = vmatprep.subr.bf16.mxu0 0
      %4765 = vmatpush2.bf16.msra.mxu0 0
      %4766 = vmatprep.subr.bf16.mxu0 0
      %4767 = vmatpush2.bf16.msra.mxu0 0
      %4768 = vmatprep.subr.bf16.mxu0 0
      %4769 = vmatpush2.bf16.msra.mxu0 0
      %4770 = vmatprep.subr.bf16.mxu0 0
      %4771 = vmatpush2.bf16.msra.mxu0 0
      %4772 = vmatprep.subr.bf16.mxu0 0
      %4773 = vmatpush2.bf16.msra.mxu0 0
      %4774 = vmatprep.mubr.bf16.mxu0 0
      %4775 = vmatmul.mubr.bf16.gmra.mxu0 %v4731
      %v4776 = vpop.f32.mrf.mxu0
      %v4777 = vadd.f32 0.0, %v4776
      %v4778 = vpop.f32.mrf.mxu0
      %v4779 = vpop.f32.mrf.mxu0
      %v4780 = vadd.f32 0.0, %v4779
      %v4781 = vpop.f32.mrf.mxu0
      %4782 = vmatprep.mubr.bf16.mxu0 0
      %4783 = vmatmul.mubr.bf16.gmra.mxu0 %v4734
      %v4784 = vpop.f32.mrf.mxu0
      %v4785 = vadd.f32 0.0, %v4784
      %v4786 = vpop.f32.mrf.mxu0
      %v4787 = vpop.f32.mrf.mxu0
      %v4788 = vadd.f32 0.0, %v4787
      %v4789 = vpop.f32.mrf.mxu0
      %4790 = vmatprep.mubr.bf16.mxu0 0
      %4791 = vmatmul.mubr.bf16.gmra.mxu0 %v4737
      %v4792 = vpop.f32.mrf.mxu0
      %v4793 = vadd.f32 0.0, %v4792
      %v4794 = vpop.f32.mrf.mxu0
      %v4795 = vpop.f32.mrf.mxu0
      %v4796 = vadd.f32 0.0, %v4795
      %v4797 = vpop.f32.mrf.mxu0
      %4798 = vmatprep.mubr.bf16.mxu0 0
      %4799 = vmatmul.mubr.bf16.gmra.mxu0 %v4740
      %v4800 = vpop.f32.mrf.mxu0
      %v4801 = vadd.f32 0.0, %v4800
      %v4802 = vpop.f32.mrf.mxu0
      %v4803 = vpop.f32.mrf.mxu0
      %v4804 = vadd.f32 0.0, %v4803
      %v4805 = vpop.f32.mrf.mxu0
      %4806 = vdwg.mxu0
      %v4807 = vld [vmem:[%s11] sm:$0x1]
      %v4809 = vlaneseq
      %v4810 = vshrl.u32 %v4809, 7
      %v4811 = vsub.s32 0, %v4810
      %v4812 = vrot.slane %v4807, %v4811
      %v4814 = vmul.f32 %v4777, %v4812
      %v4815 = vmul.f32 %v4780, %v4812
      %v4816 = vmul.f32 %v4785, %v4812
      %v4817 = vmul.f32 %v4788, %v4812
      %v4818 = vmul.f32 %v4793, %v4812
      %v4819 = vmul.f32 %v4796, %v4812
      %v4820 = vmul.f32 %v4801, %v4812
      %v4821 = vmul.f32 %v4804, %v4812
      %v4822 = vld [vmem:[%s12] sm:$0x1]
      %v4824 = vlaneseq
      %v4825 = vshrl.u32 %v4824, 7
      %v4826 = vsub.s32 0, %v4825
      %v4827 = vrot.slane %v4822, %v4826
      %v4829 = vadd.f32 %v4814, %v4827
      %v4830 = vadd.f32 %v4815, %v4827
      %v4831 = vadd.f32 %v4816, %v4827
      %v4832 = vadd.f32 %v4817, %v4827
      %v4833 = vadd.f32 %v4818, %v4827
      %v4834 = vadd.f32 %v4819, %v4827
      %v4835 = vadd.f32 %v4820, %v4827
      %v4836 = vadd.f32 %v4821, %v4827
      %v4837 = vlaneseq
      %v4838 = vshrl.u32 %v4837, 7
      %v4839 = vsub.s32 0, %v4838
      %v4840 = vrot.slane %v4702, %v4839
      %v4841 = vmul.f32 %v4509, %v4840
      %v4842 = vmul.f32 %v4510, %v4840
      %v4843 = vmul.f32 %v4511, %v4840
      %v4844 = vmul.f32 %v4512, %v4840
      %v4845 = vmul.f32 %v4513, %v4840
      %v4846 = vmul.f32 %v4514, %v4840
      %v4847 = vmul.f32 %v4515, %v4840
      %v4848 = vmul.f32 %v4516, %v4840
      %v4849 = vadd.f32 %v4841, %v4829
      %v4850 = vadd.f32 %v4842, %v4830
      %v4851 = vadd.f32 %v4843, %v4831
      %v4852 = vadd.f32 %v4844, %v4832
      %v4853 = vadd.f32 %v4845, %v4833
      %v4854 = vadd.f32 %v4846, %v4834
      %v4855 = vadd.f32 %v4847, %v4835
      %v4856 = vadd.f32 %v4848, %v4836
      %4857 = vst.msk [vmem:[%s440] sm:$0xff] %vm2581, %v4849
      %4858 = vst.msk [vmem:[%s440 + $0x8] sm:$0xff] %vm2581, %v4850
      %4859 = vst.msk [vmem:[%s440 + $0x10] sm:$0xff] %vm2581, %v4851
      %4860 = vst.msk [vmem:[%s440 + $0x18] sm:$0xff] %vm2581, %v4852
      %4861 = vst.msk [vmem:[%s440 + $0x20] sm:$0xff] %vm2581, %v4853
      %4862 = vst.msk [vmem:[%s440 + $0x28] sm:$0xff] %vm2581, %v4854
      %4863 = vst.msk [vmem:[%s440 + $0x30] sm:$0xff] %vm2581, %v4855
      %4864 = vst.msk [vmem:[%s440 + $0x38] sm:$0xff] %vm2581, %v4856
      %p4865 = scmp.lt.s32.totalorder %s24, 1
      %s4866 = scalar_select %p4865, %s24, 1
      %s4867 = smul.addr %s4866, 8
      %s4868 = smul.addr %s4867, 8
      %s4869 = scalar_lea.vmem %s13, %s4868
      // Predicated region
      $region73: #{tpu_custom_call.1} parent=71 // pred_check
        %p4870 = pneg %p320
      $region74: #{tpu_custom_call.1} parent=71 // pred_check_branch
        %4872 = sbr.rel (%p4870) target = $region76
      $region75: #{tpu_custom_call.1} parent=71 // pred_region
        _
      $region76: #{tpu_custom_call.1} parent=71 // pred_fallthru
        _
    $region72: #{tpu_custom_call.1} parent=5 // pred_fallthru
      _
    %p4873 = scmp.le.s32.totalorder 2, %s19
    // Predicated region
    $region77: #{tpu_custom_call.1} parent=5 // pred_check
      %p4874 = pneg %p4873
    $region78: #{tpu_custom_call.1} parent=5 // pred_check_branch
      %4876 = sbr.rel (%p4874) target = $region80
    $region79: #{tpu_custom_call.1} parent=5 // pred_region
      %s4877 = ssub.s32 %s19, 2
      // Predicated region
      $region81: #{tpu_custom_call.1} parent=79 // pred_check
        %p4878 = pneg %p326
      $region82: #{tpu_custom_call.1} parent=79 // pred_check_branch
        %4880 = sbr.rel (%p4878) target = $region84
      $region83: #{tpu_custom_call.1} parent=79 // pred_region
        %p4881 = scmp.lt.s32.totalorder %s25, 1
        %s4882 = scalar_select %p4881, %s25, 1
        %s4883 = smul.addr %s4882, 8
        %s4884 = smul.addr %s4883, 8
        %s4885 = scalar_lea.vmem %s13, %s4884
      $region84: #{tpu_custom_call.1} parent=79 // pred_fallthru
        _
    $region80: #{tpu_custom_call.1} parent=5 // pred_fallthru
      _
  $region6: #{tpu_custom_call.1} parent=0 // loop_footer
    %s23 = sadd.s32 1, %s19
  $region7: #{tpu_custom_call.1} parent=0 // loop_footer_branch
    %18 = sbr.rel target = $region3
  $region8: #{tpu_custom_call.1} parent=0 // loop_exit
    _

</llo_original>
